<compile_context>
chip_gen: v6e
topology: v6e:2x2x1
jax: 0.10.0
libtpu: 0.0.40
codegen_flags: <defaults>
</compile_context>

<pallas_src>
import jax
import jax.numpy as jnp
from jax.experimental import pallas as pl
from jax.experimental.pallas import tpu as pltpu

NUM_IMAGES = 7      # 6 rgb images + 1 normal image
NUM_RGB = 6
NUM_LAYERS = 8
POOL = 2
LN_EPS = 1e-5


def _vmem_capacity_bytes():
    """Per-TensorCore VMEM capacity; conservative (v7x) fallback if undetectable."""
    try:
        return int(pltpu.get_tpu_info().vmem_capacity_bytes)
    except Exception:
        return 64 * 1024 * 1024


def _fusion_kernel(aw_sm, saw_sm,
                   pmh_ref, nrm_ref, up_ref,
                   ca1u_ref, ca1n_ref, ca2u_ref, ca2n_ref,
                   crwu_ref, crwn_ref, crb_ref,
                   lng_ref, lnb_ref, out_ref):
    l = pl.program_id(0)
    bblk = pl.program_id(1)
    bb, nr, E, Fh = pmh_ref.shape[1], pmh_ref.shape[2], pmh_ref.shape[3], pmh_ref.shape[4]
    F = nrm_ref.shape[3]
    inv_2e = 1.0 / float(2 * E)

    # per-layer weights (same block index across all inner batch steps -> no re-DMA)
    u_bf = up_ref[...]                                   # (Fh, F) bf16, grid-constant 0/1
    ca1u, ca1n = ca1u_ref[0], ca1n_ref[0]                # (Cr, E) f32
    ca2u, ca2n = ca2u_ref[0], ca2n_ref[0]                # (E, Cr) f32
    crwu, crwn = crwu_ref[0], crwn_ref[0]                # (E, E) bf16
    crb = crb_ref[0]                                     # (E, 1) f32
    lng = lng_ref[0].astype(jnp.float32)                 # (E, F)
    lnb = lnb_ref[0].astype(jnp.float32)                 # (E, F)

    zcol = jnp.zeros((1, 1), jnp.float32)

    for bi in range(bb):                                 # statically unrolled over the block
        b = bblk * bb + bi

        # ---- attention-weighted sum of bf16 pooled rgb features, f32 accumulate (half res) ----
        upsh = aw_sm[l, b, 0] * pmh_ref[0, bi, 0].astype(jnp.float32)        # (E, Fh)
        for j in range(1, nr):
            upsh = upsh + aw_sm[l, b, j] * pmh_ref[0, bi, j].astype(jnp.float32)
        nrm = nrm_ref[0, bi]                                                 # (E, F) f32

        # ---- channel attention (SE); mean/max over F == mean/max over Fh for the
        #      nearest-upsampled rgb half, so the (2E,F) fused slab is never built ----
        vu = jnp.concatenate([jnp.mean(upsh, axis=1, keepdims=True),
                              jnp.max(upsh, axis=1, keepdims=True)], axis=1)  # (E, 2)
        vn = jnp.concatenate([jnp.mean(nrm, axis=1, keepdims=True),
                              jnp.max(nrm, axis=1, keepdims=True)], axis=1)   # (E, 2)
        h2 = jnp.maximum(
            jnp.dot(ca1u, vu, preferred_element_type=jnp.float32)
            + jnp.dot(ca1n, vn, preferred_element_type=jnp.float32), 0.0)     # (Cr, 2)
        h = h2[:, 0:1] + h2[:, 1:2]                                           # (Cr, 1)
        ca_u = jax.nn.sigmoid(jnp.dot(ca2u, h, preferred_element_type=jnp.float32))  # (E,1)
        ca_n = jax.nn.sigmoid(jnp.dot(ca2n, h, preferred_element_type=jnp.float32))  # (E,1)

        cu_h = upsh * ca_u                                                    # (E, Fh)
        cn = nrm * ca_n                                                       # (E, F)

        # ---- conv_reduce: rgb half at HALF resolution (crwu @ (ups*ca_u*sa) ==
        #      upsample(crwu @ (upsh*ca_u)) * sa); `* sa` folded into the epilogue ----
        ru_h = jnp.dot(crwu, cu_h.astype(jnp.bfloat16),
                       preferred_element_type=jnp.float32)                    # (E, Fh)
        rn = jnp.dot(crwn, cn.astype(jnp.bfloat16),
                     preferred_element_type=jnp.float32)                      # (E, F)

        # ---- nearest-neighbour upsamples: exact 0/1 selection matmuls, bf16 MXU ----
        # TODO(synk): up_ref is grid-constant; single-buffering it (pl.Buffered(1))
        #             would save ~0.6 MB VMEM at real shapes.
        ups = jnp.dot(upsh.astype(jnp.bfloat16), u_bf,
                      preferred_element_type=jnp.float32)                     # (E, F)
        ru = jnp.dot(ru_h.astype(jnp.bfloat16), u_bf,
                     preferred_element_type=jnp.float32)                      # (E, F)
        rows_h = jnp.concatenate([jnp.sum(cu_h, axis=0, keepdims=True),
                                  jnp.max(cu_h, axis=0, keepdims=True)], axis=0)  # (2, Fh)
        rows = jnp.dot(rows_h.astype(jnp.bfloat16), u_bf,
                       preferred_element_type=jnp.float32)                    # (2, F)

        # ---- spatial attention: channel-mean/max maps + k=3 pad=1 conv as a 3-tap stencil ----
        avg_map = (rows[0:1] + jnp.sum(cn, axis=0, keepdims=True)) * inv_2e   # (1, F)
        max_map = jnp.maximum(rows[1:2], jnp.max(cn, axis=0, keepdims=True))  # (1, F)

        def tap3(x, k0):
            left = jnp.concatenate([zcol, x[:, :F - 1]], axis=1)              # x[f-1], 0-pad
            right = jnp.concatenate([x[:, 1:], zcol], axis=1)                 # x[f+1], 0-pad
            return (saw_sm[l, k0] * left + saw_sm[l, k0 + 1] * x
                    + saw_sm[l, k0 + 2] * right)

        sa = jax.nn.sigmoid(tap3(avg_map, 0) + tap3(max_map, 3))              # (1, F)

        red = (ru + rn) * sa + crb                                            # (E, F)

        # ---- LayerNorm over (E, F) jointly (PyTorch nn.LayerNorm((out_channels, F))) ----
        mu = jnp.mean(jnp.mean(red, axis=1, keepdims=True), axis=0, keepdims=True)
        dev = red - mu
        var = jnp.mean(jnp.mean(dev * dev, axis=1, keepdims=True), axis=0, keepdims=True)
        y = dev * jax.lax.rsqrt(var + LN_EPS) * lng + lnb

        # ---- residual: norm(fusion) + upsampled_rgb + normal ----
        out_ref[0, bi] = y + ups + nrm


def attention_fusion_block(feature_sets, params, pool_size=POOL):
    fc_w = params["fc_w"]                       # (L, NR, Din)
    L, nr, Din = fc_w.shape
    B, E, F = feature_sets[0][0].shape
    assert F % pool_size == 0
    Fh = F // pool_size
    Cr = params["ca1"].shape[1]
    assert Din == nr * E * Fh

    # ---- glue (plain JAX): MaxPool1d(2,2) pair-max on flattened (E*F) views,
    #      RGB-attention FC + softmax (hoisted out of the kernel), stacking.
    #      Pooled rgb features shipped at HALF resolution in bf16. ----
    aw_l, pm_l, nrm_l = [], [], []
    for i in range(L):
        pooled = [feature_sets[j][i].reshape(B, E * Fh, pool_size).max(axis=-1)
                  for j in range(nr)]                                      # each (B, E*Fh) f32
        flat = jnp.concatenate(pooled, axis=1)                             # (B, Din)
        aw_l.append(jax.nn.softmax(flat @ fc_w[i].T + params["fc_b"][i], axis=-1))
        pm_l.append(jnp.stack([p.reshape(B, E, Fh) for p in pooled],
                              axis=1).astype(jnp.bfloat16))
        nrm_l.append(feature_sets[nr][i])
    aw = jnp.stack(aw_l, axis=0).astype(jnp.float32)         # (L, B, NR) -> SMEM scalars
    pmh = jnp.stack(pm_l, axis=0)                            # (L, B, NR, E, Fh) bf16
    normal = jnp.stack(nrm_l, axis=0)                        # (L, B, E, F) f32

    # nearest-upsample operator as an exact 0/1 matrix (exact in bf16): ups = upsh @ U
    hh = jnp.arange(Fh)[:, None]
    ff = jnp.arange(F)[None, :]
    U = (ff // pool_size == hh).astype(jnp.bfloat16)         # (Fh, F)

    # ---- per-layer parameter prep: split the 2E channel axis into rgb/normal halves ----
    ca1, ca2, cr_w = params["ca1"], params["ca2"], params["cr_w"]
    ca1u, ca1n = ca1[:, :, :E], ca1[:, :, E:]                # (L, Cr, E) each
    ca2u, ca2n = ca2[:, :E, :], ca2[:, E:, :]                # (L, E, Cr) each
    crwu = cr_w[:, :, :E].astype(jnp.bfloat16)               # (L, E, E)
    crwn = cr_w[:, :, E:].astype(jnp.bfloat16)               # (L, E, E)
    saw = params["sa_w"].reshape(L, 6).astype(jnp.float32)   # [avg taps 0..2 | max taps 0..2]
    crb = params["cr_b"].reshape(L, E, 1)
    lng = params["ln_g"].astype(jnp.bfloat16)
    lnb = params["ln_b"].astype(jnp.bfloat16)

    # ---- adaptive batch folding + VMEM limit (fold B when it fits: v5e/v6e 128 MiB;
    #      keep per-batch stepping on v7x 64 MiB) ----
    vmem_cap = _vmem_capacity_bytes()
    vmem_limit = min(vmem_cap * 3 // 4, 96 * 1024 * 1024)

    def _step_bytes(bbatch):
        stream = bbatch * (nr * E * Fh * 2 + 2 * E * F * 4)          # pmh bf16 + normal + out
        weights = (4 * Cr * E * 4 + 2 * E * E * 2 + E * 4
                   + 2 * E * F * 2 + Fh * F * 2)                     # SE f32, cr bf16, LN bf16, U
        temps = 8 * E * F * 4                                        # in-kernel f32 slabs (rough)
        return 2 * (stream + weights) + temps                        # x2: double buffering

    bb = B if _step_bytes(B) <= int(0.85 * vmem_limit) else 1
    grid = (L, B // bb)

    grid_spec = pltpu.PrefetchScalarGridSpec(
        num_scalar_prefetch=2,                                       # aw, saw -> SMEM scalars
        grid=grid,
        in_specs=[
            pl.BlockSpec((1, bb, nr, E, Fh), lambda l, b, *_: (l, b, 0, 0, 0)),  # pooled rgb bf16
            pl.BlockSpec((1, bb, E, F), lambda l, b, *_: (l, b, 0, 0)),          # normal f32
            pl.BlockSpec((Fh, F), lambda l, b, *_: (0, 0)),                      # upsample matrix
            pl.BlockSpec((1, Cr, E), lambda l, b, *_: (l, 0, 0)),                # CA fc1 (rgb)
            pl.BlockSpec((1, Cr, E), lambda l, b, *_: (l, 0, 0)),                # CA fc1 (normal)
            pl.BlockSpec((1, E, Cr), lambda l, b, *_: (l, 0, 0)),                # CA fc2 (rgb)
            pl.BlockSpec((1, E, Cr), lambda l, b, *_: (l, 0, 0)),                # CA fc2 (normal)
            pl.BlockSpec((1, E, E), lambda l, b, *_: (l, 0, 0)),                 # conv_reduce W rgb
            pl.BlockSpec((1, E, E), lambda l, b, *_: (l, 0, 0)),                 # conv_reduce W nrm
            pl.BlockSpec((1, E, 1), lambda l, b, *_: (l, 0, 0)),                 # conv_reduce bias
            pl.BlockSpec((1, E, F), lambda l, b, *_: (l, 0, 0)),                 # LN gamma bf16
            pl.BlockSpec((1, E, F), lambda l, b, *_: (l, 0, 0)),                 # LN beta bf16
        ],
        out_specs=pl.BlockSpec((1, bb, E, F), lambda l, b, *_: (l, b, 0, 0)),
    )

    out = pl.pallas_call(
        _fusion_kernel,
        out_shape=jax.ShapeDtypeStruct((L, B, E, F), jnp.float32),
        grid_spec=grid_spec,
        compiler_params=pltpu.CompilerParams(
            # L split across megacore TCs; inner batch axis "arbitrary" so the
            # per-layer weight blocks keep the same block index (no re-DMA).
            dimension_semantics=("parallel", "arbitrary"),
            vmem_limit_bytes=vmem_limit,
        ),
    )(aw, saw, pmh, normal, U, ca1u, ca1n, ca2u, ca2n, crwu, crwn, crb, lng, lnb)

    return [out[i] for i in range(L)]


def reference_forward(feature_sets, params, pool_size=POOL):
    """Pure-JAX (f32) re-implementation of the PyTorch forward, for sanity checking."""
    fc_w = params["fc_w"]
    L, nr, _ = fc_w.shape
    B, E, F = feature_sets[0][0].shape
    Fh = F // pool_size
    outs = []
    for i in range(L):
        pooled = [feature_sets[j][i].reshape(B, E * Fh, pool_size).max(axis=-1)
                  for j in range(nr)]
        rgbf = jnp.stack(pooled, axis=1)                                 # (B, nr, E*Fh)
        flat = rgbf.reshape(B, -1)
        aw = jax.nn.softmax(flat @ fc_w[i].T + params["fc_b"][i], axis=1)
        fusedr = jnp.sum(rgbf * aw[:, :, None], axis=1)                  # (B, E*Fh)
        ups = jnp.repeat(fusedr.reshape(B, E, Fh), pool_size, axis=-1)   # (B, E, F)
        nrm = feature_sets[nr][i]
        fused = jnp.concatenate([ups, nrm], axis=1)                      # (B, 2E, F)
        avgv = jnp.mean(fused, axis=2, keepdims=True)
        maxv = jnp.max(fused, axis=2, keepdims=True)

        def se(v):
            h = jnp.maximum(jnp.einsum("oc,bcx->box", params["ca1"][i], v), 0.0)
            return jnp.einsum("co,box->bcx", params["ca2"][i], h)

        ca_out = fused * jax.nn.sigmoid(se(avgv) + se(maxv))
        avg_map = jnp.mean(ca_out, axis=1, keepdims=True)
        max_map = jnp.max(ca_out, axis=1, keepdims=True)
        xin = jnp.concatenate([avg_map, max_map], axis=1)                # (B, 2, F)
        xpad = jnp.pad(xin, ((0, 0), (0, 0), (1, 1)))
        w = params["sa_w"][i][0]                                         # (2, 3)
        sa_logit = sum(w[c, k] * xpad[:, c, k:k + F]
                       for c in range(2) for k in range(3))              # (B, F)
        sa_out = ca_out * jax.nn.sigmoid(sa_logit)[:, None, :]
        red = (jnp.einsum("ec,bcf->bef", params["cr_w"][i], sa_out)
               + params["cr_b"][i][None, :, None])
        mu = jnp.mean(red, axis=(1, 2), keepdims=True)
        var = jnp.mean((red - mu) ** 2, axis=(1, 2), keepdims=True)
        y = ((red - mu) / jnp.sqrt(var + LN_EPS)
             * params["ln_g"][i][None] + params["ln_b"][i][None])
        outs.append(y + ups + nrm)
    return outs


if __name__ == "__main__":
    # Small shapes consistent with the module: (B, embed_dim, feature_dim) per image/layer.
    # (The real module uses embed_dim=789, feature_dim=768; here feature_dim is scaled
    #  down to 128 — a lane-aligned small stand-in for the hard-coded 768.)
    B, E, F = 2, 8, 128
    L, nr = NUM_LAYERS, NUM_RGB
    reduction = 8
    C, Cr = 2 * E, (2 * E) // reduction
    Fh = F // POOL
    Din = nr * E * Fh

    key = jax.random.PRNGKey(0)
    k_feat, *kp = jax.random.split(key, 9)

    feats = jax.random.normal(k_feat, (NUM_IMAGES, L, B, E, F), jnp.float32)
    feature_sets = [[feats[j, i] for i in range(L)] for j in range(NUM_IMAGES)]

    # deterministic synthetic parameters (shapes follow the module's __init__)
    params = {
        "fc_w": 0.05 * jax.random.normal(kp[0], (L, nr, Din), jnp.float32),
        "fc_b": 0.05 * jax.random.normal(kp[1], (L, nr), jnp.float32),
        "ca1":  0.3 * jax.random.normal(kp[2], (L, Cr, C), jnp.float32),
        "ca2":  0.3 * jax.random.normal(kp[3], (L, C, Cr), jnp.float32),
        "sa_w": 0.3 * jax.random.normal(kp[4], (L, 1, 2, 3), jnp.float32),
        "cr_w": 0.2 * jax.random.normal(kp[5], (L, E, C), jnp.float32),
        "cr_b": 0.1 * jax.random.normal(kp[6], (L, E), jnp.float32),
        "ln_g": jnp.ones((L, E, F), jnp.float32),    # PyTorch LayerNorm default init
        "ln_b": jnp.zeros((L, E, F), jnp.float32),
    }

    outs = attention_fusion_block(feature_sets, params)
    outs = [jax.block_until_ready(o) for o in outs]

    # sanity check vs pure-f32 JAX reference (loose tol: pmh/ups/conv_reduce/LN-affine
    # use bf16 operands on the MXU/VPU per the perf plan)
    refs = reference_forward(feature_sets, params)
    assert all(o.shape == (B, E, F) for o in outs)
    max_err = max(float(jnp.max(jnp.abs(o - r))) for o, r in zip(outs, refs))
    assert max_err < 1e-1, f"max abs error too large: {max_err}"
    print("KERNEL_OK")
</pallas_src>

<mosaic_0001>
module attributes {stable_mosaic.version = 11 : i64} {
  func.func @_fusion_kernel(%arg0: i32, %arg1: i32, %arg2: memref<8x2x6xf32, #tpu.memory_space<smem>>, %arg3: memref<8x6xf32, #tpu.memory_space<smem>>, %arg4: memref<1x2x6x8x64xbf16, #tpu.memory_space<vmem>>, %arg5: memref<1x2x8x128xf32, #tpu.memory_space<vmem>>, %arg6: memref<64x128xbf16, #tpu.memory_space<vmem>>, %arg7: memref<1x2x8xf32, #tpu.memory_space<vmem>>, %arg8: memref<1x2x8xf32, #tpu.memory_space<vmem>>, %arg9: memref<1x8x2xf32, #tpu.memory_space<vmem>>, %arg10: memref<1x8x2xf32, #tpu.memory_space<vmem>>, %arg11: memref<1x8x8xbf16, #tpu.memory_space<vmem>>, %arg12: memref<1x8x8xbf16, #tpu.memory_space<vmem>>, %arg13: memref<1x8x1xf32, #tpu.memory_space<vmem>>, %arg14: memref<1x8x128xbf16, #tpu.memory_space<vmem>>, %arg15: memref<1x8x128xbf16, #tpu.memory_space<vmem>>, %arg16: memref<1x2x8x128xf32, #tpu.memory_space<vmem>>) attributes {dimension_semantics = [#tpu.dimension_semantics<parallel>, #tpu.dimension_semantics<arbitrary>], iteration_bounds = array<i64: 8, 1>, scalar_prefetch = 2 : i64, scratch_operands = 0 : i64, tpu.core_type = #tpu.core_type<tc>, window_params = [{transform_indices = @transform_0, window_bounds = array<i64: 1, 2, 6, 8, 64>}, {transform_indices = @transform_1, window_bounds = array<i64: 1, 2, 8, 128>}, {pipeline_mode = #tpu.pipeline_mode<synchronous>, transform_indices = @transform_2, window_bounds = array<i64: 64, 128>}, {transform_indices = @transform_3, window_bounds = array<i64: 1, 2, 8>}, {transform_indices = @transform_4, window_bounds = array<i64: 1, 2, 8>}, {transform_indices = @transform_5, window_bounds = array<i64: 1, 8, 2>}, {transform_indices = @transform_6, window_bounds = array<i64: 1, 8, 2>}, {transform_indices = @transform_7, window_bounds = array<i64: 1, 8, 8>}, {transform_indices = @transform_8, window_bounds = array<i64: 1, 8, 8>}, {transform_indices = @transform_9, window_bounds = array<i64: 1, 8, 1>}, {transform_indices = @transform_10, window_bounds = array<i64: 1, 8, 128>}, {transform_indices = @transform_11, window_bounds = array<i64: 1, 8, 128>}, {transform_indices = @transform_12, window_bounds = array<i64: 1, 2, 8, 128>}]} {
    %c0 = arith.constant 0 : index
    %c0_0 = arith.constant 0 : index
    %0 = vector.load %arg6[%c0, %c0_0] : memref<64x128xbf16, #tpu.memory_space<vmem>>, vector<64x128xbf16>
    %c0_1 = arith.constant 0 : index
    %c0_2 = arith.constant 0 : index
    %c0_3 = arith.constant 0 : index
    %1 = vector.load %arg7[%c0_1, %c0_2, %c0_3] : memref<1x2x8xf32, #tpu.memory_space<vmem>>, vector<1x2x8xf32>
    %2 = vector.shape_cast %1 : vector<1x2x8xf32> to vector<2x8xf32>
    %c0_4 = arith.constant 0 : index
    %c0_5 = arith.constant 0 : index
    %c0_6 = arith.constant 0 : index
    %3 = vector.load %arg8[%c0_4, %c0_5, %c0_6] : memref<1x2x8xf32, #tpu.memory_space<vmem>>, vector<1x2x8xf32>
    %4 = vector.shape_cast %3 : vector<1x2x8xf32> to vector<2x8xf32>
    %c0_7 = arith.constant 0 : index
    %c0_8 = arith.constant 0 : index
    %c0_9 = arith.constant 0 : index
    %5 = vector.load %arg9[%c0_7, %c0_8, %c0_9] : memref<1x8x2xf32, #tpu.memory_space<vmem>>, vector<1x8x2xf32>
    %6 = vector.shape_cast %5 : vector<1x8x2xf32> to vector<8x2xf32>
    %c0_10 = arith.constant 0 : index
    %c0_11 = arith.constant 0 : index
    %c0_12 = arith.constant 0 : index
    %7 = vector.load %arg10[%c0_10, %c0_11, %c0_12] : memref<1x8x2xf32, #tpu.memory_space<vmem>>, vector<1x8x2xf32>
    %8 = vector.shape_cast %7 : vector<1x8x2xf32> to vector<8x2xf32>
    %c0_13 = arith.constant 0 : index
    %c0_14 = arith.constant 0 : index
    %c0_15 = arith.constant 0 : index
    %9 = vector.load %arg11[%c0_13, %c0_14, %c0_15] : memref<1x8x8xbf16, #tpu.memory_space<vmem>>, vector<1x8x8xbf16>
    %10 = vector.shape_cast %9 : vector<1x8x8xbf16> to vector<8x8xbf16>
    %c0_16 = arith.constant 0 : index
    %c0_17 = arith.constant 0 : index
    %c0_18 = arith.constant 0 : index
    %11 = vector.load %arg12[%c0_16, %c0_17, %c0_18] : memref<1x8x8xbf16, #tpu.memory_space<vmem>>, vector<1x8x8xbf16>
    %12 = vector.shape_cast %11 : vector<1x8x8xbf16> to vector<8x8xbf16>
    %c0_19 = arith.constant 0 : index
    %c0_20 = arith.constant 0 : index
    %c0_21 = arith.constant 0 : index
    %13 = vector.load %arg13[%c0_19, %c0_20, %c0_21] : memref<1x8x1xf32, #tpu.memory_space<vmem>>, vector<1x8x1xf32>
    %14 = vector.shape_cast %13 : vector<1x8x1xf32> to vector<8x1xf32>
    %c0_22 = arith.constant 0 : index
    %c0_23 = arith.constant 0 : index
    %c0_24 = arith.constant 0 : index
    %15 = vector.load %arg14[%c0_22, %c0_23, %c0_24] : memref<1x8x128xbf16, #tpu.memory_space<vmem>>, vector<1x8x128xbf16>
    %16 = vector.shape_cast %15 : vector<1x8x128xbf16> to vector<8x128xbf16>
    %17 = arith.extf %16 : vector<8x128xbf16> to vector<8x128xf32>
    %c0_25 = arith.constant 0 : index
    %c0_26 = arith.constant 0 : index
    %c0_27 = arith.constant 0 : index
    %18 = vector.load %arg15[%c0_25, %c0_26, %c0_27] : memref<1x8x128xbf16, #tpu.memory_space<vmem>>, vector<1x8x128xbf16>
    %19 = vector.shape_cast %18 : vector<1x8x128xbf16> to vector<8x128xbf16>
    %20 = arith.extf %19 : vector<8x128xbf16> to vector<8x128xf32>
    %cst = arith.constant 0.000000e+00 : f32
    %21 = vector.broadcast %cst : f32 to vector<1x1xf32>
    %c2_i32 = arith.constant 2 : i32
    %22 = arith.muli %arg1, %c2_i32 : i32
    %c0_i32 = arith.constant 0 : i32
    %23 = arith.addi %22, %c0_i32 : i32
    %24 = arith.index_cast %arg0 : i32 to index
    %25 = arith.index_cast %23 : i32 to index
    %c0_28 = arith.constant 0 : index
    %26 = memref.load %arg2[%24, %25, %c0_28] : memref<8x2x6xf32, #tpu.memory_space<smem>>
    %c0_29 = arith.constant 0 : index
    %c0_30 = arith.constant 0 : index
    %c0_31 = arith.constant 0 : index
    %c0_32 = arith.constant 0 : index
    %c0_33 = arith.constant 0 : index
    %27 = vector.load %arg4[%c0_29, %c0_30, %c0_31, %c0_32, %c0_33] : memref<1x2x6x8x64xbf16, #tpu.memory_space<vmem>>, vector<1x1x1x8x64xbf16>
    %28 = vector.shape_cast %27 : vector<1x1x1x8x64xbf16> to vector<8x64xbf16>
    %29 = arith.extf %28 : vector<8x64xbf16> to vector<8x64xf32>
    %30 = vector.broadcast %26 : f32 to vector<8x64xf32>
    %31 = arith.mulf %30, %29 : vector<8x64xf32>
    %32 = arith.index_cast %arg0 : i32 to index
    %33 = arith.index_cast %23 : i32 to index
    %c1 = arith.constant 1 : index
    %34 = memref.load %arg2[%32, %33, %c1] : memref<8x2x6xf32, #tpu.memory_space<smem>>
    %c0_34 = arith.constant 0 : index
    %c0_35 = arith.constant 0 : index
    %c1_36 = arith.constant 1 : index
    %c0_37 = arith.constant 0 : index
    %c0_38 = arith.constant 0 : index
    %35 = vector.load %arg4[%c0_34, %c0_35, %c1_36, %c0_37, %c0_38] : memref<1x2x6x8x64xbf16, #tpu.memory_space<vmem>>, vector<1x1x1x8x64xbf16>
    %36 = vector.shape_cast %35 : vector<1x1x1x8x64xbf16> to vector<8x64xbf16>
    %37 = arith.extf %36 : vector<8x64xbf16> to vector<8x64xf32>
    %38 = vector.broadcast %34 : f32 to vector<8x64xf32>
    %39 = arith.mulf %38, %37 : vector<8x64xf32>
    %40 = arith.addf %31, %39 : vector<8x64xf32>
    %41 = arith.index_cast %arg0 : i32 to index
    %42 = arith.index_cast %23 : i32 to index
    %c2 = arith.constant 2 : index
    %43 = memref.load %arg2[%41, %42, %c2] : memref<8x2x6xf32, #tpu.memory_space<smem>>
    %c0_39 = arith.constant 0 : index
    %c0_40 = arith.constant 0 : index
    %c2_41 = arith.constant 2 : index
    %c0_42 = arith.constant 0 : index
    %c0_43 = arith.constant 0 : index
    %44 = vector.load %arg4[%c0_39, %c0_40, %c2_41, %c0_42, %c0_43] : memref<1x2x6x8x64xbf16, #tpu.memory_space<vmem>>, vector<1x1x1x8x64xbf16>
    %45 = vector.shape_cast %44 : vector<1x1x1x8x64xbf16> to vector<8x64xbf16>
    %46 = arith.extf %45 : vector<8x64xbf16> to vector<8x64xf32>
    %47 = vector.broadcast %43 : f32 to vector<8x64xf32>
    %48 = arith.mulf %47, %46 : vector<8x64xf32>
    %49 = arith.addf %40, %48 : vector<8x64xf32>
    %50 = arith.index_cast %arg0 : i32 to index
    %51 = arith.index_cast %23 : i32 to index
    %c3 = arith.constant 3 : index
    %52 = memref.load %arg2[%50, %51, %c3] : memref<8x2x6xf32, #tpu.memory_space<smem>>
    %c0_44 = arith.constant 0 : index
    %c0_45 = arith.constant 0 : index
    %c3_46 = arith.constant 3 : index
    %c0_47 = arith.constant 0 : index
    %c0_48 = arith.constant 0 : index
    %53 = vector.load %arg4[%c0_44, %c0_45, %c3_46, %c0_47, %c0_48] : memref<1x2x6x8x64xbf16, #tpu.memory_space<vmem>>, vector<1x1x1x8x64xbf16>
    %54 = vector.shape_cast %53 : vector<1x1x1x8x64xbf16> to vector<8x64xbf16>
    %55 = arith.extf %54 : vector<8x64xbf16> to vector<8x64xf32>
    %56 = vector.broadcast %52 : f32 to vector<8x64xf32>
    %57 = arith.mulf %56, %55 : vector<8x64xf32>
    %58 = arith.addf %49, %57 : vector<8x64xf32>
    %59 = arith.index_cast %arg0 : i32 to index
    %60 = arith.index_cast %23 : i32 to index
    %c4 = arith.constant 4 : index
    %61 = memref.load %arg2[%59, %60, %c4] : memref<8x2x6xf32, #tpu.memory_space<smem>>
    %c0_49 = arith.constant 0 : index
    %c0_50 = arith.constant 0 : index
    %c4_51 = arith.constant 4 : index
    %c0_52 = arith.constant 0 : index
    %c0_53 = arith.constant 0 : index
    %62 = vector.load %arg4[%c0_49, %c0_50, %c4_51, %c0_52, %c0_53] : memref<1x2x6x8x64xbf16, #tpu.memory_space<vmem>>, vector<1x1x1x8x64xbf16>
    %63 = vector.shape_cast %62 : vector<1x1x1x8x64xbf16> to vector<8x64xbf16>
    %64 = arith.extf %63 : vector<8x64xbf16> to vector<8x64xf32>
    %65 = vector.broadcast %61 : f32 to vector<8x64xf32>
    %66 = arith.mulf %65, %64 : vector<8x64xf32>
    %67 = arith.addf %58, %66 : vector<8x64xf32>
    %68 = arith.index_cast %arg0 : i32 to index
    %69 = arith.index_cast %23 : i32 to index
    %c5 = arith.constant 5 : index
    %70 = memref.load %arg2[%68, %69, %c5] : memref<8x2x6xf32, #tpu.memory_space<smem>>
    %c0_54 = arith.constant 0 : index
    %c0_55 = arith.constant 0 : index
    %c5_56 = arith.constant 5 : index
    %c0_57 = arith.constant 0 : index
    %c0_58 = arith.constant 0 : index
    %71 = vector.load %arg4[%c0_54, %c0_55, %c5_56, %c0_57, %c0_58] : memref<1x2x6x8x64xbf16, #tpu.memory_space<vmem>>, vector<1x1x1x8x64xbf16>
    %72 = vector.shape_cast %71 : vector<1x1x1x8x64xbf16> to vector<8x64xbf16>
    %73 = arith.extf %72 : vector<8x64xbf16> to vector<8x64xf32>
    %74 = vector.broadcast %70 : f32 to vector<8x64xf32>
    %75 = arith.mulf %74, %73 : vector<8x64xf32>
    %76 = arith.addf %67, %75 : vector<8x64xf32>
    %c0_59 = arith.constant 0 : index
    %c0_60 = arith.constant 0 : index
    %c0_61 = arith.constant 0 : index
    %c0_62 = arith.constant 0 : index
    %77 = vector.load %arg5[%c0_59, %c0_60, %c0_61, %c0_62] : memref<1x2x8x128xf32, #tpu.memory_space<vmem>>, vector<1x1x8x128xf32>
    %78 = vector.shape_cast %77 : vector<1x1x8x128xf32> to vector<8x128xf32>
    %cst_63 = arith.constant dense<0.000000e+00> : vector<8xf32>
    %79 = vector.multi_reduction <add>, %76, %cst_63 [1] : vector<8x64xf32> to vector<8xf32>
    %80 = vector.shape_cast %79 : vector<8xf32> to vector<8x1xf32>
    %cst_64 = arith.constant 6.400000e+01 : f32
    %81 = vector.broadcast %cst_64 : f32 to vector<8x1xf32>
    %82 = arith.divf %80, %81 : vector<8x1xf32>
    %cst_65 = arith.constant dense<0xFF800000> : vector<8xf32>
    %83 = vector.multi_reduction <maximumf>, %76, %cst_65 [1] : vector<8x64xf32> to vector<8xf32>
    %84 = vector.shape_cast %83 : vector<8xf32> to vector<8x1xf32>
    %85 = tpu.concatenate %82, %84 in 1 : vector<8x1xf32>, vector<8x1xf32> -> vector<8x2xf32>
    %cst_66 = arith.constant dense<0.000000e+00> : vector<8xf32>
    %86 = vector.multi_reduction <add>, %78, %cst_66 [1] : vector<8x128xf32> to vector<8xf32>
    %87 = vector.shape_cast %86 : vector<8xf32> to vector<8x1xf32>
    %cst_67 = arith.constant 1.280000e+02 : f32
    %88 = vector.broadcast %cst_67 : f32 to vector<8x1xf32>
    %89 = arith.divf %87, %88 : vector<8x1xf32>
    %cst_68 = arith.constant dense<0xFF800000> : vector<8xf32>
    %90 = vector.multi_reduction <maximumf>, %78, %cst_68 [1] : vector<8x128xf32> to vector<8xf32>
    %91 = vector.shape_cast %90 : vector<8xf32> to vector<8x1xf32>
    %92 = tpu.concatenate %89, %91 in 1 : vector<8x1xf32>, vector<8x1xf32> -> vector<8x2xf32>
    %cst_69 = arith.constant dense<0.000000e+00> : vector<2x2xf32>
    %93 = tpu.matmul %2, %85, %cst_69 {dimension_numbers = #tpu.dot_dimension_numbers<[1], [0], [0], [1], [0, 0, 1, 1], [], []>} : vector<2x8xf32>, vector<8x2xf32>, vector<2x2xf32> -> vector<2x2xf32>
    %cst_70 = arith.constant dense<0.000000e+00> : vector<2x2xf32>
    %94 = tpu.matmul %4, %92, %cst_70 {dimension_numbers = #tpu.dot_dimension_numbers<[1], [0], [0], [1], [0, 0, 1, 1], [], []>} : vector<2x8xf32>, vector<8x2xf32>, vector<2x2xf32> -> vector<2x2xf32>
    %95 = arith.addf %93, %94 : vector<2x2xf32>
    %cst_71 = arith.constant 0.000000e+00 : f32
    %96 = vector.broadcast %cst_71 : f32 to vector<2x2xf32>
    %97 = arith.maximumf %95, %96 : vector<2x2xf32>
    %98 = vector.extract_strided_slice %97 {offsets = [0, 0], sizes = [2, 1], strides = [1, 1]} : vector<2x2xf32> to vector<2x1xf32>
    %99 = vector.extract_strided_slice %97 {offsets = [0, 1], sizes = [2, 1], strides = [1, 1]} : vector<2x2xf32> to vector<2x1xf32>
    %100 = arith.addf %98, %99 : vector<2x1xf32>
    %cst_72 = arith.constant dense<0.000000e+00> : vector<8x1xf32>
    %101 = tpu.matmul %6, %100, %cst_72 {dimension_numbers = #tpu.dot_dimension_numbers<[1], [0], [0], [1], [0, 0, 1, 1], [], []>} : vector<8x2xf32>, vector<2x1xf32>, vector<8x1xf32> -> vector<8x1xf32>
    %102 = arith.negf %101 : vector<8x1xf32>
    %103 = math.exp %102 : vector<8x1xf32>
    %cst_73 = arith.constant 1.000000e+00 : f32
    %104 = vector.broadcast %cst_73 : f32 to vector<8x1xf32>
    %105 = arith.addf %104, %103 : vector<8x1xf32>
    %106 = arith.divf %104, %105 : vector<8x1xf32>
    %cst_74 = arith.constant dense<0.000000e+00> : vector<8x1xf32>
    %107 = tpu.matmul %8, %100, %cst_74 {dimension_numbers = #tpu.dot_dimension_numbers<[1], [0], [0], [1], [0, 0, 1, 1], [], []>} : vector<8x2xf32>, vector<2x1xf32>, vector<8x1xf32> -> vector<8x1xf32>
    %108 = arith.negf %107 : vector<8x1xf32>
    %109 = math.exp %108 : vector<8x1xf32>
    %cst_75 = arith.constant 1.000000e+00 : f32
    %110 = vector.broadcast %cst_75 : f32 to vector<8x1xf32>
    %111 = arith.addf %110, %109 : vector<8x1xf32>
    %112 = arith.divf %110, %111 : vector<8x1xf32>
    %113 = vector.broadcast %106 : vector<8x1xf32> to vector<8x64xf32>
    %114 = arith.mulf %76, %113 : vector<8x64xf32>
    %115 = vector.broadcast %112 : vector<8x1xf32> to vector<8x128xf32>
    %116 = arith.mulf %78, %115 : vector<8x128xf32>
    %117 = arith.truncf %114 : vector<8x64xf32> to vector<8x64xbf16>
    %cst_76 = arith.constant dense<0.000000e+00> : vector<8x64xf32>
    %118 = tpu.matmul %10, %117, %cst_76 {dimension_numbers = #tpu.dot_dimension_numbers<[1], [0], [0], [1], [0, 0, 1, 1], [], []>} : vector<8x8xbf16>, vector<8x64xbf16>, vector<8x64xf32> -> vector<8x64xf32>
    %119 = arith.truncf %116 : vector<8x128xf32> to vector<8x128xbf16>
    %cst_77 = arith.constant dense<0.000000e+00> : vector<8x128xf32>
    %120 = tpu.matmul %12, %119, %cst_77 {dimension_numbers = #tpu.dot_dimension_numbers<[1], [0], [0], [1], [0, 0, 1, 1], [], []>} : vector<8x8xbf16>, vector<8x128xbf16>, vector<8x128xf32> -> vector<8x128xf32>
    %121 = arith.truncf %76 : vector<8x64xf32> to vector<8x64xbf16>
    %cst_78 = arith.constant dense<0.000000e+00> : vector<8x128xf32>
    %122 = tpu.matmul %121, %0, %cst_78 {dimension_numbers = #tpu.dot_dimension_numbers<[1], [0], [0], [1], [0, 0, 1, 1], [], []>} : vector<8x64xbf16>, vector<64x128xbf16>, vector<8x128xf32> -> vector<8x128xf32>
    %123 = arith.truncf %118 : vector<8x64xf32> to vector<8x64xbf16>
    %cst_79 = arith.constant dense<0.000000e+00> : vector<8x128xf32>
    %124 = tpu.matmul %123, %0, %cst_79 {dimension_numbers = #tpu.dot_dimension_numbers<[1], [0], [0], [1], [0, 0, 1, 1], [], []>} : vector<8x64xbf16>, vector<64x128xbf16>, vector<8x128xf32> -> vector<8x128xf32>
    %cst_80 = arith.constant dense<0.000000e+00> : vector<64xf32>
    %125 = vector.multi_reduction <add>, %114, %cst_80 [0] : vector<8x64xf32> to vector<64xf32>
    %126 = vector.shape_cast %125 : vector<64xf32> to vector<1x64xf32>
    %cst_81 = arith.constant dense<0xFF800000> : vector<64xf32>
    %127 = vector.multi_reduction <maximumf>, %114, %cst_81 [0] : vector<8x64xf32> to vector<64xf32>
    %128 = vector.shape_cast %127 : vector<64xf32> to vector<1x64xf32>
    %129 = tpu.concatenate %126, %128 in 0 : vector<1x64xf32>, vector<1x64xf32> -> vector<2x64xf32>
    %130 = arith.truncf %129 : vector<2x64xf32> to vector<2x64xbf16>
    %cst_82 = arith.constant dense<0.000000e+00> : vector<2x128xf32>
    %131 = tpu.matmul %130, %0, %cst_82 {dimension_numbers = #tpu.dot_dimension_numbers<[1], [0], [0], [1], [0, 0, 1, 1], [], []>} : vector<2x64xbf16>, vector<64x128xbf16>, vector<2x128xf32> -> vector<2x128xf32>
    %132 = vector.extract_strided_slice %131 {offsets = [0, 0], sizes = [1, 128], strides = [1, 1]} : vector<2x128xf32> to vector<1x128xf32>
    %cst_83 = arith.constant dense<0.000000e+00> : vector<128xf32>
    %133 = vector.multi_reduction <add>, %116, %cst_83 [0] : vector<8x128xf32> to vector<128xf32>
    %134 = vector.shape_cast %133 : vector<128xf32> to vector<1x128xf32>
    %135 = arith.addf %132, %134 : vector<1x128xf32>
    %cst_84 = arith.constant 6.250000e-02 : f32
    %136 = vector.broadcast %cst_84 : f32 to vector<1x128xf32>
    %137 = arith.mulf %135, %136 : vector<1x128xf32>
    %138 = vector.extract_strided_slice %131 {offsets = [1, 0], sizes = [1, 128], strides = [1, 1]} : vector<2x128xf32> to vector<1x128xf32>
    %cst_85 = arith.constant dense<0xFF800000> : vector<128xf32>
    %139 = vector.multi_reduction <maximumf>, %116, %cst_85 [0] : vector<8x128xf32> to vector<128xf32>
    %140 = vector.shape_cast %139 : vector<128xf32> to vector<1x128xf32>
    %141 = arith.maximumf %138, %140 : vector<1x128xf32>
    %142 = vector.extract_strided_slice %137 {offsets = [0, 0], sizes = [1, 127], strides = [1, 1]} : vector<1x128xf32> to vector<1x127xf32>
    %143 = tpu.concatenate %21, %142 in 1 : vector<1x1xf32>, vector<1x127xf32> -> vector<1x128xf32>
    %144 = vector.extract_strided_slice %137 {offsets = [0, 1], sizes = [1, 127], strides = [1, 1]} : vector<1x128xf32> to vector<1x127xf32>
    %145 = tpu.concatenate %144, %21 in 1 : vector<1x127xf32>, vector<1x1xf32> -> vector<1x128xf32>
    %146 = arith.index_cast %arg0 : i32 to index
    %c0_86 = arith.constant 0 : index
    %147 = memref.load %arg3[%146, %c0_86] : memref<8x6xf32, #tpu.memory_space<smem>>
    %148 = vector.broadcast %147 : f32 to vector<1x128xf32>
    %149 = arith.mulf %148, %143 : vector<1x128xf32>
    %150 = arith.index_cast %arg0 : i32 to index
    %c1_87 = arith.constant 1 : index
    %151 = memref.load %arg3[%150, %c1_87] : memref<8x6xf32, #tpu.memory_space<smem>>
    %152 = vector.broadcast %151 : f32 to vector<1x128xf32>
    %153 = arith.mulf %152, %137 : vector<1x128xf32>
    %154 = arith.addf %149, %153 : vector<1x128xf32>
    %155 = arith.index_cast %arg0 : i32 to index
    %c2_88 = arith.constant 2 : index
    %156 = memref.load %arg3[%155, %c2_88] : memref<8x6xf32, #tpu.memory_space<smem>>
    %157 = vector.broadcast %156 : f32 to vector<1x128xf32>
    %158 = arith.mulf %157, %145 : vector<1x128xf32>
    %159 = arith.addf %154, %158 : vector<1x128xf32>
    %160 = vector.extract_strided_slice %141 {offsets = [0, 0], sizes = [1, 127], strides = [1, 1]} : vector<1x128xf32> to vector<1x127xf32>
    %161 = tpu.concatenate %21, %160 in 1 : vector<1x1xf32>, vector<1x127xf32> -> vector<1x128xf32>
    %162 = vector.extract_strided_slice %141 {offsets = [0, 1], sizes = [1, 127], strides = [1, 1]} : vector<1x128xf32> to vector<1x127xf32>
    %163 = tpu.concatenate %162, %21 in 1 : vector<1x127xf32>, vector<1x1xf32> -> vector<1x128xf32>
    %164 = arith.index_cast %arg0 : i32 to index
    %c3_89 = arith.constant 3 : index
    %165 = memref.load %arg3[%164, %c3_89] : memref<8x6xf32, #tpu.memory_space<smem>>
    %166 = vector.broadcast %165 : f32 to vector<1x128xf32>
    %167 = arith.mulf %166, %161 : vector<1x128xf32>
    %168 = arith.index_cast %arg0 : i32 to index
    %c4_90 = arith.constant 4 : index
    %169 = memref.load %arg3[%168, %c4_90] : memref<8x6xf32, #tpu.memory_space<smem>>
    %170 = vector.broadcast %169 : f32 to vector<1x128xf32>
    %171 = arith.mulf %170, %141 : vector<1x128xf32>
    %172 = arith.addf %167, %171 : vector<1x128xf32>
    %173 = arith.index_cast %arg0 : i32 to index
    %c5_91 = arith.constant 5 : index
    %174 = memref.load %arg3[%173, %c5_91] : memref<8x6xf32, #tpu.memory_space<smem>>
    %175 = vector.broadcast %174 : f32 to vector<1x128xf32>
    %176 = arith.mulf %175, %163 : vector<1x128xf32>
    %177 = arith.addf %172, %176 : vector<1x128xf32>
    %178 = arith.addf %159, %177 : vector<1x128xf32>
    %179 = arith.negf %178 : vector<1x128xf32>
    %180 = math.exp %179 : vector<1x128xf32>
    %cst_92 = arith.constant 1.000000e+00 : f32
    %181 = vector.broadcast %cst_92 : f32 to vector<1x128xf32>
    %182 = arith.addf %181, %180 : vector<1x128xf32>
    %183 = arith.divf %181, %182 : vector<1x128xf32>
    %184 = arith.addf %124, %120 : vector<8x128xf32>
    %185 = vector.broadcast %183 : vector<1x128xf32> to vector<8x128xf32>
    %186 = arith.mulf %184, %185 : vector<8x128xf32>
    %187 = vector.broadcast %14 : vector<8x1xf32> to vector<8x128xf32>
    %188 = arith.addf %186, %187 : vector<8x128xf32>
    %cst_93 = arith.constant dense<0.000000e+00> : vector<8xf32>
    %189 = vector.multi_reduction <add>, %188, %cst_93 [1] : vector<8x128xf32> to vector<8xf32>
    %190 = vector.shape_cast %189 : vector<8xf32> to vector<8x1xf32>
    %cst_94 = arith.constant 1.280000e+02 : f32
    %191 = vector.broadcast %cst_94 : f32 to vector<8x1xf32>
    %192 = arith.divf %190, %191 : vector<8x1xf32>
    %cst_95 = arith.constant dense<0.000000e+00> : vector<1xf32>
    %193 = vector.multi_reduction <add>, %192, %cst_95 [0] : vector<8x1xf32> to vector<1xf32>
    %194 = vector.shape_cast %193 : vector<1xf32> to vector<1x1xf32>
    %cst_96 = arith.constant 8.000000e+00 : f32
    %195 = vector.broadcast %cst_96 : f32 to vector<1x1xf32>
    %196 = arith.divf %194, %195 : vector<1x1xf32>
    %197 = vector.broadcast %196 : vector<1x1xf32> to vector<8x128xf32>
    %198 = arith.subf %188, %197 : vector<8x128xf32>
    %199 = arith.mulf %198, %198 : vector<8x128xf32>
    %cst_97 = arith.constant dense<0.000000e+00> : vector<8xf32>
    %200 = vector.multi_reduction <add>, %199, %cst_97 [1] : vector<8x128xf32> to vector<8xf32>
    %201 = vector.shape_cast %200 : vector<8xf32> to vector<8x1xf32>
    %cst_98 = arith.constant 1.280000e+02 : f32
    %202 = vector.broadcast %cst_98 : f32 to vector<8x1xf32>
    %203 = arith.divf %201, %202 : vector<8x1xf32>
    %cst_99 = arith.constant dense<0.000000e+00> : vector<1xf32>
    %204 = vector.multi_reduction <add>, %203, %cst_99 [0] : vector<8x1xf32> to vector<1xf32>
    %205 = vector.shape_cast %204 : vector<1xf32> to vector<1x1xf32>
    %cst_100 = arith.constant 8.000000e+00 : f32
    %206 = vector.broadcast %cst_100 : f32 to vector<1x1xf32>
    %207 = arith.divf %205, %206 : vector<1x1xf32>
    %cst_101 = arith.constant 9.99999974E-6 : f32
    %208 = vector.broadcast %cst_101 : f32 to vector<1x1xf32>
    %209 = arith.addf %207, %208 : vector<1x1xf32>
    %210 = math.rsqrt %209 : vector<1x1xf32>
    %211 = vector.broadcast %210 : vector<1x1xf32> to vector<8x128xf32>
    %212 = arith.mulf %198, %211 : vector<8x128xf32>
    %213 = arith.mulf %212, %17 : vector<8x128xf32>
    %214 = arith.addf %213, %20 : vector<8x128xf32>
    %215 = arith.addf %214, %122 : vector<8x128xf32>
    %216 = arith.addf %215, %78 : vector<8x128xf32>
    %c0_102 = arith.constant 0 : index
    %c0_103 = arith.constant 0 : index
    %c0_104 = arith.constant 0 : index
    %c0_105 = arith.constant 0 : index
    %217 = vector.load %arg16[%c0_102, %c0_103, %c0_104, %c0_105] : memref<1x2x8x128xf32, #tpu.memory_space<vmem>>, vector<1x1x8x128xf32>
    %218 = vector.shape_cast %217 : vector<1x1x8x128xf32> to vector<8x128xf32>
    %219 = vector.shape_cast %216 : vector<8x128xf32> to vector<1x1x8x128xf32>
    tpu.vector_store %arg16[%c0_102, %c0_103, %c0_104, %c0_105], %219 {strides = array<i32>} : memref<1x2x8x128xf32, #tpu.memory_space<vmem>>, vector<1x1x8x128xf32>,
    %c2_i32_106 = arith.constant 2 : i32
    %220 = arith.muli %arg1, %c2_i32_106 : i32
    %c1_i32 = arith.constant 1 : i32
    %221 = arith.addi %220, %c1_i32 : i32
    %222 = arith.index_cast %arg0 : i32 to index
    %223 = arith.index_cast %221 : i32 to index
    %c0_107 = arith.constant 0 : index
    %224 = memref.load %arg2[%222, %223, %c0_107] : memref<8x2x6xf32, #tpu.memory_space<smem>>
    %c0_108 = arith.constant 0 : index
    %c1_109 = arith.constant 1 : index
    %c0_110 = arith.constant 0 : index
    %c0_111 = arith.constant 0 : index
    %c0_112 = arith.constant 0 : index
    %225 = vector.load %arg4[%c0_108, %c1_109, %c0_110, %c0_111, %c0_112] : memref<1x2x6x8x64xbf16, #tpu.memory_space<vmem>>, vector<1x1x1x8x64xbf16>
    %226 = vector.shape_cast %225 : vector<1x1x1x8x64xbf16> to vector<8x64xbf16>
    %227 = arith.extf %226 : vector<8x64xbf16> to vector<8x64xf32>
    %228 = vector.broadcast %224 : f32 to vector<8x64xf32>
    %229 = arith.mulf %228, %227 : vector<8x64xf32>
    %230 = arith.index_cast %arg0 : i32 to index
    %231 = arith.index_cast %221 : i32 to index
    %c1_113 = arith.constant 1 : index
    %232 = memref.load %arg2[%230, %231, %c1_113] : memref<8x2x6xf32, #tpu.memory_space<smem>>
    %c0_114 = arith.constant 0 : index
    %c1_115 = arith.constant 1 : index
    %c1_116 = arith.constant 1 : index
    %c0_117 = arith.constant 0 : index
    %c0_118 = arith.constant 0 : index
    %233 = vector.load %arg4[%c0_114, %c1_115, %c1_116, %c0_117, %c0_118] : memref<1x2x6x8x64xbf16, #tpu.memory_space<vmem>>, vector<1x1x1x8x64xbf16>
    %234 = vector.shape_cast %233 : vector<1x1x1x8x64xbf16> to vector<8x64xbf16>
    %235 = arith.extf %234 : vector<8x64xbf16> to vector<8x64xf32>
    %236 = vector.broadcast %232 : f32 to vector<8x64xf32>
    %237 = arith.mulf %236, %235 : vector<8x64xf32>
    %238 = arith.addf %229, %237 : vector<8x64xf32>
    %239 = arith.index_cast %arg0 : i32 to index
    %240 = arith.index_cast %221 : i32 to index
    %c2_119 = arith.constant 2 : index
    %241 = memref.load %arg2[%239, %240, %c2_119] : memref<8x2x6xf32, #tpu.memory_space<smem>>
    %c0_120 = arith.constant 0 : index
    %c1_121 = arith.constant 1 : index
    %c2_122 = arith.constant 2 : index
    %c0_123 = arith.constant 0 : index
    %c0_124 = arith.constant 0 : index
    %242 = vector.load %arg4[%c0_120, %c1_121, %c2_122, %c0_123, %c0_124] : memref<1x2x6x8x64xbf16, #tpu.memory_space<vmem>>, vector<1x1x1x8x64xbf16>
    %243 = vector.shape_cast %242 : vector<1x1x1x8x64xbf16> to vector<8x64xbf16>
    %244 = arith.extf %243 : vector<8x64xbf16> to vector<8x64xf32>
    %245 = vector.broadcast %241 : f32 to vector<8x64xf32>
    %246 = arith.mulf %245, %244 : vector<8x64xf32>
    %247 = arith.addf %238, %246 : vector<8x64xf32>
    %248 = arith.index_cast %arg0 : i32 to index
    %249 = arith.index_cast %221 : i32 to index
    %c3_125 = arith.constant 3 : index
    %250 = memref.load %arg2[%248, %249, %c3_125] : memref<8x2x6xf32, #tpu.memory_space<smem>>
    %c0_126 = arith.constant 0 : index
    %c1_127 = arith.constant 1 : index
    %c3_128 = arith.constant 3 : index
    %c0_129 = arith.constant 0 : index
    %c0_130 = arith.constant 0 : index
    %251 = vector.load %arg4[%c0_126, %c1_127, %c3_128, %c0_129, %c0_130] : memref<1x2x6x8x64xbf16, #tpu.memory_space<vmem>>, vector<1x1x1x8x64xbf16>
    %252 = vector.shape_cast %251 : vector<1x1x1x8x64xbf16> to vector<8x64xbf16>
    %253 = arith.extf %252 : vector<8x64xbf16> to vector<8x64xf32>
    %254 = vector.broadcast %250 : f32 to vector<8x64xf32>
    %255 = arith.mulf %254, %253 : vector<8x64xf32>
    %256 = arith.addf %247, %255 : vector<8x64xf32>
    %257 = arith.index_cast %arg0 : i32 to index
    %258 = arith.index_cast %221 : i32 to index
    %c4_131 = arith.constant 4 : index
    %259 = memref.load %arg2[%257, %258, %c4_131] : memref<8x2x6xf32, #tpu.memory_space<smem>>
    %c0_132 = arith.constant 0 : index
    %c1_133 = arith.constant 1 : index
    %c4_134 = arith.constant 4 : index
    %c0_135 = arith.constant 0 : index
    %c0_136 = arith.constant 0 : index
    %260 = vector.load %arg4[%c0_132, %c1_133, %c4_134, %c0_135, %c0_136] : memref<1x2x6x8x64xbf16, #tpu.memory_space<vmem>>, vector<1x1x1x8x64xbf16>
    %261 = vector.shape_cast %260 : vector<1x1x1x8x64xbf16> to vector<8x64xbf16>
    %262 = arith.extf %261 : vector<8x64xbf16> to vector<8x64xf32>
    %263 = vector.broadcast %259 : f32 to vector<8x64xf32>
    %264 = arith.mulf %263, %262 : vector<8x64xf32>
    %265 = arith.addf %256, %264 : vector<8x64xf32>
    %266 = arith.index_cast %arg0 : i32 to index
    %267 = arith.index_cast %221 : i32 to index
    %c5_137 = arith.constant 5 : index
    %268 = memref.load %arg2[%266, %267, %c5_137] : memref<8x2x6xf32, #tpu.memory_space<smem>>
    %c0_138 = arith.constant 0 : index
    %c1_139 = arith.constant 1 : index
    %c5_140 = arith.constant 5 : index
    %c0_141 = arith.constant 0 : index
    %c0_142 = arith.constant 0 : index
    %269 = vector.load %arg4[%c0_138, %c1_139, %c5_140, %c0_141, %c0_142] : memref<1x2x6x8x64xbf16, #tpu.memory_space<vmem>>, vector<1x1x1x8x64xbf16>
    %270 = vector.shape_cast %269 : vector<1x1x1x8x64xbf16> to vector<8x64xbf16>
    %271 = arith.extf %270 : vector<8x64xbf16> to vector<8x64xf32>
    %272 = vector.broadcast %268 : f32 to vector<8x64xf32>
    %273 = arith.mulf %272, %271 : vector<8x64xf32>
    %274 = arith.addf %265, %273 : vector<8x64xf32>
    %c0_143 = arith.constant 0 : index
    %c1_144 = arith.constant 1 : index
    %c0_145 = arith.constant 0 : index
    %c0_146 = arith.constant 0 : index
    %275 = vector.load %arg5[%c0_143, %c1_144, %c0_145, %c0_146] : memref<1x2x8x128xf32, #tpu.memory_space<vmem>>, vector<1x1x8x128xf32>
    %276 = vector.shape_cast %275 : vector<1x1x8x128xf32> to vector<8x128xf32>
    %cst_147 = arith.constant dense<0.000000e+00> : vector<8xf32>
    %277 = vector.multi_reduction <add>, %274, %cst_147 [1] : vector<8x64xf32> to vector<8xf32>
    %278 = vector.shape_cast %277 : vector<8xf32> to vector<8x1xf32>
    %cst_148 = arith.constant 6.400000e+01 : f32
    %279 = vector.broadcast %cst_148 : f32 to vector<8x1xf32>
    %280 = arith.divf %278, %279 : vector<8x1xf32>
    %cst_149 = arith.constant dense<0xFF800000> : vector<8xf32>
    %281 = vector.multi_reduction <maximumf>, %274, %cst_149 [1] : vector<8x64xf32> to vector<8xf32>
    %282 = vector.shape_cast %281 : vector<8xf32> to vector<8x1xf32>
    %283 = tpu.concatenate %280, %282 in 1 : vector<8x1xf32>, vector<8x1xf32> -> vector<8x2xf32>
    %cst_150 = arith.constant dense<0.000000e+00> : vector<8xf32>
    %284 = vector.multi_reduction <add>, %276, %cst_150 [1] : vector<8x128xf32> to vector<8xf32>
    %285 = vector.shape_cast %284 : vector<8xf32> to vector<8x1xf32>
    %cst_151 = arith.constant 1.280000e+02 : f32
    %286 = vector.broadcast %cst_151 : f32 to vector<8x1xf32>
    %287 = arith.divf %285, %286 : vector<8x1xf32>
    %cst_152 = arith.constant dense<0xFF800000> : vector<8xf32>
    %288 = vector.multi_reduction <maximumf>, %276, %cst_152 [1] : vector<8x128xf32> to vector<8xf32>
    %289 = vector.shape_cast %288 : vector<8xf32> to vector<8x1xf32>
    %290 = tpu.concatenate %287, %289 in 1 : vector<8x1xf32>, vector<8x1xf32> -> vector<8x2xf32>
    %cst_153 = arith.constant dense<0.000000e+00> : vector<2x2xf32>
    %291 = tpu.matmul %2, %283, %cst_153 {dimension_numbers = #tpu.dot_dimension_numbers<[1], [0], [0], [1], [0, 0, 1, 1], [], []>} : vector<2x8xf32>, vector<8x2xf32>, vector<2x2xf32> -> vector<2x2xf32>
    %cst_154 = arith.constant dense<0.000000e+00> : vector<2x2xf32>
    %292 = tpu.matmul %4, %290, %cst_154 {dimension_numbers = #tpu.dot_dimension_numbers<[1], [0], [0], [1], [0, 0, 1, 1], [], []>} : vector<2x8xf32>, vector<8x2xf32>, vector<2x2xf32> -> vector<2x2xf32>
    %293 = arith.addf %291, %292 : vector<2x2xf32>
    %cst_155 = arith.constant 0.000000e+00 : f32
    %294 = vector.broadcast %cst_155 : f32 to vector<2x2xf32>
    %295 = arith.maximumf %293, %294 : vector<2x2xf32>
    %296 = vector.extract_strided_slice %295 {offsets = [0, 0], sizes = [2, 1], strides = [1, 1]} : vector<2x2xf32> to vector<2x1xf32>
    %297 = vector.extract_strided_slice %295 {offsets = [0, 1], sizes = [2, 1], strides = [1, 1]} : vector<2x2xf32> to vector<2x1xf32>
    %298 = arith.addf %296, %297 : vector<2x1xf32>
    %cst_156 = arith.constant dense<0.000000e+00> : vector<8x1xf32>
    %299 = tpu.matmul %6, %298, %cst_156 {dimension_numbers = #tpu.dot_dimension_numbers<[1], [0], [0], [1], [0, 0, 1, 1], [], []>} : vector<8x2xf32>, vector<2x1xf32>, vector<8x1xf32> -> vector<8x1xf32>
    %300 = arith.negf %299 : vector<8x1xf32>
    %301 = math.exp %300 : vector<8x1xf32>
    %cst_157 = arith.constant 1.000000e+00 : f32
    %302 = vector.broadcast %cst_157 : f32 to vector<8x1xf32>
    %303 = arith.addf %302, %301 : vector<8x1xf32>
    %304 = arith.divf %302, %303 : vector<8x1xf32>
    %cst_158 = arith.constant dense<0.000000e+00> : vector<8x1xf32>
    %305 = tpu.matmul %8, %298, %cst_158 {dimension_numbers = #tpu.dot_dimension_numbers<[1], [0], [0], [1], [0, 0, 1, 1], [], []>} : vector<8x2xf32>, vector<2x1xf32>, vector<8x1xf32> -> vector<8x1xf32>
    %306 = arith.negf %305 : vector<8x1xf32>
    %307 = math.exp %306 : vector<8x1xf32>
    %cst_159 = arith.constant 1.000000e+00 : f32
    %308 = vector.broadcast %cst_159 : f32 to vector<8x1xf32>
    %309 = arith.addf %308, %307 : vector<8x1xf32>
    %310 = arith.divf %308, %309 : vector<8x1xf32>
    %311 = vector.broadcast %304 : vector<8x1xf32> to vector<8x64xf32>
    %312 = arith.mulf %274, %311 : vector<8x64xf32>
    %313 = vector.broadcast %310 : vector<8x1xf32> to vector<8x128xf32>
    %314 = arith.mulf %276, %313 : vector<8x128xf32>
    %315 = arith.truncf %312 : vector<8x64xf32> to vector<8x64xbf16>
    %cst_160 = arith.constant dense<0.000000e+00> : vector<8x64xf32>
    %316 = tpu.matmul %10, %315, %cst_160 {dimension_numbers = #tpu.dot_dimension_numbers<[1], [0], [0], [1], [0, 0, 1, 1], [], []>} : vector<8x8xbf16>, vector<8x64xbf16>, vector<8x64xf32> -> vector<8x64xf32>
    %317 = arith.truncf %314 : vector<8x128xf32> to vector<8x128xbf16>
    %cst_161 = arith.constant dense<0.000000e+00> : vector<8x128xf32>
    %318 = tpu.matmul %12, %317, %cst_161 {dimension_numbers = #tpu.dot_dimension_numbers<[1], [0], [0], [1], [0, 0, 1, 1], [], []>} : vector<8x8xbf16>, vector<8x128xbf16>, vector<8x128xf32> -> vector<8x128xf32>
    %319 = arith.truncf %274 : vector<8x64xf32> to vector<8x64xbf16>
    %cst_162 = arith.constant dense<0.000000e+00> : vector<8x128xf32>
    %320 = tpu.matmul %319, %0, %cst_162 {dimension_numbers = #tpu.dot_dimension_numbers<[1], [0], [0], [1], [0, 0, 1, 1], [], []>} : vector<8x64xbf16>, vector<64x128xbf16>, vector<8x128xf32> -> vector<8x128xf32>
    %321 = arith.truncf %316 : vector<8x64xf32> to vector<8x64xbf16>
    %cst_163 = arith.constant dense<0.000000e+00> : vector<8x128xf32>
    %322 = tpu.matmul %321, %0, %cst_163 {dimension_numbers = #tpu.dot_dimension_numbers<[1], [0], [0], [1], [0, 0, 1, 1], [], []>} : vector<8x64xbf16>, vector<64x128xbf16>, vector<8x128xf32> -> vector<8x128xf32>
    %cst_164 = arith.constant dense<0.000000e+00> : vector<64xf32>
    %323 = vector.multi_reduction <add>, %312, %cst_164 [0] : vector<8x64xf32> to vector<64xf32>
    %324 = vector.shape_cast %323 : vector<64xf32> to vector<1x64xf32>
    %cst_165 = arith.constant dense<0xFF800000> : vector<64xf32>
    %325 = vector.multi_reduction <maximumf>, %312, %cst_165 [0] : vector<8x64xf32> to vector<64xf32>
    %326 = vector.shape_cast %325 : vector<64xf32> to vector<1x64xf32>
    %327 = tpu.concatenate %324, %326 in 0 : vector<1x64xf32>, vector<1x64xf32> -> vector<2x64xf32>
    %328 = arith.truncf %327 : vector<2x64xf32> to vector<2x64xbf16>
    %cst_166 = arith.constant dense<0.000000e+00> : vector<2x128xf32>
    %329 = tpu.matmul %328, %0, %cst_166 {dimension_numbers = #tpu.dot_dimension_numbers<[1], [0], [0], [1], [0, 0, 1, 1], [], []>} : vector<2x64xbf16>, vector<64x128xbf16>, vector<2x128xf32> -> vector<2x128xf32>
    %330 = vector.extract_strided_slice %329 {offsets = [0, 0], sizes = [1, 128], strides = [1, 1]} : vector<2x128xf32> to vector<1x128xf32>
    %cst_167 = arith.constant dense<0.000000e+00> : vector<128xf32>
    %331 = vector.multi_reduction <add>, %314, %cst_167 [0] : vector<8x128xf32> to vector<128xf32>
    %332 = vector.shape_cast %331 : vector<128xf32> to vector<1x128xf32>
    %333 = arith.addf %330, %332 : vector<1x128xf32>
    %cst_168 = arith.constant 6.250000e-02 : f32
    %334 = vector.broadcast %cst_168 : f32 to vector<1x128xf32>
    %335 = arith.mulf %333, %334 : vector<1x128xf32>
    %336 = vector.extract_strided_slice %329 {offsets = [1, 0], sizes = [1, 128], strides = [1, 1]} : vector<2x128xf32> to vector<1x128xf32>
    %cst_169 = arith.constant dense<0xFF800000> : vector<128xf32>
    %337 = vector.multi_reduction <maximumf>, %314, %cst_169 [0] : vector<8x128xf32> to vector<128xf32>
    %338 = vector.shape_cast %337 : vector<128xf32> to vector<1x128xf32>
    %339 = arith.maximumf %336, %338 : vector<1x128xf32>
    %340 = vector.extract_strided_slice %335 {offsets = [0, 0], sizes = [1, 127], strides = [1, 1]} : vector<1x128xf32> to vector<1x127xf32>
    %341 = tpu.concatenate %21, %340 in 1 : vector<1x1xf32>, vector<1x127xf32> -> vector<1x128xf32>
    %342 = vector.extract_strided_slice %335 {offsets = [0, 1], sizes = [1, 127], strides = [1, 1]} : vector<1x128xf32> to vector<1x127xf32>
    %343 = tpu.concatenate %342, %21 in 1 : vector<1x127xf32>, vector<1x1xf32> -> vector<1x128xf32>
    %344 = arith.index_cast %arg0 : i32 to index
    %c0_170 = arith.constant 0 : index
    %345 = memref.load %arg3[%344, %c0_170] : memref<8x6xf32, #tpu.memory_space<smem>>
    %346 = vector.broadcast %345 : f32 to vector<1x128xf32>
    %347 = arith.mulf %346, %341 : vector<1x128xf32>
    %348 = arith.index_cast %arg0 : i32 to index
    %c1_171 = arith.constant 1 : index
    %349 = memref.load %arg3[%348, %c1_171] : memref<8x6xf32, #tpu.memory_space<smem>>
    %350 = vector.broadcast %349 : f32 to vector<1x128xf32>
    %351 = arith.mulf %350, %335 : vector<1x128xf32>
    %352 = arith.addf %347, %351 : vector<1x128xf32>
    %353 = arith.index_cast %arg0 : i32 to index
    %c2_172 = arith.constant 2 : index
    %354 = memref.load %arg3[%353, %c2_172] : memref<8x6xf32, #tpu.memory_space<smem>>
    %355 = vector.broadcast %354 : f32 to vector<1x128xf32>
    %356 = arith.mulf %355, %343 : vector<1x128xf32>
    %357 = arith.addf %352, %356 : vector<1x128xf32>
    %358 = vector.extract_strided_slice %339 {offsets = [0, 0], sizes = [1, 127], strides = [1, 1]} : vector<1x128xf32> to vector<1x127xf32>
    %359 = tpu.concatenate %21, %358 in 1 : vector<1x1xf32>, vector<1x127xf32> -> vector<1x128xf32>
    %360 = vector.extract_strided_slice %339 {offsets = [0, 1], sizes = [1, 127], strides = [1, 1]} : vector<1x128xf32> to vector<1x127xf32>
    %361 = tpu.concatenate %360, %21 in 1 : vector<1x127xf32>, vector<1x1xf32> -> vector<1x128xf32>
    %362 = arith.index_cast %arg0 : i32 to index
    %c3_173 = arith.constant 3 : index
    %363 = memref.load %arg3[%362, %c3_173] : memref<8x6xf32, #tpu.memory_space<smem>>
    %364 = vector.broadcast %363 : f32 to vector<1x128xf32>
    %365 = arith.mulf %364, %359 : vector<1x128xf32>
    %366 = arith.index_cast %arg0 : i32 to index
    %c4_174 = arith.constant 4 : index
    %367 = memref.load %arg3[%366, %c4_174] : memref<8x6xf32, #tpu.memory_space<smem>>
    %368 = vector.broadcast %367 : f32 to vector<1x128xf32>
    %369 = arith.mulf %368, %339 : vector<1x128xf32>
    %370 = arith.addf %365, %369 : vector<1x128xf32>
    %371 = arith.index_cast %arg0 : i32 to index
    %c5_175 = arith.constant 5 : index
    %372 = memref.load %arg3[%371, %c5_175] : memref<8x6xf32, #tpu.memory_space<smem>>
    %373 = vector.broadcast %372 : f32 to vector<1x128xf32>
    %374 = arith.mulf %373, %361 : vector<1x128xf32>
    %375 = arith.addf %370, %374 : vector<1x128xf32>
    %376 = arith.addf %357, %375 : vector<1x128xf32>
    %377 = arith.negf %376 : vector<1x128xf32>
    %378 = math.exp %377 : vector<1x128xf32>
    %cst_176 = arith.constant 1.000000e+00 : f32
    %379 = vector.broadcast %cst_176 : f32 to vector<1x128xf32>
    %380 = arith.addf %379, %378 : vector<1x128xf32>
    %381 = arith.divf %379, %380 : vector<1x128xf32>
    %382 = arith.addf %322, %318 : vector<8x128xf32>
    %383 = vector.broadcast %381 : vector<1x128xf32> to vector<8x128xf32>
    %384 = arith.mulf %382, %383 : vector<8x128xf32>
    %385 = vector.broadcast %14 : vector<8x1xf32> to vector<8x128xf32>
    %386 = arith.addf %384, %385 : vector<8x128xf32>
    %cst_177 = arith.constant dense<0.000000e+00> : vector<8xf32>
    %387 = vector.multi_reduction <add>, %386, %cst_177 [1] : vector<8x128xf32> to vector<8xf32>
    %388 = vector.shape_cast %387 : vector<8xf32> to vector<8x1xf32>
    %cst_178 = arith.constant 1.280000e+02 : f32
    %389 = vector.broadcast %cst_178 : f32 to vector<8x1xf32>
    %390 = arith.divf %388, %389 : vector<8x1xf32>
    %cst_179 = arith.constant dense<0.000000e+00> : vector<1xf32>
    %391 = vector.multi_reduction <add>, %390, %cst_179 [0] : vector<8x1xf32> to vector<1xf32>
    %392 = vector.shape_cast %391 : vector<1xf32> to vector<1x1xf32>
    %cst_180 = arith.constant 8.000000e+00 : f32
    %393 = vector.broadcast %cst_180 : f32 to vector<1x1xf32>
    %394 = arith.divf %392, %393 : vector<1x1xf32>
    %395 = vector.broadcast %394 : vector<1x1xf32> to vector<8x128xf32>
    %396 = arith.subf %386, %395 : vector<8x128xf32>
    %397 = arith.mulf %396, %396 : vector<8x128xf32>
    %cst_181 = arith.constant dense<0.000000e+00> : vector<8xf32>
    %398 = vector.multi_reduction <add>, %397, %cst_181 [1] : vector<8x128xf32> to vector<8xf32>
    %399 = vector.shape_cast %398 : vector<8xf32> to vector<8x1xf32>
    %cst_182 = arith.constant 1.280000e+02 : f32
    %400 = vector.broadcast %cst_182 : f32 to vector<8x1xf32>
    %401 = arith.divf %399, %400 : vector<8x1xf32>
    %cst_183 = arith.constant dense<0.000000e+00> : vector<1xf32>
    %402 = vector.multi_reduction <add>, %401, %cst_183 [0] : vector<8x1xf32> to vector<1xf32>
    %403 = vector.shape_cast %402 : vector<1xf32> to vector<1x1xf32>
    %cst_184 = arith.constant 8.000000e+00 : f32
    %404 = vector.broadcast %cst_184 : f32 to vector<1x1xf32>
    %405 = arith.divf %403, %404 : vector<1x1xf32>
    %cst_185 = arith.constant 9.99999974E-6 : f32
    %406 = vector.broadcast %cst_185 : f32 to vector<1x1xf32>
    %407 = arith.addf %405, %406 : vector<1x1xf32>
    %408 = math.rsqrt %407 : vector<1x1xf32>
    %409 = vector.broadcast %408 : vector<1x1xf32> to vector<8x128xf32>
    %410 = arith.mulf %396, %409 : vector<8x128xf32>
    %411 = arith.mulf %410, %17 : vector<8x128xf32>
    %412 = arith.addf %411, %20 : vector<8x128xf32>
    %413 = arith.addf %412, %320 : vector<8x128xf32>
    %414 = arith.addf %413, %276 : vector<8x128xf32>
    %c0_186 = arith.constant 0 : index
    %c1_187 = arith.constant 1 : index
    %c0_188 = arith.constant 0 : index
    %c0_189 = arith.constant 0 : index
    %415 = vector.load %arg16[%c0_186, %c1_187, %c0_188, %c0_189] : memref<1x2x8x128xf32, #tpu.memory_space<vmem>>, vector<1x1x8x128xf32>
    %416 = vector.shape_cast %415 : vector<1x1x8x128xf32> to vector<8x128xf32>
    %417 = vector.shape_cast %414 : vector<8x128xf32> to vector<1x1x8x128xf32>
    tpu.vector_store %arg16[%c0_186, %c1_187, %c0_188, %c0_189], %417 {strides = array<i32>} : memref<1x2x8x128xf32, #tpu.memory_space<vmem>>, vector<1x1x8x128xf32>,
    return
  }
  func.func @transform_0(%arg0: i32, %arg1: i32, %arg2: memref<8x2x6xf32, #tpu.memory_space<smem>>, %arg3: memref<8x6xf32, #tpu.memory_space<smem>>) -> (i32, i32, i32, i32, i32) {
    %c0_i32 = arith.constant 0 : i32
    %c0_i32_0 = arith.constant 0 : i32
    %c0_i32_1 = arith.constant 0 : i32
    %c0_i32_2 = arith.constant 0 : i32
    return %arg0, %arg1, %c0_i32, %c0_i32_0, %c0_i32_1 : i32, i32, i32, i32, i32
  }
  func.func @transform_1(%arg0: i32, %arg1: i32, %arg2: memref<8x2x6xf32, #tpu.memory_space<smem>>, %arg3: memref<8x6xf32, #tpu.memory_space<smem>>) -> (i32, i32, i32, i32) {
    %c0_i32 = arith.constant 0 : i32
    %c0_i32_0 = arith.constant 0 : i32
    %c0_i32_1 = arith.constant 0 : i32
    return %arg0, %arg1, %c0_i32, %c0_i32_0 : i32, i32, i32, i32
  }
  func.func @transform_2(%arg0: i32, %arg1: i32, %arg2: memref<8x2x6xf32, #tpu.memory_space<smem>>, %arg3: memref<8x6xf32, #tpu.memory_space<smem>>) -> (i32, i32) {
    %c0_i32 = arith.constant 0 : i32
    %c0_i32_0 = arith.constant 0 : i32
    %c0_i32_1 = arith.constant 0 : i32
    return %c0_i32, %c0_i32_0 : i32, i32
  }
  func.func @transform_3(%arg0: i32, %arg1: i32, %arg2: memref<8x2x6xf32, #tpu.memory_space<smem>>, %arg3: memref<8x6xf32, #tpu.memory_space<smem>>) -> (i32, i32, i32) {
    %c0_i32 = arith.constant 0 : i32
    %c0_i32_0 = arith.constant 0 : i32
    %c0_i32_1 = arith.constant 0 : i32
    return %arg0, %c0_i32, %c0_i32_0 : i32, i32, i32
  }
  func.func @transform_4(%arg0: i32, %arg1: i32, %arg2: memref<8x2x6xf32, #tpu.memory_space<smem>>, %arg3: memref<8x6xf32, #tpu.memory_space<smem>>) -> (i32, i32, i32) {
    %c0_i32 = arith.constant 0 : i32
    %c0_i32_0 = arith.constant 0 : i32
    %c0_i32_1 = arith.constant 0 : i32
    return %arg0, %c0_i32, %c0_i32_0 : i32, i32, i32
  }
  func.func @transform_5(%arg0: i32, %arg1: i32, %arg2: memref<8x2x6xf32, #tpu.memory_space<smem>>, %arg3: memref<8x6xf32, #tpu.memory_space<smem>>) -> (i32, i32, i32) {
    %c0_i32 = arith.constant 0 : i32
    %c0_i32_0 = arith.constant 0 : i32
    %c0_i32_1 = arith.constant 0 : i32
    return %arg0, %c0_i32, %c0_i32_0 : i32, i32, i32
  }
  func.func @transform_6(%arg0: i32, %arg1: i32, %arg2: memref<8x2x6xf32, #tpu.memory_space<smem>>, %arg3: memref<8x6xf32, #tpu.memory_space<smem>>) -> (i32, i32, i32) {
    %c0_i32 = arith.constant 0 : i32
    %c0_i32_0 = arith.constant 0 : i32
    %c0_i32_1 = arith.constant 0 : i32
    return %arg0, %c0_i32, %c0_i32_0 : i32, i32, i32
  }
  func.func @transform_7(%arg0: i32, %arg1: i32, %arg2: memref<8x2x6xf32, #tpu.memory_space<smem>>, %arg3: memref<8x6xf32, #tpu.memory_space<smem>>) -> (i32, i32, i32) {
    %c0_i32 = arith.constant 0 : i32
    %c0_i32_0 = arith.constant 0 : i32
    %c0_i32_1 = arith.constant 0 : i32
    return %arg0, %c0_i32, %c0_i32_0 : i32, i32, i32
  }
  func.func @transform_8(%arg0: i32, %arg1: i32, %arg2: memref<8x2x6xf32, #tpu.memory_space<smem>>, %arg3: memref<8x6xf32, #tpu.memory_space<smem>>) -> (i32, i32, i32) {
    %c0_i32 = arith.constant 0 : i32
    %c0_i32_0 = arith.constant 0 : i32
    %c0_i32_1 = arith.constant 0 : i32
    return %arg0, %c0_i32, %c0_i32_0 : i32, i32, i32
  }
  func.func @transform_9(%arg0: i32, %arg1: i32, %arg2: memref<8x2x6xf32, #tpu.memory_space<smem>>, %arg3: memref<8x6xf32, #tpu.memory_space<smem>>) -> (i32, i32, i32) {
    %c0_i32 = arith.constant 0 : i32
    %c0_i32_0 = arith.constant 0 : i32
    %c0_i32_1 = arith.constant 0 : i32
    return %arg0, %c0_i32, %c0_i32_0 : i32, i32, i32
  }
  func.func @transform_10(%arg0: i32, %arg1: i32, %arg2: memref<8x2x6xf32, #tpu.memory_space<smem>>, %arg3: memref<8x6xf32, #tpu.memory_space<smem>>) -> (i32, i32, i32) {
    %c0_i32 = arith.constant 0 : i32
    %c0_i32_0 = arith.constant 0 : i32
    %c0_i32_1 = arith.constant 0 : i32
    return %arg0, %c0_i32, %c0_i32_0 : i32, i32, i32
  }
  func.func @transform_11(%arg0: i32, %arg1: i32, %arg2: memref<8x2x6xf32, #tpu.memory_space<smem>>, %arg3: memref<8x6xf32, #tpu.memory_space<smem>>) -> (i32, i32, i32) {
    %c0_i32 = arith.constant 0 : i32
    %c0_i32_0 = arith.constant 0 : i32
    %c0_i32_1 = arith.constant 0 : i32
    return %arg0, %c0_i32, %c0_i32_0 : i32, i32, i32
  }
  func.func @transform_12(%arg0: i32, %arg1: i32, %arg2: memref<8x2x6xf32, #tpu.memory_space<smem>>, %arg3: memref<8x6xf32, #tpu.memory_space<smem>>) -> (i32, i32, i32, i32) {
    %c0_i32 = arith.constant 0 : i32
    %c0_i32_0 = arith.constant 0 : i32
    %c0_i32_1 = arith.constant 0 : i32
    return %arg0, %arg1, %c0_i32, %c0_i32_0 : i32, i32, i32, i32
  }
}

</mosaic_0001>

<llo_original>
// kernel: tpu_custom_call.1
$region0: #{tpu_custom_call.1}
  #allocation0 [shape = 'u32[]', space=smem, size = 0x4, offset = 0x4, fixed_abs, tag = 'smem constant byte address 0x4 - core index']
  #allocation1 [shape = 'u32[144,128]{1,0:T(1,128)}', space=vmem, size = 0x12000, scoped, tag = 'internal scratch']
  #allocation2 [shape = 's32[1]{0}', space=sflag, size = 0x4, scoped, tag = 'scoped memory for tpu_custom_call.1']
  #allocation3 [shape = 'u8[8192]{0}', space=smem, size = 0x2000, scoped, tag = 'prefetched SMEM operand 0']
  #allocation4 [shape = 'u8[4096]{0}', space=smem, size = 0x1000, scoped, tag = 'prefetched SMEM operand 1']
  %s0 = inlined_call_operand.vmem [shape: f32[8,2,6], index: 0, kind: input, shape index: {}]
  %s1 = inlined_call_operand.hbm [shape: f32[8,6], index: 1, kind: input, shape index: {}]
  %s2 = inlined_call_operand.hbm [shape: bf16[8,2,6,8,64], index: 2, kind: input, shape index: {}]
  %s3 = inlined_call_operand.vmem [shape: f32[8,2,8,128], index: 3, kind: input, shape index: {}]
  %s4 = inlined_call_operand.vmem [shape: bf16[64,128], index: 4, kind: input, shape index: {}]
  %s5 = inlined_call_operand.hbm [shape: f32[8,2,8], index: 5, kind: input, shape index: {}]
  %s6 = inlined_call_operand.hbm [shape: f32[8,2,8], index: 6, kind: input, shape index: {}]
  %s7 = inlined_call_operand.vmem [shape: f32[8,8,2], index: 7, kind: input, shape index: {}]
  %s8 = inlined_call_operand.vmem [shape: f32[8,8,2], index: 8, kind: input, shape index: {}]
  %s9 = inlined_call_operand.vmem [shape: bf16[8,8,8], index: 9, kind: input, shape index: {}]
  %s10 = inlined_call_operand.vmem [shape: bf16[8,8,8], index: 10, kind: input, shape index: {}]
  %s11 = inlined_call_operand.vmem [shape: f32[8,8,1], index: 11, kind: input, shape index: {}]
  %s12 = inlined_call_operand.vmem [shape: bf16[8,8,128], index: 12, kind: input, shape index: {}]
  %s13 = inlined_call_operand.hbm [shape: bf16[8,8,128], index: 13, kind: input, shape index: {}]
  %s14 = inlined_call_operand.hbm [shape: f32[8,2,8,128], index: 14, kind: output, shape index: {}]
  %s15 = sld [smem:[#allocation0]]
  $region97: #{tpu_custom_call.1} parent=0
    _
  %s17 = ssub.s32 1, %s15
  %s18 = scalar_select 0, %s17, %s15
  %s19 = sshll.u32 %s0, 4
  %s20 = int_to_ptr.vmem [resolvable:$true] %s19
  %22 = dma.vmem_to_smem %s20, 256, [#allocation3], [#allocation2]
  %24 = dma.hbm_to_smem %s1, 128, [#allocation4], [#allocation2]
  %25 = dma.done [#allocation2], 384
  %26 = sfence
  $region1: #{tpu_custom_call.1} parent=0
    #allocation5 [shape = 'u8[49152]{0}', space=vmem, size = 0xc000, scoped, tag = 'input window, operand 2']
    #allocation6 [shape = 's32[2]{0}', space=sflag, size = 0x8, scoped, tag = 'scoped memory for tpu_custom_call.1']
    #allocation7 [shape = 's32[2]{0}', space=sflag, size = 0x8, scoped, tag = 'scoped memory for tpu_custom_call.1']
    #allocation8 [shape = 'u8[2048]{0}', space=vmem, size = 0x800, scoped, tag = 'input window, operand 5']
    #allocation9 [shape = 's32[2]{0}', space=sflag, size = 0x8, scoped, tag = 'scoped memory for tpu_custom_call.1']
    #allocation10 [shape = 'u8[2048]{0}', space=vmem, size = 0x800, scoped, tag = 'input window, operand 6']
    #allocation11 [shape = 'u8[4096]{0}', space=vmem, size = 0x1000, scoped, tag = 'input window, operand 13']
    #allocation12 [shape = 's32[2]{0}', space=sflag, size = 0x8, scoped, tag = 'scoped memory for tpu_custom_call.1']
    #allocation13 [shape = 'u8[16384]{0}', space=vmem, size = 0x4000, scoped, tag = 'output window, operand 0']
    %27 = vsyncpa [#allocation6], 0
    %s28 = scalar_lea.sflag [#allocation6], 1
    %29 = vsyncpa %s28, 0
    %30 = vsyncpa [#allocation9], 0
    %s31 = scalar_lea.sflag [#allocation9], 1
    %32 = vsyncpa %s31, 0
    %33 = vsyncpa [#allocation12], 0
    %s34 = scalar_lea.sflag [#allocation12], 1
    %35 = vsyncpa %s34, 0
    %36 = vsyncpa [#allocation7], 0
    %s37 = scalar_lea.sflag [#allocation7], 1
    %38 = vsyncpa %s37, 0
    loop: start=0, step=1, limit=10
    $region2: #{tpu_custom_call.1} parent=1 // loop_pre_header
      _
    $region3: #{tpu_custom_call.1} parent=1 // loop_header
      %s40 = sphi 0, %s44
      %p41 = scmp.ge.s32.totalorder %s40, 10
      %s47 = sphi 0, %s59
      %s48 = sphi 0, %s55
      %s49 = sphi 0, %s47
      %s50 = sphi 0, %s48
      %s51 = sphi 0, %s49
      %s52 = sphi 0, %s50
      %s64 = sphi 0, %s66
      %s67 = sphi 0, %s64
      %s68 = sphi 0, %s67
      %s84 = sphi 0, %s68
      %s92 = sphi 0, %s94
      %s95 = sphi 0, %s92
      %s96 = sphi 0, %s95
      %s112 = sphi 0, %s96
      %s116 = sphi 0, %s116
      %s118 = sphi 0, %s116
      %s119 = sphi 0, %s118
      %s133 = sphi 0, %s119
      %s139 = sphi 0, %s141
      %s142 = sphi 0, %s139
      %s143 = sphi 0, %s142
      %s159 = sphi 0, %s143
      %s165 = sphi 0, %s167
      %s168 = sphi 0, %s165
      %s169 = sphi 0, %s168
      %s185 = sphi 0, %s169
      %s191 = sphi 0, %s193
      %s194 = sphi 0, %s191
      %s195 = sphi 0, %s194
      %s211 = sphi 0, %s195
      %s217 = sphi 0, %s219
      %s220 = sphi 0, %s217
      %s221 = sphi 0, %s220
      %s237 = sphi 0, %s221
      %s243 = sphi 0, %s245
      %s246 = sphi 0, %s243
      %s247 = sphi 0, %s246
      %s263 = sphi 0, %s247
      %s269 = sphi 0, %s271
      %s272 = sphi 0, %s269
      %s273 = sphi 0, %s272
      %s289 = sphi 0, %s273
      %s295 = sphi 0, %s297
      %s298 = sphi 0, %s295
      %s299 = sphi 0, %s298
      %s315 = sphi 0, %s299
      %s321 = sphi 0, %s323
      %s324 = sphi 0, %s321
      %s325 = sphi 0, %s324
      %s341 = sphi 0, %s325
      %s347 = sphi 0, %s349
      %s350 = sphi 0, %s347
      %s351 = sphi 0, %s350
      %s367 = sphi 0, %s351
      %s375 = sphi 0, %s377
      %s378 = sphi 0, %s375
      %s379 = sphi 0, %s378
      %s395 = sphi 0, %s379
    $region4: #{tpu_custom_call.1} parent=1 // loop_header_branch
      %43 = sbr.rel (%p41) target = $region8
    $region5: #{tpu_custom_call.1} parent=1 // loop_body
      %s45 = ssub.s32 %s40, 1
      %s46 = ssub.s32 %s40, 2
      %s53 = sadd.s32 1, %s48
      %p54 = scmp.ge.s32.totalorder %s53, 1
      %s55 = scalar_select %p54, 0, %s53
      %s56 = sadd.s32 1, %s47
      %s57 = scalar_select %p54, %s56, %s47
      %p58 = scmp.ge.s32.totalorder %s57, 8
      %s59 = scalar_select %p58, 0, %s57
      %s60 = ssub.s32 %s47, %s59
      %s61 = ssub.s32 %s48, %s55
      %s62 = sor.u32 %s60, %s61
      %p63 = scmp.eq.s32.totalorder %s62, 0
      %s65 = sadd.s32 %s64, 1
      %s66 = scalar_select %p63, %s64, %s65
      %p69 = pneg %p63
      %p70 = scmp.eq.s32.totalorder %s40, 7
      %p71 = por %p69, %p70
      %p72 = scmp.ne.s32.totalorder %s64, %s67
      %p73 = scmp.eq.s32.totalorder %s40, 0
      %p74 = por %p72, %p73
      %p75 = scmp.ne.s32.totalorder %s64, %s67
      %p76 = scmp.eq.s32.totalorder %s45, 7
      %p77 = por %p75, %p76
      %p78 = scmp.ne.s32.totalorder %s67, %s68
      %p79 = scmp.eq.s32.totalorder %s45, 0
      %p80 = por %p78, %p79
      %p81 = scmp.ne.s32.totalorder %s67, %s68
      %p82 = scmp.eq.s32.totalorder %s46, 7
      %p83 = por %p81, %p82
      %p85 = scmp.ne.s32.totalorder %s68, %s84
      %p86 = scmp.eq.s32.totalorder %s46, 0
      %p87 = por %p85, %p86
      %s88 = ssub.s32 %s47, %s59
      %s89 = ssub.s32 %s48, %s55
      %s90 = sor.u32 %s88, %s89
      %p91 = scmp.eq.s32.totalorder %s90, 0
      %s93 = sadd.s32 %s92, 1
      %s94 = scalar_select %p91, %s92, %s93
      %p97 = pneg %p91
      %p98 = scmp.eq.s32.totalorder %s40, 7
      %p99 = por %p97, %p98
      %p100 = scmp.ne.s32.totalorder %s92, %s95
      %p101 = scmp.eq.s32.totalorder %s40, 0
      %p102 = por %p100, %p101
      %p103 = scmp.ne.s32.totalorder %s92, %s95
      %p104 = scmp.eq.s32.totalorder %s45, 7
      %p105 = por %p103, %p104
      %p106 = scmp.ne.s32.totalorder %s95, %s96
      %p107 = scmp.eq.s32.totalorder %s45, 0
      %p108 = por %p106, %p107
      %p109 = scmp.ne.s32.totalorder %s95, %s96
      %p110 = scmp.eq.s32.totalorder %s46, 7
      %p111 = por %p109, %p110
      %p113 = scmp.ne.s32.totalorder %s96, %s112
      %p114 = scmp.eq.s32.totalorder %s46, 0
      %p115 = por %p113, %p114
      %s117 = sadd.s32 %s116, 1
      %p120 = scmp.eq.s32.totalorder %s40, 7
      %p121 = scmp.ne.s32.totalorder %s116, %s118
      %p122 = scmp.eq.s32.totalorder %s40, 0
      %p123 = por %p121, %p122
      %p124 = scmp.ne.s32.totalorder %s116, %s118
      %p125 = scmp.eq.s32.totalorder %s45, 7
      %p126 = por %p124, %p125
      %p127 = scmp.ne.s32.totalorder %s118, %s119
      %p128 = scmp.eq.s32.totalorder %s45, 0
      %p129 = por %p127, %p128
      %p130 = scmp.ne.s32.totalorder %s118, %s119
      %p131 = scmp.eq.s32.totalorder %s46, 7
      %p132 = por %p130, %p131
      %p134 = scmp.ne.s32.totalorder %s119, %s133
      %p135 = scmp.eq.s32.totalorder %s46, 0
      %p136 = por %p134, %p135
      %s137 = ssub.s32 %s47, %s59
      %p138 = scmp.eq.s32.totalorder %s137, 0
      %s140 = sadd.s32 %s139, 1
      %s141 = scalar_select %p138, %s139, %s140
      %p144 = pneg %p138
      %p145 = scmp.eq.s32.totalorder %s40, 7
      %p146 = por %p144, %p145
      %p147 = scmp.ne.s32.totalorder %s139, %s142
      %p148 = scmp.eq.s32.totalorder %s40, 0
      %p149 = por %p147, %p148
      %p150 = scmp.ne.s32.totalorder %s139, %s142
      %p151 = scmp.eq.s32.totalorder %s45, 7
      %p152 = por %p150, %p151
      %p153 = scmp.ne.s32.totalorder %s142, %s143
      %p154 = scmp.eq.s32.totalorder %s45, 0
      %p155 = por %p153, %p154
      %p156 = scmp.ne.s32.totalorder %s142, %s143
      %p157 = scmp.eq.s32.totalorder %s46, 7
      %p158 = por %p156, %p157
      %p160 = scmp.ne.s32.totalorder %s143, %s159
      %p161 = scmp.eq.s32.totalorder %s46, 0
      %p162 = por %p160, %p161
      %s163 = ssub.s32 %s47, %s59
      %p164 = scmp.eq.s32.totalorder %s163, 0
      %s166 = sadd.s32 %s165, 1
      %s167 = scalar_select %p164, %s165, %s166
      %p170 = pneg %p164
      %p171 = scmp.eq.s32.totalorder %s40, 7
      %p172 = por %p170, %p171
      %p173 = scmp.ne.s32.totalorder %s165, %s168
      %p174 = scmp.eq.s32.totalorder %s40, 0
      %p175 = por %p173, %p174
      %p176 = scmp.ne.s32.totalorder %s165, %s168
      %p177 = scmp.eq.s32.totalorder %s45, 7
      %p178 = por %p176, %p177
      %p179 = scmp.ne.s32.totalorder %s168, %s169
      %p180 = scmp.eq.s32.totalorder %s45, 0
      %p181 = por %p179, %p180
      %p182 = scmp.ne.s32.totalorder %s168, %s169
      %p183 = scmp.eq.s32.totalorder %s46, 7
      %p184 = por %p182, %p183
      %p186 = scmp.ne.s32.totalorder %s169, %s185
      %p187 = scmp.eq.s32.totalorder %s46, 0
      %p188 = por %p186, %p187
      %s189 = ssub.s32 %s47, %s59
      %p190 = scmp.eq.s32.totalorder %s189, 0
      %s192 = sadd.s32 %s191, 1
      %s193 = scalar_select %p190, %s191, %s192
      %p196 = pneg %p190
      %p197 = scmp.eq.s32.totalorder %s40, 7
      %p198 = por %p196, %p197
      %p199 = scmp.ne.s32.totalorder %s191, %s194
      %p200 = scmp.eq.s32.totalorder %s40, 0
      %p201 = por %p199, %p200
      %p202 = scmp.ne.s32.totalorder %s191, %s194
      %p203 = scmp.eq.s32.totalorder %s45, 7
      %p204 = por %p202, %p203
      %p205 = scmp.ne.s32.totalorder %s194, %s195
      %p206 = scmp.eq.s32.totalorder %s45, 0
      %p207 = por %p205, %p206
      %p208 = scmp.ne.s32.totalorder %s194, %s195
      %p209 = scmp.eq.s32.totalorder %s46, 7
      %p210 = por %p208, %p209
      %p212 = scmp.ne.s32.totalorder %s195, %s211
      %p213 = scmp.eq.s32.totalorder %s46, 0
      %p214 = por %p212, %p213
      %s215 = ssub.s32 %s47, %s59
      %p216 = scmp.eq.s32.totalorder %s215, 0
      %s218 = sadd.s32 %s217, 1
      %s219 = scalar_select %p216, %s217, %s218
      %p222 = pneg %p216
      %p223 = scmp.eq.s32.totalorder %s40, 7
      %p224 = por %p222, %p223
      %p225 = scmp.ne.s32.totalorder %s217, %s220
      %p226 = scmp.eq.s32.totalorder %s40, 0
      %p227 = por %p225, %p226
      %p228 = scmp.ne.s32.totalorder %s217, %s220
      %p229 = scmp.eq.s32.totalorder %s45, 7
      %p230 = por %p228, %p229
      %p231 = scmp.ne.s32.totalorder %s220, %s221
      %p232 = scmp.eq.s32.totalorder %s45, 0
      %p233 = por %p231, %p232
      %p234 = scmp.ne.s32.totalorder %s220, %s221
      %p235 = scmp.eq.s32.totalorder %s46, 7
      %p236 = por %p234, %p235
      %p238 = scmp.ne.s32.totalorder %s221, %s237
      %p239 = scmp.eq.s32.totalorder %s46, 0
      %p240 = por %p238, %p239
      %s241 = ssub.s32 %s47, %s59
      %p242 = scmp.eq.s32.totalorder %s241, 0
      %s244 = sadd.s32 %s243, 1
      %s245 = scalar_select %p242, %s243, %s244
      %p248 = pneg %p242
      %p249 = scmp.eq.s32.totalorder %s40, 7
      %p250 = por %p248, %p249
      %p251 = scmp.ne.s32.totalorder %s243, %s246
      %p252 = scmp.eq.s32.totalorder %s40, 0
      %p253 = por %p251, %p252
      %p254 = scmp.ne.s32.totalorder %s243, %s246
      %p255 = scmp.eq.s32.totalorder %s45, 7
      %p256 = por %p254, %p255
      %p257 = scmp.ne.s32.totalorder %s246, %s247
      %p258 = scmp.eq.s32.totalorder %s45, 0
      %p259 = por %p257, %p258
      %p260 = scmp.ne.s32.totalorder %s246, %s247
      %p261 = scmp.eq.s32.totalorder %s46, 7
      %p262 = por %p260, %p261
      %p264 = scmp.ne.s32.totalorder %s247, %s263
      %p265 = scmp.eq.s32.totalorder %s46, 0
      %p266 = por %p264, %p265
      %s267 = ssub.s32 %s47, %s59
      %p268 = scmp.eq.s32.totalorder %s267, 0
      %s270 = sadd.s32 %s269, 1
      %s271 = scalar_select %p268, %s269, %s270
      %p274 = pneg %p268
      %p275 = scmp.eq.s32.totalorder %s40, 7
      %p276 = por %p274, %p275
      %p277 = scmp.ne.s32.totalorder %s269, %s272
      %p278 = scmp.eq.s32.totalorder %s40, 0
      %p279 = por %p277, %p278
      %p280 = scmp.ne.s32.totalorder %s269, %s272
      %p281 = scmp.eq.s32.totalorder %s45, 7
      %p282 = por %p280, %p281
      %p283 = scmp.ne.s32.totalorder %s272, %s273
      %p284 = scmp.eq.s32.totalorder %s45, 0
      %p285 = por %p283, %p284
      %p286 = scmp.ne.s32.totalorder %s272, %s273
      %p287 = scmp.eq.s32.totalorder %s46, 7
      %p288 = por %p286, %p287
      %p290 = scmp.ne.s32.totalorder %s273, %s289
      %p291 = scmp.eq.s32.totalorder %s46, 0
      %p292 = por %p290, %p291
      %s293 = ssub.s32 %s47, %s59
      %p294 = scmp.eq.s32.totalorder %s293, 0
      %s296 = sadd.s32 %s295, 1
      %s297 = scalar_select %p294, %s295, %s296
      %p300 = pneg %p294
      %p301 = scmp.eq.s32.totalorder %s40, 7
      %p302 = por %p300, %p301
      %p303 = scmp.ne.s32.totalorder %s295, %s298
      %p304 = scmp.eq.s32.totalorder %s40, 0
      %p305 = por %p303, %p304
      %p306 = scmp.ne.s32.totalorder %s295, %s298
      %p307 = scmp.eq.s32.totalorder %s45, 7
      %p308 = por %p306, %p307
      %p309 = scmp.ne.s32.totalorder %s298, %s299
      %p310 = scmp.eq.s32.totalorder %s45, 0
      %p311 = por %p309, %p310
      %p312 = scmp.ne.s32.totalorder %s298, %s299
      %p313 = scmp.eq.s32.totalorder %s46, 7
      %p314 = por %p312, %p313
      %p316 = scmp.ne.s32.totalorder %s299, %s315
      %p317 = scmp.eq.s32.totalorder %s46, 0
      %p318 = por %p316, %p317
      %s319 = ssub.s32 %s47, %s59
      %p320 = scmp.eq.s32.totalorder %s319, 0
      %s322 = sadd.s32 %s321, 1
      %s323 = scalar_select %p320, %s321, %s322
      %p326 = pneg %p320
      %p327 = scmp.eq.s32.totalorder %s40, 7
      %p328 = por %p326, %p327
      %p329 = scmp.ne.s32.totalorder %s321, %s324
      %p330 = scmp.eq.s32.totalorder %s40, 0
      %p331 = por %p329, %p330
      %p332 = scmp.ne.s32.totalorder %s321, %s324
      %p333 = scmp.eq.s32.totalorder %s45, 7
      %p334 = por %p332, %p333
      %p335 = scmp.ne.s32.totalorder %s324, %s325
      %p336 = scmp.eq.s32.totalorder %s45, 0
      %p337 = por %p335, %p336
      %p338 = scmp.ne.s32.totalorder %s324, %s325
      %p339 = scmp.eq.s32.totalorder %s46, 7
      %p340 = por %p338, %p339
      %p342 = scmp.ne.s32.totalorder %s325, %s341
      %p343 = scmp.eq.s32.totalorder %s46, 0
      %p344 = por %p342, %p343
      %s345 = ssub.s32 %s47, %s59
      %p346 = scmp.eq.s32.totalorder %s345, 0
      %s348 = sadd.s32 %s347, 1
      %s349 = scalar_select %p346, %s347, %s348
      %p352 = pneg %p346
      %p353 = scmp.eq.s32.totalorder %s40, 7
      %p354 = por %p352, %p353
      %p355 = scmp.ne.s32.totalorder %s347, %s350
      %p356 = scmp.eq.s32.totalorder %s40, 0
      %p357 = por %p355, %p356
      %p358 = scmp.ne.s32.totalorder %s347, %s350
      %p359 = scmp.eq.s32.totalorder %s45, 7
      %p360 = por %p358, %p359
      %p361 = scmp.ne.s32.totalorder %s350, %s351
      %p362 = scmp.eq.s32.totalorder %s45, 0
      %p363 = por %p361, %p362
      %p364 = scmp.ne.s32.totalorder %s350, %s351
      %p365 = scmp.eq.s32.totalorder %s46, 7
      %p366 = por %p364, %p365
      %p368 = scmp.ne.s32.totalorder %s351, %s367
      %p369 = scmp.eq.s32.totalorder %s46, 0
      %p370 = por %p368, %p369
      %s371 = ssub.s32 %s47, %s59
      %s372 = ssub.s32 %s48, %s55
      %s373 = sor.u32 %s371, %s372
      %p374 = scmp.eq.s32.totalorder %s373, 0
      %s376 = sadd.s32 %s375, 1
      %s377 = scalar_select %p374, %s375, %s376
      %p380 = pneg %p374
      %p381 = scmp.eq.s32.totalorder %s40, 7
      %p382 = por %p380, %p381
      %p383 = scmp.ne.s32.totalorder %s375, %s378
      %p384 = scmp.eq.s32.totalorder %s40, 0
      %p385 = por %p383, %p384
      %p386 = scmp.ne.s32.totalorder %s375, %s378
      %p387 = scmp.eq.s32.totalorder %s45, 7
      %p388 = por %p386, %p387
      %p389 = scmp.ne.s32.totalorder %s378, %s379
      %p390 = scmp.eq.s32.totalorder %s45, 0
      %p391 = por %p389, %p390
      %p392 = scmp.ne.s32.totalorder %s378, %s379
      %p393 = scmp.eq.s32.totalorder %s46, 7
      %p394 = por %p392, %p393
      %p396 = scmp.ne.s32.totalorder %s379, %s395
      %p397 = scmp.eq.s32.totalorder %s46, 0
      %p398 = por %p396, %p397
      %p399 = scmp.le.s32.totalorder 1, %s40
      %p400 = scmp.lt.s32.totalorder %s40, 9
      %p401 = pnand %p399, %p400
      %p402 = pneg %p401
      // Predicated region
      $region9: #{tpu_custom_call.1} parent=5 // pred_check
        _
      $region10: #{tpu_custom_call.1} parent=5 // pred_check_branch
        %404 = sbr.rel (%p401) target = $region12
      $region11: #{tpu_custom_call.1} parent=5 // pred_region
        %s405 = ssub.s32 %s40, 1
        // Predicated region
        $region13: #{tpu_custom_call.1} parent=11 // pred_check
          %p406 = pneg %p129
        $region14: #{tpu_custom_call.1} parent=11 // pred_check_branch
          %408 = sbr.rel (%p406) target = $region16
        $region15: #{tpu_custom_call.1} parent=11 // pred_region
          _
        $region16: #{tpu_custom_call.1} parent=11 // pred_fallthru
          _
      $region12: #{tpu_custom_call.1} parent=5 // pred_fallthru
        _
      %p409 = scmp.lt.s32.totalorder %s40, 8
      // Predicated region
      $region17: #{tpu_custom_call.1} parent=5 // pred_check
        %p410 = pneg %p409
      $region18: #{tpu_custom_call.1} parent=5 // pred_check_branch
        %412 = sbr.rel (%p410) target = $region20
      $region19: #{tpu_custom_call.1} parent=5 // pred_region
        // Predicated region
        $region21: #{tpu_custom_call.1} parent=19 // pred_check
          %p413 = pneg %p74
        $region22: #{tpu_custom_call.1} parent=19 // pred_check_branch
          %415 = sbr.rel (%p413) target = $region24
        $region23: #{tpu_custom_call.1} parent=19 // pred_region
          %s416 = sand.u32 %s64, 1
          %s417 = scalar_lea.sflag [#allocation6], %s416
          %s418 = sand.u32 %s64, 1
          %s419 = smul.addr %s418, 48
          %s420 = scalar_lea.vmem [#allocation5], %s419
          %s421 = smul.u32 2, %s48
          %s423 = ssub.s32 768, 768
          %424 = vsyncadd %s417, %s423
          %s425 = smul.addr %s421, 6
          %s426 = smul.addr %s47, 12
          %s427 = sadd.s32 %s425, %s426
          %s428 = smul.addr %s427, 64
          %s429 = scalar_lea.hbm %s2, %s428
          %s430 = sshll.u32 %s420, 4
          %s431 = int_to_ptr.vmem [resolvable:$true] %s430
          %436 = dma.hbm_to_vmem [thread:$0]  %s429, 768, %s431, %s417, 64, 64, 4
        $region24: #{tpu_custom_call.1} parent=19 // pred_fallthru
          _
        // Predicated region
        $region25: #{tpu_custom_call.1} parent=19 // pred_check
          %p437 = pneg %p102
        $region26: #{tpu_custom_call.1} parent=19 // pred_check_branch
          %439 = sbr.rel (%p437) target = $region28
        $region27: #{tpu_custom_call.1} parent=19 // pred_region
          %s440 = smul.u32 2, %s48
          %p441 = scmp.lt.s32.totalorder %s47, 7
          %s442 = scalar_select %p441, %s47, 7
          %p443 = scmp.lt.s32.totalorder %s440, 1
          %s444 = scalar_select %p443, %s440, 1
          %s445 = smul.addr %s442, 2
          %s446 = sadd.s32 %s444, %s445
          %s447 = smul.addr %s446, 8
          %s448 = scalar_lea.vmem %s3, %s447
          %s449 = smul.u32 2, %s48
        $region28: #{tpu_custom_call.1} parent=19 // pred_fallthru
          _
        // Predicated region
        $region29: #{tpu_custom_call.1} parent=19 // pred_check
          %p450 = pneg %p149
        $region30: #{tpu_custom_call.1} parent=19 // pred_check_branch
          %452 = sbr.rel (%p450) target = $region32
        $region31: #{tpu_custom_call.1} parent=19 // pred_region
          %s453 = sand.u32 %s40, 1
          %s454 = scalar_lea.sflag [#allocation9], %s453
          %s455 = sand.u32 %s139, 1
          %s456 = smul.addr %s455, 2
          %s457 = scalar_lea.vmem [#allocation8], %s456
          %s459 = ssub.s32 32, 32
          %460 = vsyncadd %s454, %s459
          %s461 = smul.addr %s47, 32
          %s462 = scalar_lea.hbm %s5, %s461
          %s464 = sshll.u32 %s457, 4
          %s465 = int_to_ptr.vmem [resolvable:$true] %s464
          %467 = dma.hbm_to_vmem [thread:$0]  %s462, 32, %s465, %s454
        $region32: #{tpu_custom_call.1} parent=19 // pred_fallthru
          _
        // Predicated region
        $region33: #{tpu_custom_call.1} parent=19 // pred_check
          %p468 = pneg %p175
        $region34: #{tpu_custom_call.1} parent=19 // pred_check_branch
          %470 = sbr.rel (%p468) target = $region36
        $region35: #{tpu_custom_call.1} parent=19 // pred_region
          %s471 = sand.u32 %s40, 1
          %s472 = scalar_lea.sflag [#allocation9], %s471
          %s473 = sand.u32 %s165, 1
          %s474 = smul.addr %s473, 2
          %s475 = scalar_lea.vmem [#allocation10], %s474
          %s477 = ssub.s32 32, 32
          %478 = vsyncadd %s472, %s477
          %s479 = smul.addr %s47, 32
          %s480 = scalar_lea.hbm %s6, %s479
          %s482 = sshll.u32 %s475, 4
          %s483 = int_to_ptr.vmem [resolvable:$true] %s482
          %485 = dma.hbm_to_vmem [thread:$0]  %s480, 32, %s483, %s472
        $region36: #{tpu_custom_call.1} parent=19 // pred_fallthru
          _
        // Predicated region
        $region37: #{tpu_custom_call.1} parent=19 // pred_check
          %p486 = pneg %p201
        $region38: #{tpu_custom_call.1} parent=19 // pred_check_branch
          %488 = sbr.rel (%p486) target = $region40
        $region39: #{tpu_custom_call.1} parent=19 // pred_region
          %p489 = scmp.lt.s32.totalorder %s47, 7
          %s490 = scalar_select %p489, %s47, 7
          %s491 = smul.addr %s490, 8
          %s492 = scalar_lea.vmem %s7, %s491
        $region40: #{tpu_custom_call.1} parent=19 // pred_fallthru
          _
        // Predicated region
        $region41: #{tpu_custom_call.1} parent=19 // pred_check
          %p493 = pneg %p227
        $region42: #{tpu_custom_call.1} parent=19 // pred_check_branch
          %495 = sbr.rel (%p493) target = $region44
        $region43: #{tpu_custom_call.1} parent=19 // pred_region
          %p496 = scmp.lt.s32.totalorder %s47, 7
          %s497 = scalar_select %p496, %s47, 7
          %s498 = smul.addr %s497, 8
          %s499 = scalar_lea.vmem %s8, %s498
        $region44: #{tpu_custom_call.1} parent=19 // pred_fallthru
          _
        // Predicated region
        $region45: #{tpu_custom_call.1} parent=19 // pred_check
          %p500 = pneg %p253
        $region46: #{tpu_custom_call.1} parent=19 // pred_check_branch
          %502 = sbr.rel (%p500) target = $region48
        $region47: #{tpu_custom_call.1} parent=19 // pred_region
          %p503 = scmp.lt.s32.totalorder %s47, 7
          %s504 = scalar_select %p503, %s47, 7
          %s505 = smul.addr %s504, 4
          %s506 = scalar_lea.vmem %s9, %s505
        $region48: #{tpu_custom_call.1} parent=19 // pred_fallthru
          _
        // Predicated region
        $region49: #{tpu_custom_call.1} parent=19 // pred_check
          %p507 = pneg %p279
        $region50: #{tpu_custom_call.1} parent=19 // pred_check_branch
          %509 = sbr.rel (%p507) target = $region52
        $region51: #{tpu_custom_call.1} parent=19 // pred_region
          %p510 = scmp.lt.s32.totalorder %s47, 7
          %s511 = scalar_select %p510, %s47, 7
          %s512 = smul.addr %s511, 4
          %s513 = scalar_lea.vmem %s10, %s512
        $region52: #{tpu_custom_call.1} parent=19 // pred_fallthru
          _
        // Predicated region
        $region53: #{tpu_custom_call.1} parent=19 // pred_check
          %p514 = pneg %p305
        $region54: #{tpu_custom_call.1} parent=19 // pred_check_branch
          %516 = sbr.rel (%p514) target = $region56
        $region55: #{tpu_custom_call.1} parent=19 // pred_region
          %p517 = scmp.lt.s32.totalorder %s47, 7
          %s518 = scalar_select %p517, %s47, 7
          %s519 = smul.addr %s518, 8
          %s520 = scalar_lea.vmem %s11, %s519
        $region56: #{tpu_custom_call.1} parent=19 // pred_fallthru
          _
        // Predicated region
        $region57: #{tpu_custom_call.1} parent=19 // pred_check
          %p521 = pneg %p331
        $region58: #{tpu_custom_call.1} parent=19 // pred_check_branch
          %523 = sbr.rel (%p521) target = $region60
        $region59: #{tpu_custom_call.1} parent=19 // pred_region
          %p524 = scmp.lt.s32.totalorder %s47, 7
          %s525 = scalar_select %p524, %s47, 7
          %s526 = smul.addr %s525, 4
          %s527 = scalar_lea.vmem %s12, %s526
        $region60: #{tpu_custom_call.1} parent=19 // pred_fallthru
          _
        // Predicated region
        $region61: #{tpu_custom_call.1} parent=19 // pred_check
          %p528 = pneg %p357
        $region62: #{tpu_custom_call.1} parent=19 // pred_check_branch
          %530 = sbr.rel (%p528) target = $region64
        $region63: #{tpu_custom_call.1} parent=19 // pred_region
          %s531 = sand.u32 %s347, 1
          %s532 = scalar_lea.sflag [#allocation12], %s531
          %s533 = sand.u32 %s347, 1
          %s534 = smul.addr %s533, 4
          %s535 = scalar_lea.vmem [#allocation11], %s534
          %s537 = ssub.s32 64, 64
          %538 = vsyncadd %s532, %s537
          %s539 = smul.addr %s47, 64
          %s540 = scalar_lea.hbm %s13, %s539
          %s542 = sshll.u32 %s535, 4
          %s543 = int_to_ptr.vmem [resolvable:$true] %s542
          %545 = dma.hbm_to_vmem [thread:$0]  %s540, 64, %s543, %s532
        $region64: #{tpu_custom_call.1} parent=19 // pred_fallthru
          _
      $region20: #{tpu_custom_call.1} parent=5 // pred_fallthru
        _
      %p546 = scmp.le.s32.totalorder 1, %s40
      %p547 = scmp.lt.s32.totalorder %s40, 9
      %p548 = pnand %p546, %p547
      %p549 = pneg %p548
      // Predicated region
      $region65: #{tpu_custom_call.1} parent=5 // pred_check
        _
      $region66: #{tpu_custom_call.1} parent=5 // pred_check_branch
        %551 = sbr.rel (%p548) target = $region68
      $region67: #{tpu_custom_call.1} parent=5 // pred_region
        %s552 = ssub.s32 %s40, 1
        %s553 = sand.u32 %s67, 1
        %s554 = scalar_lea.sflag [#allocation6], %s553
        %s555 = sand.u32 %s67, 1
        %s556 = smul.addr %s555, 48
        %s557 = scalar_lea.vmem [#allocation5], %s556
        // Predicated region
        $region69: #{tpu_custom_call.1} parent=67 // pred_check
          %p558 = pneg %p80
        $region70: #{tpu_custom_call.1} parent=67 // pred_check_branch
          %560 = sbr.rel (%p558) target = $region72
        $region71: #{tpu_custom_call.1} parent=67 // pred_region
          %561 = dma.done %s554, 768
        $region72: #{tpu_custom_call.1} parent=67 // pred_fallthru
          _
        %s562 = sand.u32 %s45, 1
        %s563 = scalar_lea.sflag [#allocation9], %s562
        %s564 = sand.u32 %s142, 1
        %s565 = smul.addr %s564, 2
        %s566 = scalar_lea.vmem [#allocation8], %s565
        // Predicated region
        $region73: #{tpu_custom_call.1} parent=67 // pred_check
          %p567 = pneg %p155
        $region74: #{tpu_custom_call.1} parent=67 // pred_check_branch
          %569 = sbr.rel (%p567) target = $region76
        $region75: #{tpu_custom_call.1} parent=67 // pred_region
          %570 = dma.done %s563, 32
        $region76: #{tpu_custom_call.1} parent=67 // pred_fallthru
          _
        %s571 = sand.u32 %s45, 1
        %s572 = scalar_lea.sflag [#allocation9], %s571
        %s573 = sand.u32 %s168, 1
        %s574 = smul.addr %s573, 2
        %s575 = scalar_lea.vmem [#allocation10], %s574
        // Predicated region
        $region77: #{tpu_custom_call.1} parent=67 // pred_check
          %p576 = pneg %p181
        $region78: #{tpu_custom_call.1} parent=67 // pred_check_branch
          %578 = sbr.rel (%p576) target = $region80
        $region79: #{tpu_custom_call.1} parent=67 // pred_region
          %579 = dma.done %s572, 32
        $region80: #{tpu_custom_call.1} parent=67 // pred_fallthru
          _
        %s580 = sand.u32 %s350, 1
        %s581 = scalar_lea.sflag [#allocation12], %s580
        %s582 = sand.u32 %s350, 1
        %s583 = smul.addr %s582, 4
        %s584 = scalar_lea.vmem [#allocation11], %s583
        // Predicated region
        $region81: #{tpu_custom_call.1} parent=67 // pred_check
          %p585 = pneg %p363
        $region82: #{tpu_custom_call.1} parent=67 // pred_check_branch
          %587 = sbr.rel (%p585) target = $region84
        $region83: #{tpu_custom_call.1} parent=67 // pred_region
          %588 = dma.done %s581, 64
        $region84: #{tpu_custom_call.1} parent=67 // pred_fallthru
          _
        %s589 = sand.u32 %s67, 1
        %s590 = scalar_lea.sflag [#allocation6], %s589
        %s591 = sand.u32 %s67, 1
        %s592 = smul.addr %s591, 48
        %s593 = scalar_lea.vmem [#allocation5], %s592
        %p594 = pneg %p80
        %p595 = pneg %p77
        %s596 = smul.u32 2, %s50
        %p597 = scmp.lt.s32.totalorder %s49, 7
        %s598 = scalar_select %p597, %s49, 7
        %p599 = scmp.lt.s32.totalorder %s596, 1
        %s600 = scalar_select %p599, %s596, 1
        %s601 = smul.addr %s598, 2
        %s602 = sadd.s32 %s600, %s601
        %s603 = smul.addr %s602, 8
        %s604 = scalar_lea.vmem %s3, %s603
        %p605 = pneg %p108
        %p606 = pneg %p105
        %p607 = pneg %p129
        %p608 = pneg %p126
        %s609 = sand.u32 %s45, 1
        %s610 = scalar_lea.sflag [#allocation9], %s609
        %s611 = sand.u32 %s142, 1
        %s612 = smul.addr %s611, 2
        %s613 = scalar_lea.vmem [#allocation8], %s612
        %p614 = pneg %p155
        %p615 = pneg %p152
        %s616 = sand.u32 %s45, 1
        %s617 = scalar_lea.sflag [#allocation9], %s616
        %s618 = sand.u32 %s168, 1
        %s619 = smul.addr %s618, 2
        %s620 = scalar_lea.vmem [#allocation10], %s619
        %p621 = pneg %p181
        %p622 = pneg %p178
        %p623 = scmp.lt.s32.totalorder %s49, 7
        %s624 = scalar_select %p623, %s49, 7
        %s625 = smul.addr %s624, 8
        %s626 = scalar_lea.vmem %s7, %s625
        %p627 = pneg %p207
        %p628 = pneg %p204
        %p629 = scmp.lt.s32.totalorder %s49, 7
        %s630 = scalar_select %p629, %s49, 7
        %s631 = smul.addr %s630, 8
        %s632 = scalar_lea.vmem %s8, %s631
        %p633 = pneg %p233
        %p634 = pneg %p230
        %p635 = scmp.lt.s32.totalorder %s49, 7
        %s636 = scalar_select %p635, %s49, 7
        %s637 = smul.addr %s636, 4
        %s638 = scalar_lea.vmem %s9, %s637
        %p639 = pneg %p259
        %p640 = pneg %p256
        %p641 = scmp.lt.s32.totalorder %s49, 7
        %s642 = scalar_select %p641, %s49, 7
        %s643 = smul.addr %s642, 4
        %s644 = scalar_lea.vmem %s10, %s643
        %p645 = pneg %p285
        %p646 = pneg %p282
        %p647 = scmp.lt.s32.totalorder %s49, 7
        %s648 = scalar_select %p647, %s49, 7
        %s649 = smul.addr %s648, 8
        %s650 = scalar_lea.vmem %s11, %s649
        %p651 = pneg %p311
        %p652 = pneg %p308
        %p653 = scmp.lt.s32.totalorder %s49, 7
        %s654 = scalar_select %p653, %s49, 7
        %s655 = smul.addr %s654, 4
        %s656 = scalar_lea.vmem %s12, %s655
        %p657 = pneg %p337
        %p658 = pneg %p334
        %s659 = sand.u32 %s350, 1
        %s660 = scalar_lea.sflag [#allocation12], %s659
        %s661 = sand.u32 %s350, 1
        %s662 = smul.addr %s661, 4
        %s663 = scalar_lea.vmem [#allocation11], %s662
        %p664 = pneg %p363
        %p665 = pneg %p360
        %p666 = pneg %p391
        %p667 = pneg %p388
        %s668 = sand.u32 %s378, 1
        %s669 = scalar_lea.sflag [#allocation7], %s668
        %s670 = sand.u32 %s378, 1
        %s671 = smul.addr %s670, 16
        %s672 = scalar_lea.vmem [#allocation13], %s671
        %s673 = smul.u32 2, %s50
        %s674 = smul.u32 2, %s50
        %p675 = scmp.lt.s32.totalorder %s49, 7
        %s676 = scalar_select %p675, %s49, 7
        %p677 = scmp.lt.s32.totalorder %s674, 1
        %s678 = scalar_select %p677, %s674, 1
        %s679 = smul.addr %s676, 2
        %s680 = sadd.s32 %s678, %s679
        %s681 = smul.addr %s680, 8
        %s682 = scalar_lea.vmem %s3, %s681
        %s683 = smul.u32 2, %s50
        %p684 = scmp.lt.s32.totalorder %s49, 7
        %s685 = scalar_select %p684, %s49, 7
        %s686 = smul.addr %s685, 8
        %s687 = scalar_lea.vmem %s7, %s686
        %p688 = scmp.lt.s32.totalorder %s49, 7
        %s689 = scalar_select %p688, %s49, 7
        %s690 = smul.addr %s689, 8
        %s691 = scalar_lea.vmem %s8, %s690
        %p692 = scmp.lt.s32.totalorder %s49, 7
        %s693 = scalar_select %p692, %s49, 7
        %s694 = smul.addr %s693, 4
        %s695 = scalar_lea.vmem %s9, %s694
        %p696 = scmp.lt.s32.totalorder %s49, 7
        %s697 = scalar_select %p696, %s49, 7
        %s698 = smul.addr %s697, 4
        %s699 = scalar_lea.vmem %s10, %s698
        %p700 = scmp.lt.s32.totalorder %s49, 7
        %s701 = scalar_select %p700, %s49, 7
        %s702 = smul.addr %s701, 8
        %s703 = scalar_lea.vmem %s11, %s702
        %p704 = scmp.lt.s32.totalorder %s49, 7
        %s705 = scalar_select %p704, %s49, 7
        %s706 = smul.addr %s705, 4
        %s707 = scalar_lea.vmem %s12, %s706
        %s708 = smul.u32 2, %s50
        %v710 = vld [vmem:[%s4] sm:$0xf]
        %v711 = vld [vmem:[%s4 + $0x4] sm:$0xf]
        %v712 = vld [vmem:[%s4 + $0x8] sm:$0xf]
        %v713 = vld [vmem:[%s4 + $0xc] sm:$0xf]
        %v714 = vld [vmem:[%s4 + $0x10] sm:$0xf]
        %v715 = vld [vmem:[%s4 + $0x14] sm:$0xf]
        %v716 = vld [vmem:[%s4 + $0x18] sm:$0xf]
        %v717 = vld [vmem:[%s4 + $0x1c] sm:$0xf]
        %v718 = vld [vmem:[%s566] sm:$0x3]
        %v719 = vld [vmem:[%s575] sm:$0x3]
        %v720 = vld [vmem:[%s687] sm:$0xff]
        %v721 = vld [vmem:[%s691] sm:$0xff]
        %v722 = vld [vmem:[%s695] sm:$0xf]
        %v723 = vld [vmem:[%s699] sm:$0xf]
        %v724 = vld [vmem:[%s703] sm:$0xff]
        %v725 = vld [vmem:[%s707] sm:$0xf]
        %v726 = vunpack.c.l.bf16 %v725
        %v727 = vld [vmem:[%s584] sm:$0xf]
        %v728 = vunpack.c.l.bf16 %v727
        %s729 = smul.u32 %s50, 2
        %s730 = smul.u32 %s49, 2
        %s731 = sadd.s32 %s729, %s730
        %s732 = smul.u32 %s731, 128
        %s733 = sld [smem:[#allocation3 + %s732]]
        %v734 = vld [vmem:[%s557] sm:$0xf]
        %v735 = vunpack.c.l.bf16 %v734
        %v736 = vstv %s733
        %v737 = vmul.f32 %v736, %v735
        %s738 = sadd.s32 %s732, 1
        %s739 = sld [smem:[#allocation3 + %s738]]
        %s740 = scalar_lea.vmem %s557, 4 [#allocation5]
        %v741 = vld [vmem:[%s740] sm:$0xf]
        %v742 = vunpack.c.l.bf16 %v741
        %v743 = vstv %s739
        %v744 = vmul.f32 %v743, %v742
        %v745 = vadd.f32 %v737, %v744
        %s746 = sadd.s32 %s732, 2
        %s747 = sld [smem:[#allocation3 + %s746]]
        %s748 = scalar_lea.vmem %s557, 8 [#allocation5]
        %v749 = vld [vmem:[%s748] sm:$0xf]
        %v750 = vunpack.c.l.bf16 %v749
        %v751 = vstv %s747
        %v752 = vmul.f32 %v751, %v750
        %v753 = vadd.f32 %v745, %v752
        %s754 = sadd.s32 %s732, 3
        %s755 = sld [smem:[#allocation3 + %s754]]
        %s756 = scalar_lea.vmem %s557, 12 [#allocation5]
        %v757 = vld [vmem:[%s756] sm:$0xf]
        %v758 = vunpack.c.l.bf16 %v757
        %v759 = vstv %s755
        %v760 = vmul.f32 %v759, %v758
        %v761 = vadd.f32 %v753, %v760
        %s762 = sadd.s32 %s732, 4
        %s763 = sld [smem:[#allocation3 + %s762]]
        %s764 = scalar_lea.vmem %s557, 16 [#allocation5]
        %v765 = vld [vmem:[%s764] sm:$0xf]
        %v766 = vunpack.c.l.bf16 %v765
        %v767 = vstv %s763
        %v768 = vmul.f32 %v767, %v766
        %v769 = vadd.f32 %v761, %v768
        %s770 = sadd.s32 %s732, 5
        %s771 = sld [smem:[#allocation3 + %s770]]
        %s772 = scalar_lea.vmem %s557, 20 [#allocation5]
        %v773 = vld [vmem:[%s772] sm:$0xf]
        %v774 = vunpack.c.l.bf16 %v773
        %v775 = vstv %s771
        %v776 = vmul.f32 %v775, %v774
        %v777 = vadd.f32 %v769, %v776
        %v778 = vld [vmem:[%s682] sm:$0xff]
        %vm779 = vcmask 523264
        %v780 = vsel %vm779, %v777, 0.0
        %781 = vadd.xlane.f32.xlu0 %v780
        %v782 = vpop.xlane.xlu0 %781
        %v783 = vrcp.pop 64.0
        %v784 = vmul.f32 %v782, %v783
        %v785 = vsel %vm779, %v777, -inf
        %786 = vmax.xlane.f32.xlu0 %v785
        %v787 = vpop.xlane.xlu0 %786
        %vm788 = vcmask 7168
        %v789 = vsel %vm788, %v784, %v787
        %790 = vadd.xlane.f32.xlu0 %v778
        %v791 = vpop.xlane.xlu0 %790
        %v792 = vrcp.pop 128.0
        %v793 = vmul.f32 %v791, %v792
        %794 = vmax.xlane.f32.xlu0 %v778
        %v795 = vpop.xlane.xlu0 %794
        %v796 = vsel %vm788, %v793, %v795
        %vm797 = vcmask 64512
        %v799 = vsel %vm797, %v719, 0
        %801 = vmatprep.subr.mxu0 0.0
        %802 = vmatpush1.msra.mxu0 0.0
        %803 = vmatprep.subr.mxu0 0.0
        %804 = vmatpush1.msra.mxu0 0.0
        %805 = vmatprep.subr.mxu0 0.0
        %806 = vmatpush1.msra.mxu0 0.0
        %807 = vmatprep.subr.mxu0 0.0
        %808 = vmatpush1.msra.mxu0 0.0
        %809 = vmatprep.subr.mxu0 0.0
        %810 = vmatpush1.msra.mxu0 0.0
        %811 = vmatprep.subr.mxu0 0.0
        %812 = vmatpush1.msra.mxu0 0.0
        %813 = vmatprep.subr.mxu0 0.0
        %814 = vmatpush1.msra.mxu0 0.0
        %815 = vmatprep.subr.mxu0 0.0
        %816 = vmatpush1.msra.mxu0 0.0
        %817 = vmatprep.subr.mxu0 0.0
        %818 = vmatpush1.msra.mxu0 0.0
        %819 = vmatprep.subr.mxu0 0.0
        %820 = vmatpush1.msra.mxu0 0.0
        %821 = vmatprep.subr.mxu0 0.0
        %822 = vmatpush1.msra.mxu0 0.0
        %823 = vmatprep.subr.mxu0 0.0
        %824 = vmatpush1.msra.mxu0 0.0
        %825 = vmatprep.subr.mxu0 0.0
        %826 = vmatpush1.msra.mxu0 0.0
        %827 = vmatprep.subr.mxu0 0.0
        %828 = vmatpush1.msra.mxu0 0.0
        %829 = vmatprep.subr.mxu0 0.0
        %830 = vmatpush1.msra.mxu0 0.0
        %831 = vmatprep.subr.mxu0 0.0
        %832 = vmatpush1.msra.mxu0 %v796
        %833 = vmatprep.subr.mxu0 0.0
        %834 = vmatpush2.msra.mxu0 0.0
        %835 = vmatprep.subr.mxu0 0.0
        %836 = vmatpush2.msra.mxu0 0.0
        %837 = vmatprep.subr.mxu0 0.0
        %838 = vmatpush2.msra.mxu0 0.0
        %839 = vmatprep.subr.mxu0 0.0
        %840 = vmatpush2.msra.mxu0 0.0
        %841 = vmatprep.subr.mxu0 0.0
        %842 = vmatpush2.msra.mxu0 0.0
        %843 = vmatprep.subr.mxu0 0.0
        %844 = vmatpush2.msra.mxu0 0.0
        %845 = vmatprep.subr.mxu0 0.0
        %846 = vmatpush2.msra.mxu0 0.0
        %847 = vmatprep.subr.mxu0 0.0
        %848 = vmatpush2.msra.mxu0 0.0
        %849 = vmatprep.subr.mxu0 0.0
        %850 = vmatpush2.msra.mxu0 0.0
        %851 = vmatprep.subr.mxu0 0.0
        %852 = vmatpush2.msra.mxu0 0.0
        %853 = vmatprep.subr.mxu0 0.0
        %854 = vmatpush2.msra.mxu0 0.0
        %855 = vmatprep.subr.mxu0 0.0
        %856 = vmatpush2.msra.mxu0 0.0
        %857 = vmatprep.subr.mxu0 0.0
        %858 = vmatpush2.msra.mxu0 0.0
        %859 = vmatprep.subr.mxu0 0.0
        %860 = vmatpush2.msra.mxu0 0.0
        %861 = vmatprep.subr.mxu0 0.0
        %862 = vmatpush2.msra.mxu0 0.0
        %863 = vmatprep.subr.mxu0 0.0
        %864 = vmatpush2.msra.mxu0 0.0
        %865 = vmatprep.mubr.f32.mxu0 0.0
        %866 = vmatmul.mubr.f32.gmra.mxu0 %v799
        %v867 = vpop.f32.mrf.mxu0
        %v868 = vadd.f32 0.0, %v867
        %v869 = vpop.f32.mrf.mxu0
        %870 = vdwg.mxu0
        %v872 = vsel %vm797, %v718, 0
        %874 = vmatprep.subr.mxu0 0.0
        %875 = vmatpush1.msra.mxu0 0.0
        %876 = vmatprep.subr.mxu0 0.0
        %877 = vmatpush1.msra.mxu0 0.0
        %878 = vmatprep.subr.mxu0 0.0
        %879 = vmatpush1.msra.mxu0 0.0
        %880 = vmatprep.subr.mxu0 0.0
        %881 = vmatpush1.msra.mxu0 0.0
        %882 = vmatprep.subr.mxu0 0.0
        %883 = vmatpush1.msra.mxu0 0.0
        %884 = vmatprep.subr.mxu0 0.0
        %885 = vmatpush1.msra.mxu0 0.0
        %886 = vmatprep.subr.mxu0 0.0
        %887 = vmatpush1.msra.mxu0 0.0
        %888 = vmatprep.subr.mxu0 0.0
        %889 = vmatpush1.msra.mxu0 0.0
        %890 = vmatprep.subr.mxu0 0.0
        %891 = vmatpush1.msra.mxu0 0.0
        %892 = vmatprep.subr.mxu0 0.0
        %893 = vmatpush1.msra.mxu0 0.0
        %894 = vmatprep.subr.mxu0 0.0
        %895 = vmatpush1.msra.mxu0 0.0
        %896 = vmatprep.subr.mxu0 0.0
        %897 = vmatpush1.msra.mxu0 0.0
        %898 = vmatprep.subr.mxu0 0.0
        %899 = vmatpush1.msra.mxu0 0.0
        %900 = vmatprep.subr.mxu0 0.0
        %901 = vmatpush1.msra.mxu0 0.0
        %902 = vmatprep.subr.mxu0 0.0
        %903 = vmatpush1.msra.mxu0 0.0
        %904 = vmatprep.subr.mxu0 0.0
        %905 = vmatpush1.msra.mxu0 %v789
        %906 = vmatprep.subr.mxu0 0.0
        %907 = vmatpush2.msra.mxu0 0.0
        %908 = vmatprep.subr.mxu0 0.0
        %909 = vmatpush2.msra.mxu0 0.0
        %910 = vmatprep.subr.mxu0 0.0
        %911 = vmatpush2.msra.mxu0 0.0
        %912 = vmatprep.subr.mxu0 0.0
        %913 = vmatpush2.msra.mxu0 0.0
        %914 = vmatprep.subr.mxu0 0.0
        %915 = vmatpush2.msra.mxu0 0.0
        %916 = vmatprep.subr.mxu0 0.0
        %917 = vmatpush2.msra.mxu0 0.0
        %918 = vmatprep.subr.mxu0 0.0
        %919 = vmatpush2.msra.mxu0 0.0
        %920 = vmatprep.subr.mxu0 0.0
        %921 = vmatpush2.msra.mxu0 0.0
        %922 = vmatprep.subr.mxu0 0.0
        %923 = vmatpush2.msra.mxu0 0.0
        %924 = vmatprep.subr.mxu0 0.0
        %925 = vmatpush2.msra.mxu0 0.0
        %926 = vmatprep.subr.mxu0 0.0
        %927 = vmatpush2.msra.mxu0 0.0
        %928 = vmatprep.subr.mxu0 0.0
        %929 = vmatpush2.msra.mxu0 0.0
        %930 = vmatprep.subr.mxu0 0.0
        %931 = vmatpush2.msra.mxu0 0.0
        %932 = vmatprep.subr.mxu0 0.0
        %933 = vmatpush2.msra.mxu0 0.0
        %934 = vmatprep.subr.mxu0 0.0
        %935 = vmatpush2.msra.mxu0 0.0
        %936 = vmatprep.subr.mxu0 0.0
        %937 = vmatpush2.msra.mxu0 0.0
        %938 = vmatprep.mubr.f32.mxu0 0.0
        %939 = vmatmul.mubr.f32.gmra.mxu0 %v872
        %v940 = vpop.f32.mrf.mxu0
        %v941 = vadd.f32 %v868, %v940
        %v942 = vpop.f32.mrf.mxu0
        %943 = vdwg.mxu0
        %v944 = vmax.f32 %v941, 0.0
        %946 = vrot.lane.b32.xlu0 %v944, 127
        %v947 = vpop.permute.xlu0 %946
        %v949 = vadd.f32 %v944, %v947
        %vm950 = vcmask 15360
        %v952 = vsel %vm950, %v720, 0
        %vm954 = vcmask 1041408
        %v956 = vsel %vm954, %v949, 0
        %958 = vmatprep.subr.mxu0 0.0
        %959 = vmatpush1.msra.mxu0 0.0
        %960 = vmatprep.subr.mxu0 0.0
        %961 = vmatpush1.msra.mxu0 0.0
        %962 = vmatprep.subr.mxu0 0.0
        %963 = vmatpush1.msra.mxu0 0.0
        %964 = vmatprep.subr.mxu0 0.0
        %965 = vmatpush1.msra.mxu0 0.0
        %966 = vmatprep.subr.mxu0 0.0
        %967 = vmatpush1.msra.mxu0 0.0
        %968 = vmatprep.subr.mxu0 0.0
        %969 = vmatpush1.msra.mxu0 0.0
        %970 = vmatprep.subr.mxu0 0.0
        %971 = vmatpush1.msra.mxu0 0.0
        %972 = vmatprep.subr.mxu0 0.0
        %973 = vmatpush1.msra.mxu0 0.0
        %974 = vmatprep.subr.mxu0 0.0
        %975 = vmatpush1.msra.mxu0 0.0
        %976 = vmatprep.subr.mxu0 0.0
        %977 = vmatpush1.msra.mxu0 0.0
        %978 = vmatprep.subr.mxu0 0.0
        %979 = vmatpush1.msra.mxu0 0.0
        %980 = vmatprep.subr.mxu0 0.0
        %981 = vmatpush1.msra.mxu0 0.0
        %982 = vmatprep.subr.mxu0 0.0
        %983 = vmatpush1.msra.mxu0 0.0
        %984 = vmatprep.subr.mxu0 0.0
        %985 = vmatpush1.msra.mxu0 0.0
        %986 = vmatprep.subr.mxu0 0.0
        %987 = vmatpush1.msra.mxu0 0.0
        %988 = vmatprep.subr.mxu0 0.0
        %989 = vmatpush1.msra.mxu0 %v956
        %990 = vmatprep.subr.mxu0 0.0
        %991 = vmatpush2.msra.mxu0 0.0
        %992 = vmatprep.subr.mxu0 0.0
        %993 = vmatpush2.msra.mxu0 0.0
        %994 = vmatprep.subr.mxu0 0.0
        %995 = vmatpush2.msra.mxu0 0.0
        %996 = vmatprep.subr.mxu0 0.0
        %997 = vmatpush2.msra.mxu0 0.0
        %998 = vmatprep.subr.mxu0 0.0
        %999 = vmatpush2.msra.mxu0 0.0
        %1000 = vmatprep.subr.mxu0 0.0
        %1001 = vmatpush2.msra.mxu0 0.0
        %1002 = vmatprep.subr.mxu0 0.0
        %1003 = vmatpush2.msra.mxu0 0.0
        %1004 = vmatprep.subr.mxu0 0.0
        %1005 = vmatpush2.msra.mxu0 0.0
        %1006 = vmatprep.subr.mxu0 0.0
        %1007 = vmatpush2.msra.mxu0 0.0
        %1008 = vmatprep.subr.mxu0 0.0
        %1009 = vmatpush2.msra.mxu0 0.0
        %1010 = vmatprep.subr.mxu0 0.0
        %1011 = vmatpush2.msra.mxu0 0.0
        %1012 = vmatprep.subr.mxu0 0.0
        %1013 = vmatpush2.msra.mxu0 0.0
        %1014 = vmatprep.subr.mxu0 0.0
        %1015 = vmatpush2.msra.mxu0 0.0
        %1016 = vmatprep.subr.mxu0 0.0
        %1017 = vmatpush2.msra.mxu0 0.0
        %1018 = vmatprep.subr.mxu0 0.0
        %1019 = vmatpush2.msra.mxu0 0.0
        %1020 = vmatprep.subr.mxu0 0.0
        %1021 = vmatpush2.msra.mxu0 0.0
        %1022 = vmatprep.mubr.f32.mxu0 0.0
        %1023 = vmatmul.mubr.f32.gmra.mxu0 %v952
        %v1024 = vpop.f32.mrf.mxu0
        %v1025 = vadd.f32 0.0, %v1024
        %v1026 = vpop.f32.mrf.mxu0
        %1027 = vdwg.mxu0
        %v1028 = vxor.u32 %v1025, 2147483648
        %v1029 = vmul.f32 %v1028, 1.442695
        %v1030 = vpow.pop %v1029
        %v1031 = vadd.f32 %v1030, 1.0
        %v1032 = vrcp.pop %v1031
        %v1033 = vmul.f32 1.0, %v1032
        %v1035 = vsel %vm950, %v721, 0
        %1037 = vmatprep.subr.mxu0 0.0
        %1038 = vmatpush1.msra.mxu0 0.0
        %1039 = vmatprep.subr.mxu0 0.0
        %1040 = vmatpush1.msra.mxu0 0.0
        %1041 = vmatprep.subr.mxu0 0.0
        %1042 = vmatpush1.msra.mxu0 0.0
        %1043 = vmatprep.subr.mxu0 0.0
        %1044 = vmatpush1.msra.mxu0 0.0
        %1045 = vmatprep.subr.mxu0 0.0
        %1046 = vmatpush1.msra.mxu0 0.0
        %1047 = vmatprep.subr.mxu0 0.0
        %1048 = vmatpush1.msra.mxu0 0.0
        %1049 = vmatprep.subr.mxu0 0.0
        %1050 = vmatpush1.msra.mxu0 0.0
        %1051 = vmatprep.subr.mxu0 0.0
        %1052 = vmatpush1.msra.mxu0 0.0
        %1053 = vmatprep.subr.mxu0 0.0
        %1054 = vmatpush1.msra.mxu0 0.0
        %1055 = vmatprep.subr.mxu0 0.0
        %1056 = vmatpush1.msra.mxu0 0.0
        %1057 = vmatprep.subr.mxu0 0.0
        %1058 = vmatpush1.msra.mxu0 0.0
        %1059 = vmatprep.subr.mxu0 0.0
        %1060 = vmatpush1.msra.mxu0 0.0
        %1061 = vmatprep.subr.mxu0 0.0
        %1062 = vmatpush1.msra.mxu0 0.0
        %1063 = vmatprep.subr.mxu0 0.0
        %1064 = vmatpush1.msra.mxu0 0.0
        %1065 = vmatprep.subr.mxu0 0.0
        %1066 = vmatpush1.msra.mxu0 0.0
        %1067 = vmatprep.subr.mxu0 0.0
        %1068 = vmatpush1.msra.mxu0 %v956
        %1069 = vmatprep.subr.mxu0 0.0
        %1070 = vmatpush2.msra.mxu0 0.0
        %1071 = vmatprep.subr.mxu0 0.0
        %1072 = vmatpush2.msra.mxu0 0.0
        %1073 = vmatprep.subr.mxu0 0.0
        %1074 = vmatpush2.msra.mxu0 0.0
        %1075 = vmatprep.subr.mxu0 0.0
        %1076 = vmatpush2.msra.mxu0 0.0
        %1077 = vmatprep.subr.mxu0 0.0
        %1078 = vmatpush2.msra.mxu0 0.0
        %1079 = vmatprep.subr.mxu0 0.0
        %1080 = vmatpush2.msra.mxu0 0.0
        %1081 = vmatprep.subr.mxu0 0.0
        %1082 = vmatpush2.msra.mxu0 0.0
        %1083 = vmatprep.subr.mxu0 0.0
        %1084 = vmatpush2.msra.mxu0 0.0
        %1085 = vmatprep.subr.mxu0 0.0
        %1086 = vmatpush2.msra.mxu0 0.0
        %1087 = vmatprep.subr.mxu0 0.0
        %1088 = vmatpush2.msra.mxu0 0.0
        %1089 = vmatprep.subr.mxu0 0.0
        %1090 = vmatpush2.msra.mxu0 0.0
        %1091 = vmatprep.subr.mxu0 0.0
        %1092 = vmatpush2.msra.mxu0 0.0
        %1093 = vmatprep.subr.mxu0 0.0
        %1094 = vmatpush2.msra.mxu0 0.0
        %1095 = vmatprep.subr.mxu0 0.0
        %1096 = vmatpush2.msra.mxu0 0.0
        %1097 = vmatprep.subr.mxu0 0.0
        %1098 = vmatpush2.msra.mxu0 0.0
        %1099 = vmatprep.subr.mxu0 0.0
        %1100 = vmatpush2.msra.mxu0 0.0
        %1101 = vmatprep.mubr.f32.mxu0 0.0
        %1102 = vmatmul.mubr.f32.gmra.mxu0 %v1035
        %v1103 = vpop.f32.mrf.mxu0
        %v1104 = vadd.f32 0.0, %v1103
        %v1105 = vpop.f32.mrf.mxu0
        %1106 = vdwg.mxu0
        %v1107 = vxor.u32 %v1104, 2147483648
        %v1108 = vmul.f32 %v1107, 1.442695
        %v1109 = vpow.pop %v1108
        %v1110 = vadd.f32 %v1109, 1.0
        %v1111 = vrcp.pop %v1110
        %v1112 = vmul.f32 1.0, %v1111
        %1114 = vset.pattern.permute.xlu0 0
        %1115 = vperm.xlu0 %1114, %v1033
        %v1116 = vpop.permute.xlu0 %1115
        %v1118 = vmul.f32 %v777, %v1116
        %1120 = vset.pattern.permute.xlu0 0
        %1121 = vperm.xlu0 %1120, %v1112
        %v1122 = vpop.permute.xlu0 %1121
        %v1124 = vmul.f32 %v778, %v1122
        %v1125 = vpack.c.bf16 %v1118, %v1118
        %v1127 = vsel %vm797, %v722, 0
        %vm1129 = vcmask 1043456
        %v1131 = vsel %vm1129, %v1125, 0
        %1133 = vmatprep.subr.bf16.mxu0 0
        %1134 = vmatpush1.bf16.msra.mxu0 0
        %1135 = vmatprep.subr.bf16.mxu0 0
        %1136 = vmatpush1.bf16.msra.mxu0 0
        %1137 = vmatprep.subr.bf16.mxu0 0
        %1138 = vmatpush1.bf16.msra.mxu0 0
        %1139 = vmatprep.subr.bf16.mxu0 0
        %1140 = vmatpush1.bf16.msra.mxu0 0
        %1141 = vmatprep.subr.bf16.mxu0 0
        %1142 = vmatpush1.bf16.msra.mxu0 0
        %1143 = vmatprep.subr.bf16.mxu0 0
        %1144 = vmatpush1.bf16.msra.mxu0 0
        %1145 = vmatprep.subr.bf16.mxu0 0
        %1146 = vmatpush1.bf16.msra.mxu0 0
        %1147 = vmatprep.subr.bf16.mxu0 0
        %1148 = vmatpush1.bf16.msra.mxu0 %v1131
        %1149 = vmatprep.subr.bf16.mxu0 0
        %1150 = vmatpush2.bf16.msra.mxu0 0
        %1151 = vmatprep.subr.bf16.mxu0 0
        %1152 = vmatpush2.bf16.msra.mxu0 0
        %1153 = vmatprep.subr.bf16.mxu0 0
        %1154 = vmatpush2.bf16.msra.mxu0 0
        %1155 = vmatprep.subr.bf16.mxu0 0
        %1156 = vmatpush2.bf16.msra.mxu0 0
        %1157 = vmatprep.subr.bf16.mxu0 0
        %1158 = vmatpush2.bf16.msra.mxu0 0
        %1159 = vmatprep.subr.bf16.mxu0 0
        %1160 = vmatpush2.bf16.msra.mxu0 0
        %1161 = vmatprep.subr.bf16.mxu0 0
        %1162 = vmatpush2.bf16.msra.mxu0 0
        %1163 = vmatprep.subr.bf16.mxu0 0
        %1164 = vmatpush2.bf16.msra.mxu0 0
        %1165 = vmatprep.mubr.bf16.mxu0 0
        %1166 = vmatmul.mubr.bf16.gmra.mxu0 %v1127
        %v1167 = vpop.f32.mrf.mxu0
        %v1168 = vadd.f32 0.0, %v1167
        %v1169 = vpop.f32.mrf.mxu0
        %v1170 = vpop.f32.mrf.mxu0
        %v1171 = vpop.f32.mrf.mxu0
        %1172 = vdwg.mxu0
        %v1173 = vpack.c.bf16 %v1124, %v1124
        %v1175 = vsel %vm797, %v723, 0
        %v1178 = vsel %vm1129, %v1173, 0
        %1180 = vmatprep.subr.bf16.mxu0 0
        %1181 = vmatpush1.bf16.msra.mxu0 0
        %1182 = vmatprep.subr.bf16.mxu0 0
        %1183 = vmatpush1.bf16.msra.mxu0 0
        %1184 = vmatprep.subr.bf16.mxu0 0
        %1185 = vmatpush1.bf16.msra.mxu0 0
        %1186 = vmatprep.subr.bf16.mxu0 0
        %1187 = vmatpush1.bf16.msra.mxu0 0
        %1188 = vmatprep.subr.bf16.mxu0 0
        %1189 = vmatpush1.bf16.msra.mxu0 0
        %1190 = vmatprep.subr.bf16.mxu0 0
        %1191 = vmatpush1.bf16.msra.mxu0 0
        %1192 = vmatprep.subr.bf16.mxu0 0
        %1193 = vmatpush1.bf16.msra.mxu0 0
        %1194 = vmatprep.subr.bf16.mxu0 0
        %1195 = vmatpush1.bf16.msra.mxu0 %v1178
        %1196 = vmatprep.subr.bf16.mxu0 0
        %1197 = vmatpush2.bf16.msra.mxu0 0
        %1198 = vmatprep.subr.bf16.mxu0 0
        %1199 = vmatpush2.bf16.msra.mxu0 0
        %1200 = vmatprep.subr.bf16.mxu0 0
        %1201 = vmatpush2.bf16.msra.mxu0 0
        %1202 = vmatprep.subr.bf16.mxu0 0
        %1203 = vmatpush2.bf16.msra.mxu0 0
        %1204 = vmatprep.subr.bf16.mxu0 0
        %1205 = vmatpush2.bf16.msra.mxu0 0
        %1206 = vmatprep.subr.bf16.mxu0 0
        %1207 = vmatpush2.bf16.msra.mxu0 0
        %1208 = vmatprep.subr.bf16.mxu0 0
        %1209 = vmatpush2.bf16.msra.mxu0 0
        %1210 = vmatprep.subr.bf16.mxu0 0
        %1211 = vmatpush2.bf16.msra.mxu0 0
        %1212 = vmatprep.mubr.bf16.mxu0 0
        %1213 = vmatmul.mubr.bf16.gmra.mxu0 %v1175
        %v1214 = vpop.f32.mrf.mxu0
        %v1215 = vadd.f32 0.0, %v1214
        %v1216 = vpop.f32.mrf.mxu0
        %v1217 = vpop.f32.mrf.mxu0
        %v1218 = vpop.f32.mrf.mxu0
        %1219 = vdwg.mxu0
        %v1220 = vpack.c.bf16 %v777, %v777
        %v1229 = vunpack.c.l.b16 %v710
        %v1230 = vunpack.c.l.b16 %v711
        %v1231 = vunpack.c.l.b16 %v712
        %v1232 = vunpack.c.l.b16 %v713
        %v1233 = vunpack.c.l.b16 %v714
        %v1234 = vunpack.c.l.b16 %v715
        %v1235 = vunpack.c.l.b16 %v716
        %v1236 = vunpack.c.l.b16 %v717
        %v1237 = vpack.c.b16 %v1230, %v1229
        %v1238 = vpack.c.b16 %v1232, %v1231
        %v1239 = vpack.c.b16 %v1234, %v1233
        %v1240 = vpack.c.b16 %v1236, %v1235
        %v1246 = vsel %vm779, %v1220, 0
        %1248 = vmatprep.subr.bf16.mxu0 0
        %1249 = vmatpush1.bf16.msra.mxu0 0
        %1250 = vmatprep.subr.bf16.mxu0 0
        %1251 = vmatpush1.bf16.msra.mxu0 0
        %1252 = vmatprep.subr.bf16.mxu0 0
        %1253 = vmatpush1.bf16.msra.mxu0 0
        %1254 = vmatprep.subr.bf16.mxu0 0
        %1255 = vmatpush1.bf16.msra.mxu0 0
        %1256 = vmatprep.subr.bf16.mxu0 0
        %1257 = vmatpush1.bf16.msra.mxu0 %v1240
        %1258 = vmatprep.subr.bf16.mxu0 0
        %1259 = vmatpush1.bf16.msra.mxu0 %v1239
        %1260 = vmatprep.subr.bf16.mxu0 0
        %1261 = vmatpush1.bf16.msra.mxu0 %v1238
        %1262 = vmatprep.subr.bf16.mxu0 0
        %1263 = vmatpush1.bf16.msra.mxu0 %v1237
        %1264 = vmatprep.subr.bf16.mxu0 0
        %1265 = vmatpush2.bf16.msra.mxu0 0
        %1266 = vmatprep.subr.bf16.mxu0 0
        %1267 = vmatpush2.bf16.msra.mxu0 0
        %1268 = vmatprep.subr.bf16.mxu0 0
        %1269 = vmatpush2.bf16.msra.mxu0 0
        %1270 = vmatprep.subr.bf16.mxu0 0
        %1271 = vmatpush2.bf16.msra.mxu0 0
        %1272 = vmatprep.subr.bf16.mxu0 0
        %1273 = vmatpush2.bf16.msra.mxu0 0
        %1274 = vmatprep.subr.bf16.mxu0 0
        %1275 = vmatpush2.bf16.msra.mxu0 0
        %1276 = vmatprep.subr.bf16.mxu0 0
        %1277 = vmatpush2.bf16.msra.mxu0 0
        %1278 = vmatprep.subr.bf16.mxu0 0
        %1279 = vmatpush2.bf16.msra.mxu0 0
        %1280 = vmatprep.mubr.bf16.mxu0 0
        %1281 = vmatmul.mubr.bf16.gmra.mxu0 %v1246
        %v1282 = vpop.f32.mrf.mxu0
        %v1283 = vadd.f32 0.0, %v1282
        %v1284 = vpop.f32.mrf.mxu0
        %v1285 = vpop.f32.mrf.mxu0
        %v1286 = vpop.f32.mrf.mxu0
        %1287 = vdwg.mxu0
        %v1288 = vpack.c.bf16 %v1168, %v1168
        %v1289 = vsel %vm779, %v1118, 0.0
        %v1290 = vrot.slane %v1289, 4
        %v1291 = vadd.f32 %v1289, %v1290
        %v1292 = vrot.slane %v1291, 2
        %v1293 = vadd.f32 %v1291, %v1292
        %v1294 = vrot.slane %v1293, 1
        %v1295 = vadd.f32 %v1293, %v1294
        %v1296 = vsel %vm779, %v1118, -inf
        %v1297 = vrot.slane %v1296, 4
        %v1298 = vmax.f32 %v1296, %v1297
        %v1299 = vrot.slane %v1298, 2
        %v1300 = vmax.f32 %v1298, %v1299
        %v1301 = vrot.slane %v1300, 1
        %v1302 = vmax.f32 %v1300, %v1301
        %vm1303 = vcmask 1040384
        %v1304 = vsel %vm1303, %v1295, %v1302
        %v1305 = vpack.c.bf16 %v1304, %v1304
        %v1307 = vsel %vm779, %v1305, 0
        %1309 = vmatprep.subr.bf16.mxu0 0
        %1310 = vmatpush1.bf16.msra.mxu0 0
        %1311 = vmatprep.subr.bf16.mxu0 0
        %1312 = vmatpush1.bf16.msra.mxu0 0
        %1313 = vmatprep.subr.bf16.mxu0 0
        %1314 = vmatpush1.bf16.msra.mxu0 0
        %1315 = vmatprep.subr.bf16.mxu0 0
        %1316 = vmatpush1.bf16.msra.mxu0 0
        %1317 = vmatprep.subr.bf16.mxu0 0
        %1318 = vmatpush1.bf16.msra.mxu0 %v1240
        %1319 = vmatprep.subr.bf16.mxu0 0
        %1320 = vmatpush1.bf16.msra.mxu0 %v1239
        %1321 = vmatprep.subr.bf16.mxu0 0
        %1322 = vmatpush1.bf16.msra.mxu0 %v1238
        %1323 = vmatprep.subr.bf16.mxu0 0
        %1324 = vmatpush1.bf16.msra.mxu0 %v1237
        %1325 = vmatprep.subr.bf16.mxu0 0
        %1326 = vmatpush2.bf16.msra.mxu0 0
        %1327 = vmatprep.subr.bf16.mxu0 0
        %1328 = vmatpush2.bf16.msra.mxu0 0
        %1329 = vmatprep.subr.bf16.mxu0 0
        %1330 = vmatpush2.bf16.msra.mxu0 0
        %1331 = vmatprep.subr.bf16.mxu0 0
        %1332 = vmatpush2.bf16.msra.mxu0 0
        %1333 = vmatprep.subr.bf16.mxu0 0
        %1334 = vmatpush2.bf16.msra.mxu0 0
        %1335 = vmatprep.subr.bf16.mxu0 0
        %1336 = vmatpush2.bf16.msra.mxu0 0
        %1337 = vmatprep.subr.bf16.mxu0 0
        %1338 = vmatpush2.bf16.msra.mxu0 0
        %1339 = vmatprep.subr.bf16.mxu0 0
        %1340 = vmatpush2.bf16.msra.mxu0 0
        %1341 = vmatprep.mubr.bf16.mxu0 0
        %1342 = vmatmul.mubr.bf16.gmra.mxu0 %v1307
        %v1343 = vpop.f32.mrf.mxu0
        %v1344 = vadd.f32 0.0, %v1343
        %v1345 = vpop.f32.mrf.mxu0
        %v1346 = vpop.f32.mrf.mxu0
        %v1347 = vpop.f32.mrf.mxu0
        %1348 = vdwg.mxu0
        %v1349 = vrot.slane %v1124, 4
        %v1350 = vadd.f32 %v1124, %v1349
        %v1351 = vrot.slane %v1350, 2
        %v1352 = vadd.f32 %v1350, %v1351
        %v1353 = vrot.slane %v1352, 1
        %v1354 = vadd.f32 %v1352, %v1353
        %v1355 = vadd.f32 %v1344, %v1354
        %v1356 = vmul.f32 %v1355, 0.0625
        %v1357 = vrot.slane %v1124, 4
        %v1358 = vmax.f32 %v1124, %v1357
        %v1359 = vrot.slane %v1358, 2
        %v1360 = vmax.f32 %v1358, %v1359
        %v1361 = vrot.slane %v1360, 1
        %v1362 = vmax.f32 %v1360, %v1361
        %v1363 = vmax.f32 %v1344, %v1362
        %1365 = vrot.lane.b32.xlu0 %v1356, 1
        %v1366 = vpop.permute.xlu0 %1365
        %v1368 = vsel %vm788, 0.0, %v1366
        %1369 = vrot.lane.b32.xlu0 %v1356, 127
        %v1370 = vpop.permute.xlu0 %1369
        %vm1372 = vcmask 1039360
        %v1373 = vsel %vm1372, %v1370, 0.0
        %s1374 = smul.u32 %s49, 128
        %s1375 = sld [smem:[#allocation4 + %s1374]]
        %v1376 = vstv %s1375
        %v1377 = vmul.f32 %v1376, %v1368
        %s1378 = sadd.s32 %s1374, 1
        %s1379 = sld [smem:[#allocation4 + %s1378]]
        %v1380 = vstv %s1379
        %v1381 = vmul.f32 %v1380, %v1356
        %v1382 = vadd.f32 %v1377, %v1381
        %s1383 = sadd.s32 %s1374, 2
        %s1384 = sld [smem:[#allocation4 + %s1383]]
        %v1385 = vstv %s1384
        %v1386 = vmul.f32 %v1385, %v1373
        %v1387 = vadd.f32 %v1382, %v1386
        %v1389 = vrot.slane %v1363, 1
        %1390 = vrot.lane.b32.xlu0 %v1389, 1
        %v1391 = vpop.permute.xlu0 %1390
        %v1393 = vsel %vm788, 0.0, %v1391
        %1394 = vrot.lane.b32.xlu0 %v1363, 127
        %v1395 = vpop.permute.xlu0 %1394
        %v1397 = vsel %vm1372, %v1395, 0.0
        %s1398 = sadd.s32 %s1374, 3
        %s1399 = sld [smem:[#allocation4 + %s1398]]
        %v1400 = vstv %s1399
        %v1401 = vmul.f32 %v1400, %v1393
        %s1402 = sadd.s32 %s1374, 4
        %s1403 = sld [smem:[#allocation4 + %s1402]]
        %v1404 = vstv %s1403
        %v1405 = vmul.f32 %v1404, %v1363
        %v1407 = vrot.slane %v1405, 1
        %v1409 = vadd.f32 %v1401, %v1407
        %s1410 = sadd.s32 %s1374, 5
        %s1411 = sld [smem:[#allocation4 + %s1410]]
        %v1412 = vstv %s1411
        %v1413 = vmul.f32 %v1412, %v1397
        %v1415 = vrot.slane %v1413, 1
        %v1417 = vadd.f32 %v1409, %v1415
        %v1418 = vadd.f32 %v1387, %v1417
        %v1419 = vxor.u32 %v1418, 2147483648
        %v1420 = vmul.f32 %v1419, 1.442695
        %v1421 = vpow.pop %v1420
        %v1422 = vadd.f32 %v1421, 1.0
        %v1423 = vrcp.pop %v1422
        %v1424 = vmul.f32 1.0, %v1423
        %v1426 = vsel %vm779, %v1288, 0
        %1428 = vmatprep.subr.bf16.mxu0 0
        %1429 = vmatpush1.bf16.msra.mxu0 0
        %1430 = vmatprep.subr.bf16.mxu0 0
        %1431 = vmatpush1.bf16.msra.mxu0 0
        %1432 = vmatprep.subr.bf16.mxu0 0
        %1433 = vmatpush1.bf16.msra.mxu0 0
        %1434 = vmatprep.subr.bf16.mxu0 0
        %1435 = vmatpush1.bf16.msra.mxu0 0
        %1436 = vmatprep.subr.bf16.mxu0 0
        %1437 = vmatpush1.bf16.msra.mxu0 %v1240
        %1438 = vmatprep.subr.bf16.mxu0 0
        %1439 = vmatpush1.bf16.msra.mxu0 %v1239
        %1440 = vmatprep.subr.bf16.mxu0 0
        %1441 = vmatpush1.bf16.msra.mxu0 %v1238
        %1442 = vmatprep.subr.bf16.mxu0 0
        %1443 = vmatpush1.bf16.msra.mxu0 %v1237
        %1444 = vmatprep.subr.bf16.mxu0 0
        %1445 = vmatpush2.bf16.msra.mxu0 0
        %1446 = vmatprep.subr.bf16.mxu0 0
        %1447 = vmatpush2.bf16.msra.mxu0 0
        %1448 = vmatprep.subr.bf16.mxu0 0
        %1449 = vmatpush2.bf16.msra.mxu0 0
        %1450 = vmatprep.subr.bf16.mxu0 0
        %1451 = vmatpush2.bf16.msra.mxu0 0
        %1452 = vmatprep.subr.bf16.mxu0 0
        %1453 = vmatpush2.bf16.msra.mxu0 0
        %1454 = vmatprep.subr.bf16.mxu0 0
        %1455 = vmatpush2.bf16.msra.mxu0 0
        %1456 = vmatprep.subr.bf16.mxu0 0
        %1457 = vmatpush2.bf16.msra.mxu0 0
        %1458 = vmatprep.subr.bf16.mxu0 0
        %1459 = vmatpush2.bf16.msra.mxu0 0
        %1460 = vmatprep.mubr.bf16.mxu0 0
        %1461 = vmatmul.mubr.bf16.gmra.mxu0 %v1426
        %v1462 = vpop.f32.mrf.mxu0
        %v1463 = vadd.f32 %v1215, %v1462
        %v1464 = vpop.f32.mrf.mxu0
        %v1465 = vpop.f32.mrf.mxu0
        %v1466 = vpop.f32.mrf.mxu0
        %1467 = vdwg.mxu0
        %v1468 = vlaneseq
        %v1469 = vshrl.u32 %v1468, 7
        %v1470 = vsub.s32 0, %v1469
        %v1471 = vrot.slane %v1424, %v1470
        %v1472 = vmul.f32 %v1463, %v1471
        %1474 = vset.pattern.permute.xlu0 0
        %1475 = vperm.xlu0 %1474, %v724
        %v1476 = vpop.permute.xlu0 %1475
        %v1478 = vadd.f32 %v1472, %v1476
        %1479 = vadd.xlane.f32.xlu0 %v1478
        %v1480 = vpop.xlane.xlu0 %1479
        %v1481 = vmul.f32 %v1480, %v792
        %v1482 = vrot.slane %v1481, 4
        %v1483 = vadd.f32 %v1481, %v1482
        %v1484 = vrot.slane %v1483, 2
        %v1485 = vadd.f32 %v1483, %v1484
        %v1486 = vrot.slane %v1485, 1
        %v1487 = vadd.f32 %v1485, %v1486
        %v1488 = vrcp.pop 8.0
        %v1489 = vmul.f32 %v1487, %v1488
        %v1490 = vsub.f32 %v1478, %v1489
        %v1491 = vmul.f32 %v1490, %v1490
        %1492 = vadd.xlane.f32.xlu0 %v1491
        %v1493 = vpop.xlane.xlu0 %1492
        %v1494 = vmul.f32 %v1493, %v792
        %v1495 = vrot.slane %v1494, 4
        %v1496 = vadd.f32 %v1494, %v1495
        %v1497 = vrot.slane %v1496, 2
        %v1498 = vadd.f32 %v1496, %v1497
        %v1499 = vrot.slane %v1498, 1
        %v1500 = vadd.f32 %v1498, %v1499
        %v1501 = vmul.f32 %v1500, %v1488
        %v1502 = vadd.f32 %v1501, 1e-05
        %v1503 = vrsqrt.pop %v1502
        %v1504 = vmul.f32 %v1490, %v1503
        %v1505 = vmul.f32 %v1504, %v726
        %v1506 = vadd.f32 %v1505, %v728
        %v1507 = vadd.f32 %v1506, %v1283
        %v1508 = vadd.f32 %v1507, %v778
        %1509 = vst [vmem:[%s672] sm:$0xff] %v1508
        %s1510 = sadd.s32 %s729, 1
        %s1511 = sadd.s32 %s1510, %s730
        %s1512 = smul.u32 %s1511, 128
        %s1513 = sld [smem:[#allocation3 + %s1512]]
        %s1514 = scalar_lea.vmem %s557, 24 [#allocation5]
        %v1515 = vld [vmem:[%s1514] sm:$0xf]
        %v1516 = vunpack.c.l.bf16 %v1515
        %v1517 = vstv %s1513
        %v1518 = vmul.f32 %v1517, %v1516
        %s1519 = sadd.s32 %s1512, 1
        %s1520 = sld [smem:[#allocation3 + %s1519]]
        %s1521 = scalar_lea.vmem %s557, 28 [#allocation5]
        %v1522 = vld [vmem:[%s1521] sm:$0xf]
        %v1523 = vunpack.c.l.bf16 %v1522
        %v1524 = vstv %s1520
        %v1525 = vmul.f32 %v1524, %v1523
        %v1526 = vadd.f32 %v1518, %v1525
        %s1527 = sadd.s32 %s1512, 2
        %s1528 = sld [smem:[#allocation3 + %s1527]]
        %s1529 = scalar_lea.vmem %s557, 32 [#allocation5]
        %v1530 = vld [vmem:[%s1529] sm:$0xf]
        %v1531 = vunpack.c.l.bf16 %v1530
        %v1532 = vstv %s1528
        %v1533 = vmul.f32 %v1532, %v1531
        %v1534 = vadd.f32 %v1526, %v1533
        %s1535 = sadd.s32 %s1512, 3
        %s1536 = sld [smem:[#allocation3 + %s1535]]
        %s1537 = scalar_lea.vmem %s557, 36 [#allocation5]
        %v1538 = vld [vmem:[%s1537] sm:$0xf]
        %v1539 = vunpack.c.l.bf16 %v1538
        %v1540 = vstv %s1536
        %v1541 = vmul.f32 %v1540, %v1539
        %v1542 = vadd.f32 %v1534, %v1541
        %s1543 = sadd.s32 %s1512, 4
        %s1544 = sld [smem:[#allocation3 + %s1543]]
        %s1545 = scalar_lea.vmem %s557, 40 [#allocation5]
        %v1546 = vld [vmem:[%s1545] sm:$0xf]
        %v1547 = vunpack.c.l.bf16 %v1546
        %v1548 = vstv %s1544
        %v1549 = vmul.f32 %v1548, %v1547
        %v1550 = vadd.f32 %v1542, %v1549
        %s1551 = sadd.s32 %s1512, 5
        %s1552 = sld [smem:[#allocation3 + %s1551]]
        %s1553 = scalar_lea.vmem %s557, 44 [#allocation5]
        %v1554 = vld [vmem:[%s1553] sm:$0xf]
        %v1555 = vunpack.c.l.bf16 %v1554
        %v1556 = vstv %s1552
        %v1557 = vmul.f32 %v1556, %v1555
        %v1558 = vadd.f32 %v1550, %v1557
        %s1559 = scalar_lea.vmem %s682, 8
        %v1560 = vld [vmem:[%s1559] sm:$0xff]
        %v1561 = vsel %vm779, %v1558, 0.0
        %1562 = vadd.xlane.f32.xlu0 %v1561
        %v1563 = vpop.xlane.xlu0 %1562
        %v1564 = vmul.f32 %v1563, %v783
        %v1565 = vsel %vm779, %v1558, -inf
        %1566 = vmax.xlane.f32.xlu0 %v1565
        %v1567 = vpop.xlane.xlu0 %1566
        %v1568 = vsel %vm788, %v1564, %v1567
        %1569 = vadd.xlane.f32.xlu0 %v1560
        %v1570 = vpop.xlane.xlu0 %1569
        %v1571 = vmul.f32 %v1570, %v792
        %1572 = vmax.xlane.f32.xlu0 %v1560
        %v1573 = vpop.xlane.xlu0 %1572
        %v1574 = vsel %vm788, %v1571, %v1573
        %1575 = vmatprep.subr.mxu0 0.0
        %1576 = vmatpush1.msra.mxu0 0.0
        %1577 = vmatprep.subr.mxu0 0.0
        %1578 = vmatpush1.msra.mxu0 0.0
        %1579 = vmatprep.subr.mxu0 0.0
        %1580 = vmatpush1.msra.mxu0 0.0
        %1581 = vmatprep.subr.mxu0 0.0
        %1582 = vmatpush1.msra.mxu0 0.0
        %1583 = vmatprep.subr.mxu0 0.0
        %1584 = vmatpush1.msra.mxu0 0.0
        %1585 = vmatprep.subr.mxu0 0.0
        %1586 = vmatpush1.msra.mxu0 0.0
        %1587 = vmatprep.subr.mxu0 0.0
        %1588 = vmatpush1.msra.mxu0 0.0
        %1589 = vmatprep.subr.mxu0 0.0
        %1590 = vmatpush1.msra.mxu0 0.0
        %1591 = vmatprep.subr.mxu0 0.0
        %1592 = vmatpush1.msra.mxu0 0.0
        %1593 = vmatprep.subr.mxu0 0.0
        %1594 = vmatpush1.msra.mxu0 0.0
        %1595 = vmatprep.subr.mxu0 0.0
        %1596 = vmatpush1.msra.mxu0 0.0
        %1597 = vmatprep.subr.mxu0 0.0
        %1598 = vmatpush1.msra.mxu0 0.0
        %1599 = vmatprep.subr.mxu0 0.0
        %1600 = vmatpush1.msra.mxu0 0.0
        %1601 = vmatprep.subr.mxu0 0.0
        %1602 = vmatpush1.msra.mxu0 0.0
        %1603 = vmatprep.subr.mxu0 0.0
        %1604 = vmatpush1.msra.mxu0 0.0
        %1605 = vmatprep.subr.mxu0 0.0
        %1606 = vmatpush1.msra.mxu0 %v1574
        %1607 = vmatprep.subr.mxu0 0.0
        %1608 = vmatpush2.msra.mxu0 0.0
        %1609 = vmatprep.subr.mxu0 0.0
        %1610 = vmatpush2.msra.mxu0 0.0
        %1611 = vmatprep.subr.mxu0 0.0
        %1612 = vmatpush2.msra.mxu0 0.0
        %1613 = vmatprep.subr.mxu0 0.0
        %1614 = vmatpush2.msra.mxu0 0.0
        %1615 = vmatprep.subr.mxu0 0.0
        %1616 = vmatpush2.msra.mxu0 0.0
        %1617 = vmatprep.subr.mxu0 0.0
        %1618 = vmatpush2.msra.mxu0 0.0
        %1619 = vmatprep.subr.mxu0 0.0
        %1620 = vmatpush2.msra.mxu0 0.0
        %1621 = vmatprep.subr.mxu0 0.0
        %1622 = vmatpush2.msra.mxu0 0.0
        %1623 = vmatprep.subr.mxu0 0.0
        %1624 = vmatpush2.msra.mxu0 0.0
        %1625 = vmatprep.subr.mxu0 0.0
        %1626 = vmatpush2.msra.mxu0 0.0
        %1627 = vmatprep.subr.mxu0 0.0
        %1628 = vmatpush2.msra.mxu0 0.0
        %1629 = vmatprep.subr.mxu0 0.0
        %1630 = vmatpush2.msra.mxu0 0.0
        %1631 = vmatprep.subr.mxu0 0.0
        %1632 = vmatpush2.msra.mxu0 0.0
        %1633 = vmatprep.subr.mxu0 0.0
        %1634 = vmatpush2.msra.mxu0 0.0
        %1635 = vmatprep.subr.mxu0 0.0
        %1636 = vmatpush2.msra.mxu0 0.0
        %1637 = vmatprep.subr.mxu0 0.0
        %1638 = vmatpush2.msra.mxu0 0.0
        %1639 = vmatprep.mubr.f32.mxu0 0.0
        %1640 = vmatmul.mubr.f32.gmra.mxu0 %v799
        %v1641 = vpop.f32.mrf.mxu0
        %v1642 = vadd.f32 0.0, %v1641
        %v1643 = vpop.f32.mrf.mxu0
        %1644 = vdwg.mxu0
        %1645 = vmatprep.subr.mxu0 0.0
        %1646 = vmatpush1.msra.mxu0 0.0
        %1647 = vmatprep.subr.mxu0 0.0
        %1648 = vmatpush1.msra.mxu0 0.0
        %1649 = vmatprep.subr.mxu0 0.0
        %1650 = vmatpush1.msra.mxu0 0.0
        %1651 = vmatprep.subr.mxu0 0.0
        %1652 = vmatpush1.msra.mxu0 0.0
        %1653 = vmatprep.subr.mxu0 0.0
        %1654 = vmatpush1.msra.mxu0 0.0
        %1655 = vmatprep.subr.mxu0 0.0
        %1656 = vmatpush1.msra.mxu0 0.0
        %1657 = vmatprep.subr.mxu0 0.0
        %1658 = vmatpush1.msra.mxu0 0.0
        %1659 = vmatprep.subr.mxu0 0.0
        %1660 = vmatpush1.msra.mxu0 0.0
        %1661 = vmatprep.subr.mxu0 0.0
        %1662 = vmatpush1.msra.mxu0 0.0
        %1663 = vmatprep.subr.mxu0 0.0
        %1664 = vmatpush1.msra.mxu0 0.0
        %1665 = vmatprep.subr.mxu0 0.0
        %1666 = vmatpush1.msra.mxu0 0.0
        %1667 = vmatprep.subr.mxu0 0.0
        %1668 = vmatpush1.msra.mxu0 0.0
        %1669 = vmatprep.subr.mxu0 0.0
        %1670 = vmatpush1.msra.mxu0 0.0
        %1671 = vmatprep.subr.mxu0 0.0
        %1672 = vmatpush1.msra.mxu0 0.0
        %1673 = vmatprep.subr.mxu0 0.0
        %1674 = vmatpush1.msra.mxu0 0.0
        %1675 = vmatprep.subr.mxu0 0.0
        %1676 = vmatpush1.msra.mxu0 %v1568
        %1677 = vmatprep.subr.mxu0 0.0
        %1678 = vmatpush2.msra.mxu0 0.0
        %1679 = vmatprep.subr.mxu0 0.0
        %1680 = vmatpush2.msra.mxu0 0.0
        %1681 = vmatprep.subr.mxu0 0.0
        %1682 = vmatpush2.msra.mxu0 0.0
        %1683 = vmatprep.subr.mxu0 0.0
        %1684 = vmatpush2.msra.mxu0 0.0
        %1685 = vmatprep.subr.mxu0 0.0
        %1686 = vmatpush2.msra.mxu0 0.0
        %1687 = vmatprep.subr.mxu0 0.0
        %1688 = vmatpush2.msra.mxu0 0.0
        %1689 = vmatprep.subr.mxu0 0.0
        %1690 = vmatpush2.msra.mxu0 0.0
        %1691 = vmatprep.subr.mxu0 0.0
        %1692 = vmatpush2.msra.mxu0 0.0
        %1693 = vmatprep.subr.mxu0 0.0
        %1694 = vmatpush2.msra.mxu0 0.0
        %1695 = vmatprep.subr.mxu0 0.0
        %1696 = vmatpush2.msra.mxu0 0.0
        %1697 = vmatprep.subr.mxu0 0.0
        %1698 = vmatpush2.msra.mxu0 0.0
        %1699 = vmatprep.subr.mxu0 0.0
        %1700 = vmatpush2.msra.mxu0 0.0
        %1701 = vmatprep.subr.mxu0 0.0
        %1702 = vmatpush2.msra.mxu0 0.0
        %1703 = vmatprep.subr.mxu0 0.0
        %1704 = vmatpush2.msra.mxu0 0.0
        %1705 = vmatprep.subr.mxu0 0.0
        %1706 = vmatpush2.msra.mxu0 0.0
        %1707 = vmatprep.subr.mxu0 0.0
        %1708 = vmatpush2.msra.mxu0 0.0
        %1709 = vmatprep.mubr.f32.mxu0 0.0
        %1710 = vmatmul.mubr.f32.gmra.mxu0 %v872
        %v1711 = vpop.f32.mrf.mxu0
        %v1712 = vadd.f32 %v1642, %v1711
        %v1713 = vpop.f32.mrf.mxu0
        %1714 = vdwg.mxu0
        %v1715 = vmax.f32 %v1712, 0.0
        %1717 = vrot.lane.b32.xlu0 %v1715, 127
        %v1718 = vpop.permute.xlu0 %1717
        %v1720 = vadd.f32 %v1715, %v1718
        %v1722 = vsel %vm954, %v1720, 0
        %1724 = vmatprep.subr.mxu0 0.0
        %1725 = vmatpush1.msra.mxu0 0.0
        %1726 = vmatprep.subr.mxu0 0.0
        %1727 = vmatpush1.msra.mxu0 0.0
        %1728 = vmatprep.subr.mxu0 0.0
        %1729 = vmatpush1.msra.mxu0 0.0
        %1730 = vmatprep.subr.mxu0 0.0
        %1731 = vmatpush1.msra.mxu0 0.0
        %1732 = vmatprep.subr.mxu0 0.0
        %1733 = vmatpush1.msra.mxu0 0.0
        %1734 = vmatprep.subr.mxu0 0.0
        %1735 = vmatpush1.msra.mxu0 0.0
        %1736 = vmatprep.subr.mxu0 0.0
        %1737 = vmatpush1.msra.mxu0 0.0
        %1738 = vmatprep.subr.mxu0 0.0
        %1739 = vmatpush1.msra.mxu0 0.0
        %1740 = vmatprep.subr.mxu0 0.0
        %1741 = vmatpush1.msra.mxu0 0.0
        %1742 = vmatprep.subr.mxu0 0.0
        %1743 = vmatpush1.msra.mxu0 0.0
        %1744 = vmatprep.subr.mxu0 0.0
        %1745 = vmatpush1.msra.mxu0 0.0
        %1746 = vmatprep.subr.mxu0 0.0
        %1747 = vmatpush1.msra.mxu0 0.0
        %1748 = vmatprep.subr.mxu0 0.0
        %1749 = vmatpush1.msra.mxu0 0.0
        %1750 = vmatprep.subr.mxu0 0.0
        %1751 = vmatpush1.msra.mxu0 0.0
        %1752 = vmatprep.subr.mxu0 0.0
        %1753 = vmatpush1.msra.mxu0 0.0
        %1754 = vmatprep.subr.mxu0 0.0
        %1755 = vmatpush1.msra.mxu0 %v1722
        %1756 = vmatprep.subr.mxu0 0.0
        %1757 = vmatpush2.msra.mxu0 0.0
        %1758 = vmatprep.subr.mxu0 0.0
        %1759 = vmatpush2.msra.mxu0 0.0
        %1760 = vmatprep.subr.mxu0 0.0
        %1761 = vmatpush2.msra.mxu0 0.0
        %1762 = vmatprep.subr.mxu0 0.0
        %1763 = vmatpush2.msra.mxu0 0.0
        %1764 = vmatprep.subr.mxu0 0.0
        %1765 = vmatpush2.msra.mxu0 0.0
        %1766 = vmatprep.subr.mxu0 0.0
        %1767 = vmatpush2.msra.mxu0 0.0
        %1768 = vmatprep.subr.mxu0 0.0
        %1769 = vmatpush2.msra.mxu0 0.0
        %1770 = vmatprep.subr.mxu0 0.0
        %1771 = vmatpush2.msra.mxu0 0.0
        %1772 = vmatprep.subr.mxu0 0.0
        %1773 = vmatpush2.msra.mxu0 0.0
        %1774 = vmatprep.subr.mxu0 0.0
        %1775 = vmatpush2.msra.mxu0 0.0
        %1776 = vmatprep.subr.mxu0 0.0
        %1777 = vmatpush2.msra.mxu0 0.0
        %1778 = vmatprep.subr.mxu0 0.0
        %1779 = vmatpush2.msra.mxu0 0.0
        %1780 = vmatprep.subr.mxu0 0.0
        %1781 = vmatpush2.msra.mxu0 0.0
        %1782 = vmatprep.subr.mxu0 0.0
        %1783 = vmatpush2.msra.mxu0 0.0
        %1784 = vmatprep.subr.mxu0 0.0
        %1785 = vmatpush2.msra.mxu0 0.0
        %1786 = vmatprep.subr.mxu0 0.0
        %1787 = vmatpush2.msra.mxu0 0.0
        %1788 = vmatprep.mubr.f32.mxu0 0.0
        %1789 = vmatmul.mubr.f32.gmra.mxu0 %v952
        %v1790 = vpop.f32.mrf.mxu0
        %v1791 = vadd.f32 0.0, %v1790
        %v1792 = vpop.f32.mrf.mxu0
        %1793 = vdwg.mxu0
        %v1794 = vxor.u32 %v1791, 2147483648
        %v1795 = vmul.f32 %v1794, 1.442695
        %v1796 = vpow.pop %v1795
        %v1797 = vadd.f32 %v1796, 1.0
        %v1798 = vrcp.pop %v1797
        %v1799 = vmul.f32 1.0, %v1798
        %1800 = vmatprep.subr.mxu0 0.0
        %1801 = vmatpush1.msra.mxu0 0.0
        %1802 = vmatprep.subr.mxu0 0.0
        %1803 = vmatpush1.msra.mxu0 0.0
        %1804 = vmatprep.subr.mxu0 0.0
        %1805 = vmatpush1.msra.mxu0 0.0
        %1806 = vmatprep.subr.mxu0 0.0
        %1807 = vmatpush1.msra.mxu0 0.0
        %1808 = vmatprep.subr.mxu0 0.0
        %1809 = vmatpush1.msra.mxu0 0.0
        %1810 = vmatprep.subr.mxu0 0.0
        %1811 = vmatpush1.msra.mxu0 0.0
        %1812 = vmatprep.subr.mxu0 0.0
        %1813 = vmatpush1.msra.mxu0 0.0
        %1814 = vmatprep.subr.mxu0 0.0
        %1815 = vmatpush1.msra.mxu0 0.0
        %1816 = vmatprep.subr.mxu0 0.0
        %1817 = vmatpush1.msra.mxu0 0.0
        %1818 = vmatprep.subr.mxu0 0.0
        %1819 = vmatpush1.msra.mxu0 0.0
        %1820 = vmatprep.subr.mxu0 0.0
        %1821 = vmatpush1.msra.mxu0 0.0
        %1822 = vmatprep.subr.mxu0 0.0
        %1823 = vmatpush1.msra.mxu0 0.0
        %1824 = vmatprep.subr.mxu0 0.0
        %1825 = vmatpush1.msra.mxu0 0.0
        %1826 = vmatprep.subr.mxu0 0.0
        %1827 = vmatpush1.msra.mxu0 0.0
        %1828 = vmatprep.subr.mxu0 0.0
        %1829 = vmatpush1.msra.mxu0 0.0
        %1830 = vmatprep.subr.mxu0 0.0
        %1831 = vmatpush1.msra.mxu0 %v1722
        %1832 = vmatprep.subr.mxu0 0.0
        %1833 = vmatpush2.msra.mxu0 0.0
        %1834 = vmatprep.subr.mxu0 0.0
        %1835 = vmatpush2.msra.mxu0 0.0
        %1836 = vmatprep.subr.mxu0 0.0
        %1837 = vmatpush2.msra.mxu0 0.0
        %1838 = vmatprep.subr.mxu0 0.0
        %1839 = vmatpush2.msra.mxu0 0.0
        %1840 = vmatprep.subr.mxu0 0.0
        %1841 = vmatpush2.msra.mxu0 0.0
        %1842 = vmatprep.subr.mxu0 0.0
        %1843 = vmatpush2.msra.mxu0 0.0
        %1844 = vmatprep.subr.mxu0 0.0
        %1845 = vmatpush2.msra.mxu0 0.0
        %1846 = vmatprep.subr.mxu0 0.0
        %1847 = vmatpush2.msra.mxu0 0.0
        %1848 = vmatprep.subr.mxu0 0.0
        %1849 = vmatpush2.msra.mxu0 0.0
        %1850 = vmatprep.subr.mxu0 0.0
        %1851 = vmatpush2.msra.mxu0 0.0
        %1852 = vmatprep.subr.mxu0 0.0
        %1853 = vmatpush2.msra.mxu0 0.0
        %1854 = vmatprep.subr.mxu0 0.0
        %1855 = vmatpush2.msra.mxu0 0.0
        %1856 = vmatprep.subr.mxu0 0.0
        %1857 = vmatpush2.msra.mxu0 0.0
        %1858 = vmatprep.subr.mxu0 0.0
        %1859 = vmatpush2.msra.mxu0 0.0
        %1860 = vmatprep.subr.mxu0 0.0
        %1861 = vmatpush2.msra.mxu0 0.0
        %1862 = vmatprep.subr.mxu0 0.0
        %1863 = vmatpush2.msra.mxu0 0.0
        %1864 = vmatprep.mubr.f32.mxu0 0.0
        %1865 = vmatmul.mubr.f32.gmra.mxu0 %v1035
        %v1866 = vpop.f32.mrf.mxu0
        %v1867 = vadd.f32 0.0, %v1866
        %v1868 = vpop.f32.mrf.mxu0
        %1869 = vdwg.mxu0
        %v1870 = vxor.u32 %v1867, 2147483648
        %v1871 = vmul.f32 %v1870, 1.442695
        %v1872 = vpow.pop %v1871
        %v1873 = vadd.f32 %v1872, 1.0
        %v1874 = vrcp.pop %v1873
        %v1875 = vmul.f32 1.0, %v1874
        %1877 = vset.pattern.permute.xlu0 0
        %1878 = vperm.xlu0 %1877, %v1799
        %v1879 = vpop.permute.xlu0 %1878
        %v1881 = vmul.f32 %v1558, %v1879
        %1883 = vset.pattern.permute.xlu0 0
        %1884 = vperm.xlu0 %1883, %v1875
        %v1885 = vpop.permute.xlu0 %1884
        %v1887 = vmul.f32 %v1560, %v1885
        %v1888 = vpack.c.bf16 %v1881, %v1881
        %v1890 = vsel %vm1129, %v1888, 0
        %1892 = vmatprep.subr.bf16.mxu0 0
        %1893 = vmatpush1.bf16.msra.mxu0 0
        %1894 = vmatprep.subr.bf16.mxu0 0
        %1895 = vmatpush1.bf16.msra.mxu0 0
        %1896 = vmatprep.subr.bf16.mxu0 0
        %1897 = vmatpush1.bf16.msra.mxu0 0
        %1898 = vmatprep.subr.bf16.mxu0 0
        %1899 = vmatpush1.bf16.msra.mxu0 0
        %1900 = vmatprep.subr.bf16.mxu0 0
        %1901 = vmatpush1.bf16.msra.mxu0 0
        %1902 = vmatprep.subr.bf16.mxu0 0
        %1903 = vmatpush1.bf16.msra.mxu0 0
        %1904 = vmatprep.subr.bf16.mxu0 0
        %1905 = vmatpush1.bf16.msra.mxu0 0
        %1906 = vmatprep.subr.bf16.mxu0 0
        %1907 = vmatpush1.bf16.msra.mxu0 %v1890
        %1908 = vmatprep.subr.bf16.mxu0 0
        %1909 = vmatpush2.bf16.msra.mxu0 0
        %1910 = vmatprep.subr.bf16.mxu0 0
        %1911 = vmatpush2.bf16.msra.mxu0 0
        %1912 = vmatprep.subr.bf16.mxu0 0
        %1913 = vmatpush2.bf16.msra.mxu0 0
        %1914 = vmatprep.subr.bf16.mxu0 0
        %1915 = vmatpush2.bf16.msra.mxu0 0
        %1916 = vmatprep.subr.bf16.mxu0 0
        %1917 = vmatpush2.bf16.msra.mxu0 0
        %1918 = vmatprep.subr.bf16.mxu0 0
        %1919 = vmatpush2.bf16.msra.mxu0 0
        %1920 = vmatprep.subr.bf16.mxu0 0
        %1921 = vmatpush2.bf16.msra.mxu0 0
        %1922 = vmatprep.subr.bf16.mxu0 0
        %1923 = vmatpush2.bf16.msra.mxu0 0
        %1924 = vmatprep.mubr.bf16.mxu0 0
        %1925 = vmatmul.mubr.bf16.gmra.mxu0 %v1127
        %v1926 = vpop.f32.mrf.mxu0
        %v1927 = vadd.f32 0.0, %v1926
        %v1928 = vpop.f32.mrf.mxu0
        %v1929 = vpop.f32.mrf.mxu0
        %v1930 = vpop.f32.mrf.mxu0
        %1931 = vdwg.mxu0
        %v1932 = vpack.c.bf16 %v1887, %v1887
        %v1934 = vsel %vm1129, %v1932, 0
        %1936 = vmatprep.subr.bf16.mxu0 0
        %1937 = vmatpush1.bf16.msra.mxu0 0
        %1938 = vmatprep.subr.bf16.mxu0 0
        %1939 = vmatpush1.bf16.msra.mxu0 0
        %1940 = vmatprep.subr.bf16.mxu0 0
        %1941 = vmatpush1.bf16.msra.mxu0 0
        %1942 = vmatprep.subr.bf16.mxu0 0
        %1943 = vmatpush1.bf16.msra.mxu0 0
        %1944 = vmatprep.subr.bf16.mxu0 0
        %1945 = vmatpush1.bf16.msra.mxu0 0
        %1946 = vmatprep.subr.bf16.mxu0 0
        %1947 = vmatpush1.bf16.msra.mxu0 0
        %1948 = vmatprep.subr.bf16.mxu0 0
        %1949 = vmatpush1.bf16.msra.mxu0 0
        %1950 = vmatprep.subr.bf16.mxu0 0
        %1951 = vmatpush1.bf16.msra.mxu0 %v1934
        %1952 = vmatprep.subr.bf16.mxu0 0
        %1953 = vmatpush2.bf16.msra.mxu0 0
        %1954 = vmatprep.subr.bf16.mxu0 0
        %1955 = vmatpush2.bf16.msra.mxu0 0
        %1956 = vmatprep.subr.bf16.mxu0 0
        %1957 = vmatpush2.bf16.msra.mxu0 0
        %1958 = vmatprep.subr.bf16.mxu0 0
        %1959 = vmatpush2.bf16.msra.mxu0 0
        %1960 = vmatprep.subr.bf16.mxu0 0
        %1961 = vmatpush2.bf16.msra.mxu0 0
        %1962 = vmatprep.subr.bf16.mxu0 0
        %1963 = vmatpush2.bf16.msra.mxu0 0
        %1964 = vmatprep.subr.bf16.mxu0 0
        %1965 = vmatpush2.bf16.msra.mxu0 0
        %1966 = vmatprep.subr.bf16.mxu0 0
        %1967 = vmatpush2.bf16.msra.mxu0 0
        %1968 = vmatprep.mubr.bf16.mxu0 0
        %1969 = vmatmul.mubr.bf16.gmra.mxu0 %v1175
        %v1970 = vpop.f32.mrf.mxu0
        %v1971 = vadd.f32 0.0, %v1970
        %v1972 = vpop.f32.mrf.mxu0
        %v1973 = vpop.f32.mrf.mxu0
        %v1974 = vpop.f32.mrf.mxu0
        %1975 = vdwg.mxu0
        %v1976 = vpack.c.bf16 %v1558, %v1558
        %v1978 = vsel %vm779, %v1976, 0
        %1980 = vmatprep.subr.bf16.mxu0 0
        %1981 = vmatpush1.bf16.msra.mxu0 0
        %1982 = vmatprep.subr.bf16.mxu0 0
        %1983 = vmatpush1.bf16.msra.mxu0 0
        %1984 = vmatprep.subr.bf16.mxu0 0
        %1985 = vmatpush1.bf16.msra.mxu0 0
        %1986 = vmatprep.subr.bf16.mxu0 0
        %1987 = vmatpush1.bf16.msra.mxu0 0
        %1988 = vmatprep.subr.bf16.mxu0 0
        %1989 = vmatpush1.bf16.msra.mxu0 %v1240
        %1990 = vmatprep.subr.bf16.mxu0 0
        %1991 = vmatpush1.bf16.msra.mxu0 %v1239
        %1992 = vmatprep.subr.bf16.mxu0 0
        %1993 = vmatpush1.bf16.msra.mxu0 %v1238
        %1994 = vmatprep.subr.bf16.mxu0 0
        %1995 = vmatpush1.bf16.msra.mxu0 %v1237
        %1996 = vmatprep.subr.bf16.mxu0 0
        %1997 = vmatpush2.bf16.msra.mxu0 0
        %1998 = vmatprep.subr.bf16.mxu0 0
        %1999 = vmatpush2.bf16.msra.mxu0 0
        %2000 = vmatprep.subr.bf16.mxu0 0
        %2001 = vmatpush2.bf16.msra.mxu0 0
        %2002 = vmatprep.subr.bf16.mxu0 0
        %2003 = vmatpush2.bf16.msra.mxu0 0
        %2004 = vmatprep.subr.bf16.mxu0 0
        %2005 = vmatpush2.bf16.msra.mxu0 0
        %2006 = vmatprep.subr.bf16.mxu0 0
        %2007 = vmatpush2.bf16.msra.mxu0 0
        %2008 = vmatprep.subr.bf16.mxu0 0
        %2009 = vmatpush2.bf16.msra.mxu0 0
        %2010 = vmatprep.subr.bf16.mxu0 0
        %2011 = vmatpush2.bf16.msra.mxu0 0
        %2012 = vmatprep.mubr.bf16.mxu0 0
        %2013 = vmatmul.mubr.bf16.gmra.mxu0 %v1978
        %v2014 = vpop.f32.mrf.mxu0
        %v2015 = vadd.f32 0.0, %v2014
        %v2016 = vpop.f32.mrf.mxu0
        %v2017 = vpop.f32.mrf.mxu0
        %v2018 = vpop.f32.mrf.mxu0
        %2019 = vdwg.mxu0
        %v2020 = vpack.c.bf16 %v1927, %v1927
        %v2021 = vsel %vm779, %v1881, 0.0
        %v2022 = vrot.slane %v2021, 4
        %v2023 = vadd.f32 %v2021, %v2022
        %v2024 = vrot.slane %v2023, 2
        %v2025 = vadd.f32 %v2023, %v2024
        %v2026 = vrot.slane %v2025, 1
        %v2027 = vadd.f32 %v2025, %v2026
        %v2028 = vsel %vm779, %v1881, -inf
        %v2029 = vrot.slane %v2028, 4
        %v2030 = vmax.f32 %v2028, %v2029
        %v2031 = vrot.slane %v2030, 2
        %v2032 = vmax.f32 %v2030, %v2031
        %v2033 = vrot.slane %v2032, 1
        %v2034 = vmax.f32 %v2032, %v2033
        %v2035 = vsel %vm1303, %v2027, %v2034
        %v2036 = vpack.c.bf16 %v2035, %v2035
        %v2038 = vsel %vm779, %v2036, 0
        %2040 = vmatprep.subr.bf16.mxu0 0
        %2041 = vmatpush1.bf16.msra.mxu0 0
        %2042 = vmatprep.subr.bf16.mxu0 0
        %2043 = vmatpush1.bf16.msra.mxu0 0
        %2044 = vmatprep.subr.bf16.mxu0 0
        %2045 = vmatpush1.bf16.msra.mxu0 0
        %2046 = vmatprep.subr.bf16.mxu0 0
        %2047 = vmatpush1.bf16.msra.mxu0 0
        %2048 = vmatprep.subr.bf16.mxu0 0
        %2049 = vmatpush1.bf16.msra.mxu0 %v1240
        %2050 = vmatprep.subr.bf16.mxu0 0
        %2051 = vmatpush1.bf16.msra.mxu0 %v1239
        %2052 = vmatprep.subr.bf16.mxu0 0
        %2053 = vmatpush1.bf16.msra.mxu0 %v1238
        %2054 = vmatprep.subr.bf16.mxu0 0
        %2055 = vmatpush1.bf16.msra.mxu0 %v1237
        %2056 = vmatprep.subr.bf16.mxu0 0
        %2057 = vmatpush2.bf16.msra.mxu0 0
        %2058 = vmatprep.subr.bf16.mxu0 0
        %2059 = vmatpush2.bf16.msra.mxu0 0
        %2060 = vmatprep.subr.bf16.mxu0 0
        %2061 = vmatpush2.bf16.msra.mxu0 0
        %2062 = vmatprep.subr.bf16.mxu0 0
        %2063 = vmatpush2.bf16.msra.mxu0 0
        %2064 = vmatprep.subr.bf16.mxu0 0
        %2065 = vmatpush2.bf16.msra.mxu0 0
        %2066 = vmatprep.subr.bf16.mxu0 0
        %2067 = vmatpush2.bf16.msra.mxu0 0
        %2068 = vmatprep.subr.bf16.mxu0 0
        %2069 = vmatpush2.bf16.msra.mxu0 0
        %2070 = vmatprep.subr.bf16.mxu0 0
        %2071 = vmatpush2.bf16.msra.mxu0 0
        %2072 = vmatprep.mubr.bf16.mxu0 0
        %2073 = vmatmul.mubr.bf16.gmra.mxu0 %v2038
        %v2074 = vpop.f32.mrf.mxu0
        %v2075 = vadd.f32 0.0, %v2074
        %v2076 = vpop.f32.mrf.mxu0
        %v2077 = vpop.f32.mrf.mxu0
        %v2078 = vpop.f32.mrf.mxu0
        %2079 = vdwg.mxu0
        %v2080 = vrot.slane %v1887, 4
        %v2081 = vadd.f32 %v1887, %v2080
        %v2082 = vrot.slane %v2081, 2
        %v2083 = vadd.f32 %v2081, %v2082
        %v2084 = vrot.slane %v2083, 1
        %v2085 = vadd.f32 %v2083, %v2084
        %v2086 = vadd.f32 %v2075, %v2085
        %v2087 = vmul.f32 %v2086, 0.0625
        %v2088 = vrot.slane %v1887, 4
        %v2089 = vmax.f32 %v1887, %v2088
        %v2090 = vrot.slane %v2089, 2
        %v2091 = vmax.f32 %v2089, %v2090
        %v2092 = vrot.slane %v2091, 1
        %v2093 = vmax.f32 %v2091, %v2092
        %v2094 = vmax.f32 %v2075, %v2093
        %2096 = vrot.lane.b32.xlu0 %v2087, 1
        %v2097 = vpop.permute.xlu0 %2096
        %v2099 = vsel %vm788, 0.0, %v2097
        %2100 = vrot.lane.b32.xlu0 %v2087, 127
        %v2101 = vpop.permute.xlu0 %2100
        %v2103 = vsel %vm1372, %v2101, 0.0
        %s2104 = sld [smem:[#allocation4 + %s1374]]
        %v2105 = vstv %s2104
        %v2106 = vmul.f32 %v2105, %v2099
        %s2107 = sld [smem:[#allocation4 + %s1378]]
        %v2108 = vstv %s2107
        %v2109 = vmul.f32 %v2108, %v2087
        %v2110 = vadd.f32 %v2106, %v2109
        %s2111 = sld [smem:[#allocation4 + %s1383]]
        %v2112 = vstv %s2111
        %v2113 = vmul.f32 %v2112, %v2103
        %v2114 = vadd.f32 %v2110, %v2113
        %v2116 = vrot.slane %v2094, 1
        %2117 = vrot.lane.b32.xlu0 %v2116, 1
        %v2118 = vpop.permute.xlu0 %2117
        %v2120 = vsel %vm788, 0.0, %v2118
        %2121 = vrot.lane.b32.xlu0 %v2094, 127
        %v2122 = vpop.permute.xlu0 %2121
        %v2124 = vsel %vm1372, %v2122, 0.0
        %s2125 = sld [smem:[#allocation4 + %s1398]]
        %v2126 = vstv %s2125
        %v2127 = vmul.f32 %v2126, %v2120
        %s2128 = sld [smem:[#allocation4 + %s1402]]
        %v2129 = vstv %s2128
        %v2130 = vmul.f32 %v2129, %v2094
        %v2132 = vrot.slane %v2130, 1
        %v2134 = vadd.f32 %v2127, %v2132
        %s2135 = sld [smem:[#allocation4 + %s1410]]
        %v2136 = vstv %s2135
        %v2137 = vmul.f32 %v2136, %v2124
        %v2139 = vrot.slane %v2137, 1
        %v2141 = vadd.f32 %v2134, %v2139
        %v2142 = vadd.f32 %v2114, %v2141
        %v2143 = vxor.u32 %v2142, 2147483648
        %v2144 = vmul.f32 %v2143, 1.442695
        %v2145 = vpow.pop %v2144
        %v2146 = vadd.f32 %v2145, 1.0
        %v2147 = vrcp.pop %v2146
        %v2148 = vmul.f32 1.0, %v2147
        %v2150 = vsel %vm779, %v2020, 0
        %2152 = vmatprep.subr.bf16.mxu0 0
        %2153 = vmatpush1.bf16.msra.mxu0 0
        %2154 = vmatprep.subr.bf16.mxu0 0
        %2155 = vmatpush1.bf16.msra.mxu0 0
        %2156 = vmatprep.subr.bf16.mxu0 0
        %2157 = vmatpush1.bf16.msra.mxu0 0
        %2158 = vmatprep.subr.bf16.mxu0 0
        %2159 = vmatpush1.bf16.msra.mxu0 0
        %2160 = vmatprep.subr.bf16.mxu0 0
        %2161 = vmatpush1.bf16.msra.mxu0 %v1240
        %2162 = vmatprep.subr.bf16.mxu0 0
        %2163 = vmatpush1.bf16.msra.mxu0 %v1239
        %2164 = vmatprep.subr.bf16.mxu0 0
        %2165 = vmatpush1.bf16.msra.mxu0 %v1238
        %2166 = vmatprep.subr.bf16.mxu0 0
        %2167 = vmatpush1.bf16.msra.mxu0 %v1237
        %2168 = vmatprep.subr.bf16.mxu0 0
        %2169 = vmatpush2.bf16.msra.mxu0 0
        %2170 = vmatprep.subr.bf16.mxu0 0
        %2171 = vmatpush2.bf16.msra.mxu0 0
        %2172 = vmatprep.subr.bf16.mxu0 0
        %2173 = vmatpush2.bf16.msra.mxu0 0
        %2174 = vmatprep.subr.bf16.mxu0 0
        %2175 = vmatpush2.bf16.msra.mxu0 0
        %2176 = vmatprep.subr.bf16.mxu0 0
        %2177 = vmatpush2.bf16.msra.mxu0 0
        %2178 = vmatprep.subr.bf16.mxu0 0
        %2179 = vmatpush2.bf16.msra.mxu0 0
        %2180 = vmatprep.subr.bf16.mxu0 0
        %2181 = vmatpush2.bf16.msra.mxu0 0
        %2182 = vmatprep.subr.bf16.mxu0 0
        %2183 = vmatpush2.bf16.msra.mxu0 0
        %2184 = vmatprep.mubr.bf16.mxu0 0
        %2185 = vmatmul.mubr.bf16.gmra.mxu0 %v2150
        %v2186 = vpop.f32.mrf.mxu0
        %v2187 = vadd.f32 %v1971, %v2186
        %v2188 = vpop.f32.mrf.mxu0
        %v2189 = vpop.f32.mrf.mxu0
        %v2190 = vpop.f32.mrf.mxu0
        %2191 = vdwg.mxu0
        %v2192 = vlaneseq
        %v2193 = vshrl.u32 %v2192, 7
        %v2194 = vsub.s32 0, %v2193
        %v2195 = vrot.slane %v2148, %v2194
        %v2196 = vmul.f32 %v2187, %v2195
        %v2197 = vadd.f32 %v2196, %v1476
        %2198 = vadd.xlane.f32.xlu0 %v2197
        %v2199 = vpop.xlane.xlu0 %2198
        %v2200 = vmul.f32 %v2199, %v792
        %v2201 = vrot.slane %v2200, 4
        %v2202 = vadd.f32 %v2200, %v2201
        %v2203 = vrot.slane %v2202, 2
        %v2204 = vadd.f32 %v2202, %v2203
        %v2205 = vrot.slane %v2204, 1
        %v2206 = vadd.f32 %v2204, %v2205
        %v2207 = vmul.f32 %v2206, %v1488
        %v2208 = vsub.f32 %v2197, %v2207
        %v2209 = vmul.f32 %v2208, %v2208
        %2210 = vadd.xlane.f32.xlu0 %v2209
        %v2211 = vpop.xlane.xlu0 %2210
        %v2212 = vmul.f32 %v2211, %v792
        %v2213 = vrot.slane %v2212, 4
        %v2214 = vadd.f32 %v2212, %v2213
        %v2215 = vrot.slane %v2214, 2
        %v2216 = vadd.f32 %v2214, %v2215
        %v2217 = vrot.slane %v2216, 1
        %v2218 = vadd.f32 %v2216, %v2217
        %v2219 = vmul.f32 %v2218, %v1488
        %v2220 = vadd.f32 %v2219, 1e-05
        %v2221 = vrsqrt.pop %v2220
        %v2222 = vmul.f32 %v2208, %v2221
        %v2223 = vmul.f32 %v2222, %v726
        %v2224 = vadd.f32 %v2223, %v728
        %v2225 = vadd.f32 %v2224, %v2015
        %v2226 = vadd.f32 %v2225, %v1560
        %s2227 = scalar_lea.vmem %s672, 8 [#allocation13]
        %2228 = vst [vmem:[%s2227] sm:$0xff] %v2226
        %s2229 = sand.u32 %s378, 1
        %s2230 = scalar_lea.sflag [#allocation7], %s2229
        %s2231 = sand.u32 %s378, 1
        %s2232 = smul.addr %s2231, 16
        %s2233 = scalar_lea.vmem [#allocation13], %s2232
        // Predicated region
        $region85: #{tpu_custom_call.1} parent=67 // pred_check
          %p2234 = pneg %p388
        $region86: #{tpu_custom_call.1} parent=67 // pred_check_branch
          %2236 = sbr.rel (%p2234) target = $region88
        $region87: #{tpu_custom_call.1} parent=67 // pred_region
          %s2237 = smul.u32 2, %s50
          %s2239 = ssub.s32 256, 256
          %2240 = vsyncadd %s2230, %s2239
          %s2241 = smul.addr %s49, 2
          %s2242 = sadd.s32 %s2237, %s2241
          %s2243 = smul.addr %s2242, 128
          %s2244 = scalar_lea.hbm %s14, %s2243
          %s2245 = sshll.u32 %s2233, 4
          %s2246 = int_to_ptr.vmem [resolvable:$true] %s2245
          %2251 = dma.vmem_to_hbm [thread:$0]  %s2246, 256, %s2244, %s2230, 128, 128, 8
        $region88: #{tpu_custom_call.1} parent=67 // pred_fallthru
          _
      $region68: #{tpu_custom_call.1} parent=5 // pred_fallthru
        _
      %p2252 = scmp.le.s32.totalorder 2, %s40
      // Predicated region
      $region89: #{tpu_custom_call.1} parent=5 // pred_check
        %p2253 = pneg %p2252
      $region90: #{tpu_custom_call.1} parent=5 // pred_check_branch
        %2255 = sbr.rel (%p2253) target = $region92
      $region91: #{tpu_custom_call.1} parent=5 // pred_region
        %s2256 = ssub.s32 %s40, 2
        // Predicated region
        $region93: #{tpu_custom_call.1} parent=91 // pred_check
          %p2257 = pneg %p394
        $region94: #{tpu_custom_call.1} parent=91 // pred_check_branch
          %2259 = sbr.rel (%p2257) target = $region96
        $region95: #{tpu_custom_call.1} parent=91 // pred_region
          %s2260 = sand.u32 %s379, 1
          %s2261 = scalar_lea.sflag [#allocation7], %s2260
          %s2262 = sand.u32 %s379, 1
          %s2263 = smul.addr %s2262, 16
          %s2264 = scalar_lea.vmem [#allocation13], %s2263
          %2265 = dma.done %s2261, 256
        $region96: #{tpu_custom_call.1} parent=91 // pred_fallthru
          _
      $region92: #{tpu_custom_call.1} parent=5 // pred_fallthru
        _
    $region6: #{tpu_custom_call.1} parent=1 // loop_footer
      %s44 = sadd.s32 1, %s40
    $region7: #{tpu_custom_call.1} parent=1 // loop_footer_branch
      %39 = sbr.rel target = $region3
    $region8: #{tpu_custom_call.1} parent=1 // loop_exit
      _
    %2266 = vsyncpa [#allocation6], 1
    %s2267 = scalar_lea.sflag [#allocation6], 1
    %2268 = vsyncpa %s2267, 1
    %2269 = vsyncpa [#allocation9], 1
    %s2270 = scalar_lea.sflag [#allocation9], 1
    %2271 = vsyncpa %s2270, 1
    %2272 = vsyncpa [#allocation12], 1
    %s2273 = scalar_lea.sflag [#allocation12], 1
    %2274 = vsyncpa %s2273, 1
    %2275 = vsyncpa [#allocation7], 1
    %s2276 = scalar_lea.sflag [#allocation7], 1
    %2277 = vsyncpa %s2276, 1

</llo_original>
